<compile_context>
chip_gen: v6e
topology: v6e:2x2x1
jax: 0.10.0
libtpu: 0.0.40
codegen_flags: <defaults>
</compile_context>

<pallas_src>
import jax
import jax.numpy as jnp
from jax import lax
from jax.experimental import pallas as pl
from jax.experimental.pallas import tpu as pltpu


def _net_kernel(x_ref, w_enc_ref, b_enc_ref, w_fc_ref, b_fc_ref, out_ref):
    # x_ref:     (BT, C, HW_T)  batch tile x HW tile, channel-major layout
    # w_enc_ref: (ENC, C)       stand-in encoder (1x1 conv) weights
    # b_enc_ref: (ENC, 1)       encoder bias (ENC on sublanes, matches feat)
    # w_fc_ref:  (ENC, OUT)     fc1 weights, transposed and pre-scaled by 1/HW
    # b_fc_ref:  (1, OUT)
    # out_ref:   (BT, OUT)      resident across the HW grid axis (accumulator)
    bt, cch, hwt = x_ref.shape
    enc, out_dim = w_fc_ref.shape
    enc_t = 128 if enc % 128 == 0 else enc
    n_enc_tiles = enc // enc_t

    hw_step = pl.program_id(1)

    @pl.when(hw_step == 0)
    def _():
        out_ref[...] = jnp.zeros_like(out_ref)

    # Keep bf16 activations in bf16 through the VPU (v6e/v7x); f32 stays f32.
    cdt = jnp.bfloat16 if x_ref.dtype == jnp.bfloat16 else jnp.float32
    x = x_ref[...].astype(cdt)                                  # (BT, C, HW_T)

    def enc_tile(t, logits):
        e0 = pl.multiple_of(t * enc_t, enc_t)
        w = w_enc_ref[pl.ds(e0, enc_t), :].astype(cdt)          # (ENC_T, C)
        b = b_enc_ref[pl.ds(e0, enc_t), :].astype(cdt)          # (ENC_T, 1)

        # Encoder: pointwise C -> ENC_T projection as C VPU broadcast-FMAs
        # (K=C is tiny; an MXU matmul here would waste ~97% of the array).
        feat = w[:, 0:1][None, :, :] * x[:, 0:1, :]
        for c in range(1, cch):                                 # static unroll
            feat = feat + w[:, c:c + 1][None, :, :] * x[:, c:c + 1, :]
        # Bias ((ENC_T,1): pure lane/batch broadcast) + ReLU.
        feat = jnp.maximum(feat + b[None, :, :], 0.0)           # (BT, ENC_T, HW_T)

        # Partial pool over this HW tile; accumulate the sum in f32 (XLU).
        pooled = jnp.sum(feat, axis=-1, keepdims=True,
                         dtype=jnp.float32)                     # (BT, ENC_T, 1)

        # Fused pool->FC: contract pooled partial with the matching fc rows
        # (VPU multiply + sublane reduce; no relayout, no degenerate MXU pass).
        wfc = w_fc_ref[pl.ds(e0, enc_t), :].astype(jnp.float32)  # (ENC_T, OUT)
        return logits + jnp.sum(pooled * wfc[None, :, :], axis=1)  # (BT, OUT)

    logits = lax.fori_loop(0, n_enc_tiles, enc_tile,
                           jnp.zeros((bt, out_dim), jnp.float32),
                           unroll=True)
    out_ref[...] += logits

    @pl.when(hw_step == pl.num_programs(1) - 1)
    def _():
        out_ref[...] = jnp.maximum(out_ref[...] + b_fc_ref[...], 0.0)


def _pick_hw_tile(hw):
    """Largest multiple-of-128 divisor of hw, capped at 1024; else full hw."""
    if hw <= 1024 or hw % 128 != 0:
        return hw
    for t in range(1024, 0, -128):
        if hw % t == 0:
            return t
    return hw


def net_forward(x_nchw, w_enc, b_enc, w_fc, b_fc):
    """x_nchw: [B, C, H, W]. Returns [B, 8] float32."""
    B, C, H, W = x_nchw.shape
    HW = H * W
    ENC = w_enc.shape[0]   # 512
    OUT = w_fc.shape[0]    # 8

    # Batch tile: split in two when B is big enough to keep BT a multiple of 8
    # (gives the second v7x TensorCore parallel grid steps without fragmenting
    # the 8-wide masked output stores).  Toy sizes run as one batch tile.
    BT = B // 2 if (B % 16 == 0) else B
    assert B % BT == 0, (B, BT)

    HW_T = _pick_hw_tile(HW)
    assert HW % HW_T == 0, (HW, HW_T)

    # Glue (plain JAX): free reshapes + tiny one-time weight transforms.
    x_bcs = x_nchw.reshape(B, C, HW)              # [B, C, HW]  (view)
    b_enc_2d = b_enc.reshape(ENC, 1)              # [ENC, 1]
    w_fc_t = jnp.transpose(w_fc) * (1.0 / HW)     # [ENC, OUT], mean folded in
    b_fc_2d = b_fc.reshape(1, OUT)                # [1, OUT]

    grid_spec = pltpu.PrefetchScalarGridSpec(
        num_scalar_prefetch=0,
        grid=(B // BT, HW // HW_T),
        in_specs=[
            pl.BlockSpec((BT, C, HW_T), lambda i, j: (i, 0, j)),
            pl.BlockSpec((ENC, C), lambda i, j: (0, 0)),
            pl.BlockSpec((ENC, 1), lambda i, j: (0, 0)),
            pl.BlockSpec((ENC, OUT), lambda i, j: (0, 0)),
            pl.BlockSpec((1, OUT), lambda i, j: (0, 0)),
        ],
        out_specs=pl.BlockSpec((BT, OUT), lambda i, j: (i, 0)),
    )

    return pl.pallas_call(
        _net_kernel,
        out_shape=jax.ShapeDtypeStruct((B, OUT), jnp.float32),
        grid_spec=grid_spec,
        compiler_params=pltpu.CompilerParams(
            dimension_semantics=("parallel", "arbitrary"),
            vmem_limit_bytes=32 * 1024 * 1024),
    )(x_bcs, w_enc, b_enc_2d, w_fc_t, b_fc_2d)


def net_forward_ref(x_nchw, w_enc, b_enc, w_fc, b_fc):
    """Pure-JAX reference with identical semantics."""
    B, C, H, W = x_nchw.shape
    x_flat = x_nchw.reshape(B, C, H * W)                          # [B, C, HW]
    feat = jnp.einsum('ec,bcs->bes', w_enc, x_flat) + b_enc[None, :, None]
    feat = jnp.maximum(feat, 0.0)                                 # [B, 512, HW]
    avg = jnp.mean(feat, axis=-1)                                 # [B, 512]
    logits = avg @ w_fc.T + b_fc                                  # [B, 8]
    return jnp.maximum(logits, 0.0)


if __name__ == "__main__":
    B, C, H, W = 2, 4, 16, 16
    ENC, OUT = 512, 8

    key = jax.random.PRNGKey(0)
    kx, k1, k2, k3, k4 = jax.random.split(key, 5)

    x = jax.random.normal(kx, (B, C, H, W), dtype=jnp.float32)

    # Deterministic parameter init (PyTorch-style uniform +/- 1/sqrt(fan_in)).
    enc_bound = 1.0 / jnp.sqrt(jnp.float32(C))
    w_enc = jax.random.uniform(k1, (ENC, C), jnp.float32, -enc_bound, enc_bound)
    b_enc = jax.random.uniform(k2, (ENC,), jnp.float32, -enc_bound, enc_bound)

    fc_bound = 1.0 / jnp.sqrt(jnp.float32(ENC))
    w_fc = jax.random.uniform(k3, (OUT, ENC), jnp.float32, -fc_bound, fc_bound)
    b_fc = jax.random.uniform(k4, (OUT,), jnp.float32, -fc_bound, fc_bound)

    out = jax.block_until_ready(net_forward(x, w_enc, b_enc, w_fc, b_fc))
    ref = jax.block_until_ready(net_forward_ref(x, w_enc, b_enc, w_fc, b_fc))

    assert out.shape == (B, OUT), out.shape
    assert jnp.allclose(out, ref, rtol=1e-3, atol=1e-3), (out, ref)
    print("KERNEL_OK")
</pallas_src>

<mosaic_0001>
module attributes {stable_mosaic.version = 11 : i64} {
  func.func @_net_kernel(%arg0: i32, %arg1: i32, %arg2: memref<2x4x256xf32, #tpu.memory_space<vmem>>, %arg3: memref<512x4xf32, #tpu.memory_space<vmem>>, %arg4: memref<512x1xf32, #tpu.memory_space<vmem>>, %arg5: memref<512x8xf32, #tpu.memory_space<vmem>>, %arg6: memref<1x8xf32, #tpu.memory_space<vmem>>, %arg7: memref<2x8xf32, #tpu.memory_space<vmem>>) attributes {dimension_semantics = [#tpu.dimension_semantics<parallel>, #tpu.dimension_semantics<arbitrary>], iteration_bounds = array<i64: 1, 1>, scalar_prefetch = 0 : i64, scratch_operands = 0 : i64, tpu.core_type = #tpu.core_type<tc>, window_params = [{transform_indices = @transform_0, window_bounds = array<i64: 2, 4, 256>}, {pipeline_mode = #tpu.pipeline_mode<synchronous>, transform_indices = @transform_1, window_bounds = array<i64: 512, 4>}, {pipeline_mode = #tpu.pipeline_mode<synchronous>, transform_indices = @transform_2, window_bounds = array<i64: 512, 1>}, {pipeline_mode = #tpu.pipeline_mode<synchronous>, transform_indices = @transform_3, window_bounds = array<i64: 512, 8>}, {pipeline_mode = #tpu.pipeline_mode<synchronous>, transform_indices = @transform_4, window_bounds = array<i64: 1, 8>}, {transform_indices = @transform_5, window_bounds = array<i64: 2, 8>}]} {
    %c0_i32 = arith.constant 0 : i32
    %0 = arith.cmpi eq, %arg1, %c0_i32 : i32
    %1 = arith.extui %0 : i1 to i32
    %c0_i32_0 = arith.constant 0 : i32
    %2 = arith.cmpi ne, %1, %c0_i32_0 : i32
    scf.if %2 {
      %cst_37 = arith.constant 0.000000e+00 : f32
      %203 = vector.broadcast %cst_37 : f32 to vector<2x8xf32>
      %c0_38 = arith.constant 0 : index
      %c0_39 = arith.constant 0 : index
      %204 = vector.load %arg7[%c0_38, %c0_39] : memref<2x8xf32, #tpu.memory_space<vmem>>, vector<2x8xf32>
      tpu.vector_store %arg7[%c0_38, %c0_39], %203 {strides = array<i32>} : memref<2x8xf32, #tpu.memory_space<vmem>>, vector<2x8xf32>,
    } else {
    }
    %c0 = arith.constant 0 : index
    %c0_1 = arith.constant 0 : index
    %c0_2 = arith.constant 0 : index
    %3 = vector.load %arg2[%c0, %c0_1, %c0_2] : memref<2x4x256xf32, #tpu.memory_space<vmem>>, vector<2x4x256xf32>
    %cst = arith.constant 0.000000e+00 : f32
    %4 = vector.broadcast %cst : f32 to vector<2x8xf32>
    %c0_i32_3 = arith.constant 0 : i32
    %c128_i32 = arith.constant 128 : i32
    %5 = arith.muli %c0_i32_3, %c128_i32 : i32
    %6 = tpu.assume_multiple %5, 128 : i32
    %7 = arith.index_cast %6 : i32 to index
    %c0_4 = arith.constant 0 : index
    %8 = vector.load %arg3[%7, %c0_4] : memref<512x4xf32, #tpu.memory_space<vmem>>, vector<128x4xf32>
    %9 = arith.index_cast %6 : i32 to index
    %c0_5 = arith.constant 0 : index
    %10 = vector.load %arg4[%9, %c0_5] : memref<512x1xf32, #tpu.memory_space<vmem>>, vector<128x1xf32>
    %11 = vector.extract_strided_slice %8 {offsets = [0, 0], sizes = [128, 1], strides = [1, 1]} : vector<128x4xf32> to vector<128x1xf32>
    %12 = vector.shape_cast %11 : vector<128x1xf32> to vector<1x128x1xf32>
    %13 = vector.extract_strided_slice %3 {offsets = [0, 0, 0], sizes = [2, 1, 256], strides = [1, 1, 1]} : vector<2x4x256xf32> to vector<2x1x256xf32>
    %14 = vector.broadcast %12 : vector<1x128x1xf32> to vector<2x128x256xf32>
    %15 = vector.broadcast %13 : vector<2x1x256xf32> to vector<2x128x256xf32>
    %16 = arith.mulf %14, %15 : vector<2x128x256xf32>
    %17 = vector.extract_strided_slice %8 {offsets = [0, 1], sizes = [128, 1], strides = [1, 1]} : vector<128x4xf32> to vector<128x1xf32>
    %18 = vector.shape_cast %17 : vector<128x1xf32> to vector<1x128x1xf32>
    %19 = vector.extract_strided_slice %3 {offsets = [0, 1, 0], sizes = [2, 1, 256], strides = [1, 1, 1]} : vector<2x4x256xf32> to vector<2x1x256xf32>
    %20 = vector.broadcast %18 : vector<1x128x1xf32> to vector<2x128x256xf32>
    %21 = vector.broadcast %19 : vector<2x1x256xf32> to vector<2x128x256xf32>
    %22 = arith.mulf %20, %21 : vector<2x128x256xf32>
    %23 = arith.addf %16, %22 : vector<2x128x256xf32>
    %24 = vector.extract_strided_slice %8 {offsets = [0, 2], sizes = [128, 1], strides = [1, 1]} : vector<128x4xf32> to vector<128x1xf32>
    %25 = vector.shape_cast %24 : vector<128x1xf32> to vector<1x128x1xf32>
    %26 = vector.extract_strided_slice %3 {offsets = [0, 2, 0], sizes = [2, 1, 256], strides = [1, 1, 1]} : vector<2x4x256xf32> to vector<2x1x256xf32>
    %27 = vector.broadcast %25 : vector<1x128x1xf32> to vector<2x128x256xf32>
    %28 = vector.broadcast %26 : vector<2x1x256xf32> to vector<2x128x256xf32>
    %29 = arith.mulf %27, %28 : vector<2x128x256xf32>
    %30 = arith.addf %23, %29 : vector<2x128x256xf32>
    %31 = vector.extract_strided_slice %8 {offsets = [0, 3], sizes = [128, 1], strides = [1, 1]} : vector<128x4xf32> to vector<128x1xf32>
    %32 = vector.shape_cast %31 : vector<128x1xf32> to vector<1x128x1xf32>
    %33 = vector.extract_strided_slice %3 {offsets = [0, 3, 0], sizes = [2, 1, 256], strides = [1, 1, 1]} : vector<2x4x256xf32> to vector<2x1x256xf32>
    %34 = vector.broadcast %32 : vector<1x128x1xf32> to vector<2x128x256xf32>
    %35 = vector.broadcast %33 : vector<2x1x256xf32> to vector<2x128x256xf32>
    %36 = arith.mulf %34, %35 : vector<2x128x256xf32>
    %37 = arith.addf %30, %36 : vector<2x128x256xf32>
    %38 = vector.shape_cast %10 : vector<128x1xf32> to vector<1x128x1xf32>
    %39 = vector.broadcast %38 : vector<1x128x1xf32> to vector<2x128x256xf32>
    %40 = arith.addf %37, %39 : vector<2x128x256xf32>
    %cst_6 = arith.constant 0.000000e+00 : f32
    %41 = vector.broadcast %cst_6 : f32 to vector<2x128x256xf32>
    %42 = arith.maximumf %40, %41 : vector<2x128x256xf32>
    %cst_7 = arith.constant dense<0.000000e+00> : vector<2x128xf32>
    %43 = vector.multi_reduction <add>, %42, %cst_7 [2] : vector<2x128x256xf32> to vector<2x128xf32>
    %44 = vector.shape_cast %43 : vector<2x128xf32> to vector<2x128x1xf32>
    %45 = arith.index_cast %6 : i32 to index
    %c0_8 = arith.constant 0 : index
    %46 = vector.load %arg5[%45, %c0_8] : memref<512x8xf32, #tpu.memory_space<vmem>>, vector<128x8xf32>
    %47 = vector.shape_cast %46 : vector<128x8xf32> to vector<1x128x8xf32>
    %48 = vector.broadcast %44 : vector<2x128x1xf32> to vector<2x128x8xf32>
    %49 = vector.broadcast %47 : vector<1x128x8xf32> to vector<2x128x8xf32>
    %50 = arith.mulf %48, %49 : vector<2x128x8xf32>
    %cst_9 = arith.constant dense<0.000000e+00> : vector<2x8xf32>
    %51 = vector.multi_reduction <add>, %50, %cst_9 [1] : vector<2x128x8xf32> to vector<2x8xf32>
    %52 = arith.addf %4, %51 : vector<2x8xf32>
    %c1_i32 = arith.constant 1 : i32
    %c128_i32_10 = arith.constant 128 : i32
    %53 = arith.muli %c1_i32, %c128_i32_10 : i32
    %54 = tpu.assume_multiple %53, 128 : i32
    %55 = arith.index_cast %54 : i32 to index
    %c0_11 = arith.constant 0 : index
    %56 = vector.load %arg3[%55, %c0_11] : memref<512x4xf32, #tpu.memory_space<vmem>>, vector<128x4xf32>
    %57 = arith.index_cast %54 : i32 to index
    %c0_12 = arith.constant 0 : index
    %58 = vector.load %arg4[%57, %c0_12] : memref<512x1xf32, #tpu.memory_space<vmem>>, vector<128x1xf32>
    %59 = vector.extract_strided_slice %56 {offsets = [0, 0], sizes = [128, 1], strides = [1, 1]} : vector<128x4xf32> to vector<128x1xf32>
    %60 = vector.shape_cast %59 : vector<128x1xf32> to vector<1x128x1xf32>
    %61 = vector.extract_strided_slice %3 {offsets = [0, 0, 0], sizes = [2, 1, 256], strides = [1, 1, 1]} : vector<2x4x256xf32> to vector<2x1x256xf32>
    %62 = vector.broadcast %60 : vector<1x128x1xf32> to vector<2x128x256xf32>
    %63 = vector.broadcast %61 : vector<2x1x256xf32> to vector<2x128x256xf32>
    %64 = arith.mulf %62, %63 : vector<2x128x256xf32>
    %65 = vector.extract_strided_slice %56 {offsets = [0, 1], sizes = [128, 1], strides = [1, 1]} : vector<128x4xf32> to vector<128x1xf32>
    %66 = vector.shape_cast %65 : vector<128x1xf32> to vector<1x128x1xf32>
    %67 = vector.extract_strided_slice %3 {offsets = [0, 1, 0], sizes = [2, 1, 256], strides = [1, 1, 1]} : vector<2x4x256xf32> to vector<2x1x256xf32>
    %68 = vector.broadcast %66 : vector<1x128x1xf32> to vector<2x128x256xf32>
    %69 = vector.broadcast %67 : vector<2x1x256xf32> to vector<2x128x256xf32>
    %70 = arith.mulf %68, %69 : vector<2x128x256xf32>
    %71 = arith.addf %64, %70 : vector<2x128x256xf32>
    %72 = vector.extract_strided_slice %56 {offsets = [0, 2], sizes = [128, 1], strides = [1, 1]} : vector<128x4xf32> to vector<128x1xf32>
    %73 = vector.shape_cast %72 : vector<128x1xf32> to vector<1x128x1xf32>
    %74 = vector.extract_strided_slice %3 {offsets = [0, 2, 0], sizes = [2, 1, 256], strides = [1, 1, 1]} : vector<2x4x256xf32> to vector<2x1x256xf32>
    %75 = vector.broadcast %73 : vector<1x128x1xf32> to vector<2x128x256xf32>
    %76 = vector.broadcast %74 : vector<2x1x256xf32> to vector<2x128x256xf32>
    %77 = arith.mulf %75, %76 : vector<2x128x256xf32>
    %78 = arith.addf %71, %77 : vector<2x128x256xf32>
    %79 = vector.extract_strided_slice %56 {offsets = [0, 3], sizes = [128, 1], strides = [1, 1]} : vector<128x4xf32> to vector<128x1xf32>
    %80 = vector.shape_cast %79 : vector<128x1xf32> to vector<1x128x1xf32>
    %81 = vector.extract_strided_slice %3 {offsets = [0, 3, 0], sizes = [2, 1, 256], strides = [1, 1, 1]} : vector<2x4x256xf32> to vector<2x1x256xf32>
    %82 = vector.broadcast %80 : vector<1x128x1xf32> to vector<2x128x256xf32>
    %83 = vector.broadcast %81 : vector<2x1x256xf32> to vector<2x128x256xf32>
    %84 = arith.mulf %82, %83 : vector<2x128x256xf32>
    %85 = arith.addf %78, %84 : vector<2x128x256xf32>
    %86 = vector.shape_cast %58 : vector<128x1xf32> to vector<1x128x1xf32>
    %87 = vector.broadcast %86 : vector<1x128x1xf32> to vector<2x128x256xf32>
    %88 = arith.addf %85, %87 : vector<2x128x256xf32>
    %cst_13 = arith.constant 0.000000e+00 : f32
    %89 = vector.broadcast %cst_13 : f32 to vector<2x128x256xf32>
    %90 = arith.maximumf %88, %89 : vector<2x128x256xf32>
    %cst_14 = arith.constant dense<0.000000e+00> : vector<2x128xf32>
    %91 = vector.multi_reduction <add>, %90, %cst_14 [2] : vector<2x128x256xf32> to vector<2x128xf32>
    %92 = vector.shape_cast %91 : vector<2x128xf32> to vector<2x128x1xf32>
    %93 = arith.index_cast %54 : i32 to index
    %c0_15 = arith.constant 0 : index
    %94 = vector.load %arg5[%93, %c0_15] : memref<512x8xf32, #tpu.memory_space<vmem>>, vector<128x8xf32>
    %95 = vector.shape_cast %94 : vector<128x8xf32> to vector<1x128x8xf32>
    %96 = vector.broadcast %92 : vector<2x128x1xf32> to vector<2x128x8xf32>
    %97 = vector.broadcast %95 : vector<1x128x8xf32> to vector<2x128x8xf32>
    %98 = arith.mulf %96, %97 : vector<2x128x8xf32>
    %cst_16 = arith.constant dense<0.000000e+00> : vector<2x8xf32>
    %99 = vector.multi_reduction <add>, %98, %cst_16 [1] : vector<2x128x8xf32> to vector<2x8xf32>
    %100 = arith.addf %52, %99 : vector<2x8xf32>
    %c2_i32 = arith.constant 2 : i32
    %c128_i32_17 = arith.constant 128 : i32
    %101 = arith.muli %c2_i32, %c128_i32_17 : i32
    %102 = tpu.assume_multiple %101, 128 : i32
    %103 = arith.index_cast %102 : i32 to index
    %c0_18 = arith.constant 0 : index
    %104 = vector.load %arg3[%103, %c0_18] : memref<512x4xf32, #tpu.memory_space<vmem>>, vector<128x4xf32>
    %105 = arith.index_cast %102 : i32 to index
    %c0_19 = arith.constant 0 : index
    %106 = vector.load %arg4[%105, %c0_19] : memref<512x1xf32, #tpu.memory_space<vmem>>, vector<128x1xf32>
    %107 = vector.extract_strided_slice %104 {offsets = [0, 0], sizes = [128, 1], strides = [1, 1]} : vector<128x4xf32> to vector<128x1xf32>
    %108 = vector.shape_cast %107 : vector<128x1xf32> to vector<1x128x1xf32>
    %109 = vector.extract_strided_slice %3 {offsets = [0, 0, 0], sizes = [2, 1, 256], strides = [1, 1, 1]} : vector<2x4x256xf32> to vector<2x1x256xf32>
    %110 = vector.broadcast %108 : vector<1x128x1xf32> to vector<2x128x256xf32>
    %111 = vector.broadcast %109 : vector<2x1x256xf32> to vector<2x128x256xf32>
    %112 = arith.mulf %110, %111 : vector<2x128x256xf32>
    %113 = vector.extract_strided_slice %104 {offsets = [0, 1], sizes = [128, 1], strides = [1, 1]} : vector<128x4xf32> to vector<128x1xf32>
    %114 = vector.shape_cast %113 : vector<128x1xf32> to vector<1x128x1xf32>
    %115 = vector.extract_strided_slice %3 {offsets = [0, 1, 0], sizes = [2, 1, 256], strides = [1, 1, 1]} : vector<2x4x256xf32> to vector<2x1x256xf32>
    %116 = vector.broadcast %114 : vector<1x128x1xf32> to vector<2x128x256xf32>
    %117 = vector.broadcast %115 : vector<2x1x256xf32> to vector<2x128x256xf32>
    %118 = arith.mulf %116, %117 : vector<2x128x256xf32>
    %119 = arith.addf %112, %118 : vector<2x128x256xf32>
    %120 = vector.extract_strided_slice %104 {offsets = [0, 2], sizes = [128, 1], strides = [1, 1]} : vector<128x4xf32> to vector<128x1xf32>
    %121 = vector.shape_cast %120 : vector<128x1xf32> to vector<1x128x1xf32>
    %122 = vector.extract_strided_slice %3 {offsets = [0, 2, 0], sizes = [2, 1, 256], strides = [1, 1, 1]} : vector<2x4x256xf32> to vector<2x1x256xf32>
    %123 = vector.broadcast %121 : vector<1x128x1xf32> to vector<2x128x256xf32>
    %124 = vector.broadcast %122 : vector<2x1x256xf32> to vector<2x128x256xf32>
    %125 = arith.mulf %123, %124 : vector<2x128x256xf32>
    %126 = arith.addf %119, %125 : vector<2x128x256xf32>
    %127 = vector.extract_strided_slice %104 {offsets = [0, 3], sizes = [128, 1], strides = [1, 1]} : vector<128x4xf32> to vector<128x1xf32>
    %128 = vector.shape_cast %127 : vector<128x1xf32> to vector<1x128x1xf32>
    %129 = vector.extract_strided_slice %3 {offsets = [0, 3, 0], sizes = [2, 1, 256], strides = [1, 1, 1]} : vector<2x4x256xf32> to vector<2x1x256xf32>
    %130 = vector.broadcast %128 : vector<1x128x1xf32> to vector<2x128x256xf32>
    %131 = vector.broadcast %129 : vector<2x1x256xf32> to vector<2x128x256xf32>
    %132 = arith.mulf %130, %131 : vector<2x128x256xf32>
    %133 = arith.addf %126, %132 : vector<2x128x256xf32>
    %134 = vector.shape_cast %106 : vector<128x1xf32> to vector<1x128x1xf32>
    %135 = vector.broadcast %134 : vector<1x128x1xf32> to vector<2x128x256xf32>
    %136 = arith.addf %133, %135 : vector<2x128x256xf32>
    %cst_20 = arith.constant 0.000000e+00 : f32
    %137 = vector.broadcast %cst_20 : f32 to vector<2x128x256xf32>
    %138 = arith.maximumf %136, %137 : vector<2x128x256xf32>
    %cst_21 = arith.constant dense<0.000000e+00> : vector<2x128xf32>
    %139 = vector.multi_reduction <add>, %138, %cst_21 [2] : vector<2x128x256xf32> to vector<2x128xf32>
    %140 = vector.shape_cast %139 : vector<2x128xf32> to vector<2x128x1xf32>
    %141 = arith.index_cast %102 : i32 to index
    %c0_22 = arith.constant 0 : index
    %142 = vector.load %arg5[%141, %c0_22] : memref<512x8xf32, #tpu.memory_space<vmem>>, vector<128x8xf32>
    %143 = vector.shape_cast %142 : vector<128x8xf32> to vector<1x128x8xf32>
    %144 = vector.broadcast %140 : vector<2x128x1xf32> to vector<2x128x8xf32>
    %145 = vector.broadcast %143 : vector<1x128x8xf32> to vector<2x128x8xf32>
    %146 = arith.mulf %144, %145 : vector<2x128x8xf32>
    %cst_23 = arith.constant dense<0.000000e+00> : vector<2x8xf32>
    %147 = vector.multi_reduction <add>, %146, %cst_23 [1] : vector<2x128x8xf32> to vector<2x8xf32>
    %148 = arith.addf %100, %147 : vector<2x8xf32>
    %c3_i32 = arith.constant 3 : i32
    %c128_i32_24 = arith.constant 128 : i32
    %149 = arith.muli %c3_i32, %c128_i32_24 : i32
    %150 = tpu.assume_multiple %149, 128 : i32
    %151 = arith.index_cast %150 : i32 to index
    %c0_25 = arith.constant 0 : index
    %152 = vector.load %arg3[%151, %c0_25] : memref<512x4xf32, #tpu.memory_space<vmem>>, vector<128x4xf32>
    %153 = arith.index_cast %150 : i32 to index
    %c0_26 = arith.constant 0 : index
    %154 = vector.load %arg4[%153, %c0_26] : memref<512x1xf32, #tpu.memory_space<vmem>>, vector<128x1xf32>
    %155 = vector.extract_strided_slice %152 {offsets = [0, 0], sizes = [128, 1], strides = [1, 1]} : vector<128x4xf32> to vector<128x1xf32>
    %156 = vector.shape_cast %155 : vector<128x1xf32> to vector<1x128x1xf32>
    %157 = vector.extract_strided_slice %3 {offsets = [0, 0, 0], sizes = [2, 1, 256], strides = [1, 1, 1]} : vector<2x4x256xf32> to vector<2x1x256xf32>
    %158 = vector.broadcast %156 : vector<1x128x1xf32> to vector<2x128x256xf32>
    %159 = vector.broadcast %157 : vector<2x1x256xf32> to vector<2x128x256xf32>
    %160 = arith.mulf %158, %159 : vector<2x128x256xf32>
    %161 = vector.extract_strided_slice %152 {offsets = [0, 1], sizes = [128, 1], strides = [1, 1]} : vector<128x4xf32> to vector<128x1xf32>
    %162 = vector.shape_cast %161 : vector<128x1xf32> to vector<1x128x1xf32>
    %163 = vector.extract_strided_slice %3 {offsets = [0, 1, 0], sizes = [2, 1, 256], strides = [1, 1, 1]} : vector<2x4x256xf32> to vector<2x1x256xf32>
    %164 = vector.broadcast %162 : vector<1x128x1xf32> to vector<2x128x256xf32>
    %165 = vector.broadcast %163 : vector<2x1x256xf32> to vector<2x128x256xf32>
    %166 = arith.mulf %164, %165 : vector<2x128x256xf32>
    %167 = arith.addf %160, %166 : vector<2x128x256xf32>
    %168 = vector.extract_strided_slice %152 {offsets = [0, 2], sizes = [128, 1], strides = [1, 1]} : vector<128x4xf32> to vector<128x1xf32>
    %169 = vector.shape_cast %168 : vector<128x1xf32> to vector<1x128x1xf32>
    %170 = vector.extract_strided_slice %3 {offsets = [0, 2, 0], sizes = [2, 1, 256], strides = [1, 1, 1]} : vector<2x4x256xf32> to vector<2x1x256xf32>
    %171 = vector.broadcast %169 : vector<1x128x1xf32> to vector<2x128x256xf32>
    %172 = vector.broadcast %170 : vector<2x1x256xf32> to vector<2x128x256xf32>
    %173 = arith.mulf %171, %172 : vector<2x128x256xf32>
    %174 = arith.addf %167, %173 : vector<2x128x256xf32>
    %175 = vector.extract_strided_slice %152 {offsets = [0, 3], sizes = [128, 1], strides = [1, 1]} : vector<128x4xf32> to vector<128x1xf32>
    %176 = vector.shape_cast %175 : vector<128x1xf32> to vector<1x128x1xf32>
    %177 = vector.extract_strided_slice %3 {offsets = [0, 3, 0], sizes = [2, 1, 256], strides = [1, 1, 1]} : vector<2x4x256xf32> to vector<2x1x256xf32>
    %178 = vector.broadcast %176 : vector<1x128x1xf32> to vector<2x128x256xf32>
    %179 = vector.broadcast %177 : vector<2x1x256xf32> to vector<2x128x256xf32>
    %180 = arith.mulf %178, %179 : vector<2x128x256xf32>
    %181 = arith.addf %174, %180 : vector<2x128x256xf32>
    %182 = vector.shape_cast %154 : vector<128x1xf32> to vector<1x128x1xf32>
    %183 = vector.broadcast %182 : vector<1x128x1xf32> to vector<2x128x256xf32>
    %184 = arith.addf %181, %183 : vector<2x128x256xf32>
    %cst_27 = arith.constant 0.000000e+00 : f32
    %185 = vector.broadcast %cst_27 : f32 to vector<2x128x256xf32>
    %186 = arith.maximumf %184, %185 : vector<2x128x256xf32>
    %cst_28 = arith.constant dense<0.000000e+00> : vector<2x128xf32>
    %187 = vector.multi_reduction <add>, %186, %cst_28 [2] : vector<2x128x256xf32> to vector<2x128xf32>
    %188 = vector.shape_cast %187 : vector<2x128xf32> to vector<2x128x1xf32>
    %189 = arith.index_cast %150 : i32 to index
    %c0_29 = arith.constant 0 : index
    %190 = vector.load %arg5[%189, %c0_29] : memref<512x8xf32, #tpu.memory_space<vmem>>, vector<128x8xf32>
    %191 = vector.shape_cast %190 : vector<128x8xf32> to vector<1x128x8xf32>
    %192 = vector.broadcast %188 : vector<2x128x1xf32> to vector<2x128x8xf32>
    %193 = vector.broadcast %191 : vector<1x128x8xf32> to vector<2x128x8xf32>
    %194 = arith.mulf %192, %193 : vector<2x128x8xf32>
    %cst_30 = arith.constant dense<0.000000e+00> : vector<2x8xf32>
    %195 = vector.multi_reduction <add>, %194, %cst_30 [1] : vector<2x128x8xf32> to vector<2x8xf32>
    %196 = arith.addf %148, %195 : vector<2x8xf32>
    %c4_i32 = arith.constant 4 : i32
    %c0_31 = arith.constant 0 : index
    %c0_32 = arith.constant 0 : index
    %197 = vector.load %arg7[%c0_31, %c0_32] : memref<2x8xf32, #tpu.memory_space<vmem>>, vector<2x8xf32>
    %198 = arith.addf %197, %196 : vector<2x8xf32>
    %c0_33 = arith.constant 0 : index
    %c0_34 = arith.constant 0 : index
    %199 = vector.load %arg7[%c0_33, %c0_34] : memref<2x8xf32, #tpu.memory_space<vmem>>, vector<2x8xf32>
    tpu.vector_store %arg7[%c0_33, %c0_34], %198 {strides = array<i32>} : memref<2x8xf32, #tpu.memory_space<vmem>>, vector<2x8xf32>,
    %c0_i32_35 = arith.constant 0 : i32
    %200 = arith.cmpi eq, %arg1, %c0_i32_35 : i32
    %201 = arith.extui %200 : i1 to i32
    %c0_i32_36 = arith.constant 0 : i32
    %202 = arith.cmpi ne, %201, %c0_i32_36 : i32
    scf.if %202 {
      %c0_37 = arith.constant 0 : index
      %c0_38 = arith.constant 0 : index
      %203 = vector.load %arg7[%c0_37, %c0_38] : memref<2x8xf32, #tpu.memory_space<vmem>>, vector<2x8xf32>
      %c0_39 = arith.constant 0 : index
      %c0_40 = arith.constant 0 : index
      %204 = vector.load %arg6[%c0_39, %c0_40] : memref<1x8xf32, #tpu.memory_space<vmem>>, vector<1x8xf32>
      %205 = vector.broadcast %204 : vector<1x8xf32> to vector<2x8xf32>
      %206 = arith.addf %203, %205 : vector<2x8xf32>
      %cst_41 = arith.constant 0.000000e+00 : f32
      %207 = vector.broadcast %cst_41 : f32 to vector<2x8xf32>
      %208 = arith.maximumf %206, %207 : vector<2x8xf32>
      %c0_42 = arith.constant 0 : index
      %c0_43 = arith.constant 0 : index
      %209 = vector.load %arg7[%c0_42, %c0_43] : memref<2x8xf32, #tpu.memory_space<vmem>>, vector<2x8xf32>
      tpu.vector_store %arg7[%c0_42, %c0_43], %208 {strides = array<i32>} : memref<2x8xf32, #tpu.memory_space<vmem>>, vector<2x8xf32>,
    } else {
    }
    return
  }
  func.func @transform_0(%arg0: i32, %arg1: i32) -> (i32, i32, i32) {
    %c0_i32 = arith.constant 0 : i32
    %c0_i32_0 = arith.constant 0 : i32
    return %arg0, %c0_i32, %arg1 : i32, i32, i32
  }
  func.func @transform_1(%arg0: i32, %arg1: i32) -> (i32, i32) {
    %c0_i32 = arith.constant 0 : i32
    %c0_i32_0 = arith.constant 0 : i32
    %c0_i32_1 = arith.constant 0 : i32
    return %c0_i32, %c0_i32_0 : i32, i32
  }
  func.func @transform_2(%arg0: i32, %arg1: i32) -> (i32, i32) {
    %c0_i32 = arith.constant 0 : i32
    %c0_i32_0 = arith.constant 0 : i32
    %c0_i32_1 = arith.constant 0 : i32
    return %c0_i32, %c0_i32_0 : i32, i32
  }
  func.func @transform_3(%arg0: i32, %arg1: i32) -> (i32, i32) {
    %c0_i32 = arith.constant 0 : i32
    %c0_i32_0 = arith.constant 0 : i32
    %c0_i32_1 = arith.constant 0 : i32
    return %c0_i32, %c0_i32_0 : i32, i32
  }
  func.func @transform_4(%arg0: i32, %arg1: i32) -> (i32, i32) {
    %c0_i32 = arith.constant 0 : i32
    %c0_i32_0 = arith.constant 0 : i32
    %c0_i32_1 = arith.constant 0 : i32
    return %c0_i32, %c0_i32_0 : i32, i32
  }
  func.func @transform_5(%arg0: i32, %arg1: i32) -> (i32, i32) {
    %c0_i32 = arith.constant 0 : i32
    %c0_i32_0 = arith.constant 0 : i32
    return %arg0, %c0_i32 : i32, i32
  }
}

</mosaic_0001>

<llo_original>
// kernel: tpu_custom_call.1
$region0: #{tpu_custom_call.1}
  #allocation0 [shape = 'u32[]', space=smem, size = 0x4, offset = 0x4, fixed_abs, tag = 'smem constant byte address 0x4 - core index']
  #allocation1 [shape = 'u32[144,128]{1,0:T(1,128)}', space=vmem, size = 0x12000, scoped, tag = 'internal scratch']
  %s0 = inlined_call_operand.vmem [shape: f32[2,4,256], index: 0, kind: input, shape index: {}]
  %s1 = inlined_call_operand.vmem [shape: f32[512,4], index: 1, kind: input, shape index: {}]
  %s2 = inlined_call_operand.vmem [shape: f32[512,1], index: 2, kind: input, shape index: {}]
  %s3 = inlined_call_operand.vmem [shape: f32[512,8], index: 3, kind: input, shape index: {}]
  %s4 = inlined_call_operand.vmem [shape: f32[1,8], index: 4, kind: input, shape index: {}]
  %s5 = inlined_call_operand.hbm [shape: f32[2,8], index: 5, kind: output, shape index: {}]
  %s6 = sld [smem:[#allocation0]]
  $region38: #{tpu_custom_call.1} parent=0
    _
  %s8 = ssub.s32 1, %s6
  %s9 = scalar_select 0, %s8, %s6
  $region1: #{tpu_custom_call.1} parent=0
    #allocation2 [shape = 'u8[1024]{0}', space=vmem, size = 0x400, scoped, tag = 'output window, operand 0, single buffered']
    #allocation3 [shape = 's32[1]{0}', space=sflag, size = 0x4, scoped, tag = 'scoped memory for tpu_custom_call.1']
    %10 = vsyncpa [#allocation3], 0
    // Predicated region
    $region2: #{tpu_custom_call.1} parent=1 // pred_check
      _
    $region3: #{tpu_custom_call.1} parent=1 // pred_check_branch
      %12 = sbr.rel (0) target = $region5
    $region4: #{tpu_custom_call.1} parent=1 // pred_region
      _
    $region5: #{tpu_custom_call.1} parent=1 // pred_fallthru
      _
    // Predicated region
    $region6: #{tpu_custom_call.1} parent=1 // pred_check
      _
    $region7: #{tpu_custom_call.1} parent=1 // pred_check_branch
      %14 = sbr.rel (0) target = $region9
    $region8: #{tpu_custom_call.1} parent=1 // pred_region
      _
    $region9: #{tpu_custom_call.1} parent=1 // pred_fallthru
      _
    // Predicated region
    $region10: #{tpu_custom_call.1} parent=1 // pred_check
      _
    $region11: #{tpu_custom_call.1} parent=1 // pred_check_branch
      %16 = sbr.rel (0) target = $region13
    $region12: #{tpu_custom_call.1} parent=1 // pred_region
      _
    $region13: #{tpu_custom_call.1} parent=1 // pred_fallthru
      _
    // Predicated region
    $region14: #{tpu_custom_call.1} parent=1 // pred_check
      _
    $region15: #{tpu_custom_call.1} parent=1 // pred_check_branch
      %18 = sbr.rel (0) target = $region17
    $region16: #{tpu_custom_call.1} parent=1 // pred_region
      _
    $region17: #{tpu_custom_call.1} parent=1 // pred_fallthru
      _
    // Predicated region
    $region18: #{tpu_custom_call.1} parent=1 // pred_check
      _
    $region19: #{tpu_custom_call.1} parent=1 // pred_check_branch
      %20 = sbr.rel (0) target = $region21
    $region20: #{tpu_custom_call.1} parent=1 // pred_region
      _
    $region21: #{tpu_custom_call.1} parent=1 // pred_fallthru
      _
    %p21 = scmp.eq.s32.totalorder 0, 0
    // Predicated region
    $region22: #{tpu_custom_call.1} parent=1 // pred_check
      %p22 = pneg %p21
    $region23: #{tpu_custom_call.1} parent=1 // pred_check_branch
      %24 = sbr.rel (%p22) target = $region25
    $region24: #{tpu_custom_call.1} parent=1 // pred_region
      %vm25 = vcmask 58368
      %26 = vst.msk [vmem:[#allocation2] sm:$0x3] %vm25, 0.0
    $region25: #{tpu_custom_call.1} parent=1 // pred_fallthru
      _
    %v27 = vld [vmem:[%s0] sm:$0xff]
    %v28 = vld [vmem:[%s0 + $0x8] sm:$0xff]
    %v29 = vld [vmem:[%s1] sm:$0xff]
    %v30 = vld [vmem:[%s1 + $0x8] sm:$0xff]
    %v31 = vld [vmem:[%s1 + $0x10] sm:$0xff]
    %v32 = vld [vmem:[%s1 + $0x18] sm:$0xff]
    %v33 = vld [vmem:[%s1 + $0x20] sm:$0xff]
    %v34 = vld [vmem:[%s1 + $0x28] sm:$0xff]
    %v35 = vld [vmem:[%s1 + $0x30] sm:$0xff]
    %v36 = vld [vmem:[%s1 + $0x38] sm:$0xff]
    %v37 = vld [vmem:[%s1 + $0x40] sm:$0xff]
    %v38 = vld [vmem:[%s1 + $0x48] sm:$0xff]
    %v39 = vld [vmem:[%s1 + $0x50] sm:$0xff]
    %v40 = vld [vmem:[%s1 + $0x58] sm:$0xff]
    %v41 = vld [vmem:[%s1 + $0x60] sm:$0xff]
    %v42 = vld [vmem:[%s1 + $0x68] sm:$0xff]
    %v43 = vld [vmem:[%s1 + $0x70] sm:$0xff]
    %v44 = vld [vmem:[%s1 + $0x78] sm:$0xff]
    %v45 = vld [vmem:[%s2] sm:$0xff]
    %v46 = vld [vmem:[%s2 + $0x8] sm:$0xff]
    %v47 = vld [vmem:[%s2 + $0x10] sm:$0xff]
    %v48 = vld [vmem:[%s2 + $0x18] sm:$0xff]
    %v49 = vld [vmem:[%s2 + $0x20] sm:$0xff]
    %v50 = vld [vmem:[%s2 + $0x28] sm:$0xff]
    %v51 = vld [vmem:[%s2 + $0x30] sm:$0xff]
    %v52 = vld [vmem:[%s2 + $0x38] sm:$0xff]
    %v53 = vld [vmem:[%s2 + $0x40] sm:$0xff]
    %v54 = vld [vmem:[%s2 + $0x48] sm:$0xff]
    %v55 = vld [vmem:[%s2 + $0x50] sm:$0xff]
    %v56 = vld [vmem:[%s2 + $0x58] sm:$0xff]
    %v57 = vld [vmem:[%s2 + $0x60] sm:$0xff]
    %v58 = vld [vmem:[%s2 + $0x68] sm:$0xff]
    %v59 = vld [vmem:[%s2 + $0x70] sm:$0xff]
    %v60 = vld [vmem:[%s2 + $0x78] sm:$0xff]
    %62 = vset.pattern.permute.xlu0 0
    %63 = vperm.xlu0 %62, %v29
    %v64 = vpop.permute.xlu0 %63
    %67 = vset.pattern.permute.xlu0 0
    %68 = vperm.xlu0 %67, %v30
    %v69 = vpop.permute.xlu0 %68
    %72 = vset.pattern.permute.xlu0 0
    %73 = vperm.xlu0 %72, %v31
    %v74 = vpop.permute.xlu0 %73
    %77 = vset.pattern.permute.xlu0 0
    %78 = vperm.xlu0 %77, %v32
    %v79 = vpop.permute.xlu0 %78
    %82 = vset.pattern.permute.xlu0 0
    %83 = vperm.xlu0 %82, %v33
    %v84 = vpop.permute.xlu0 %83
    %87 = vset.pattern.permute.xlu0 0
    %88 = vperm.xlu0 %87, %v34
    %v89 = vpop.permute.xlu0 %88
    %92 = vset.pattern.permute.xlu0 0
    %93 = vperm.xlu0 %92, %v35
    %v94 = vpop.permute.xlu0 %93
    %97 = vset.pattern.permute.xlu0 0
    %98 = vperm.xlu0 %97, %v36
    %v99 = vpop.permute.xlu0 %98
    %102 = vset.pattern.permute.xlu0 0
    %103 = vperm.xlu0 %102, %v37
    %v104 = vpop.permute.xlu0 %103
    %107 = vset.pattern.permute.xlu0 0
    %108 = vperm.xlu0 %107, %v38
    %v109 = vpop.permute.xlu0 %108
    %112 = vset.pattern.permute.xlu0 0
    %113 = vperm.xlu0 %112, %v39
    %v114 = vpop.permute.xlu0 %113
    %117 = vset.pattern.permute.xlu0 0
    %118 = vperm.xlu0 %117, %v40
    %v119 = vpop.permute.xlu0 %118
    %122 = vset.pattern.permute.xlu0 0
    %123 = vperm.xlu0 %122, %v41
    %v124 = vpop.permute.xlu0 %123
    %127 = vset.pattern.permute.xlu0 0
    %128 = vperm.xlu0 %127, %v42
    %v129 = vpop.permute.xlu0 %128
    %132 = vset.pattern.permute.xlu0 0
    %133 = vperm.xlu0 %132, %v43
    %v134 = vpop.permute.xlu0 %133
    %137 = vset.pattern.permute.xlu0 0
    %138 = vperm.xlu0 %137, %v44
    %v139 = vpop.permute.xlu0 %138
    %v143 = vlaneseq
    %v144 = vshrl.u32 %v143, 7
    %v145 = vsub.s32 0, %v144
    %v146 = vrot.slane %v27, %v145
    %v147 = vlaneseq
    %v148 = vshrl.u32 %v147, 7
    %v149 = vsub.s32 4, %v148
    %v150 = vrot.slane %v27, %v149
    %v151 = vlaneseq
    %v152 = vshrl.u32 %v151, 7
    %v153 = vsub.s32 0, %v152
    %v154 = vrot.slane %v28, %v153
    %v155 = vlaneseq
    %v156 = vshrl.u32 %v155, 7
    %v157 = vsub.s32 4, %v156
    %v158 = vrot.slane %v28, %v157
    %v163 = vlaneseq
    %v164 = vshrl.u32 %v163, 7
    %v165 = vsub.s32 0, %v164
    %v166 = vrot.slane %v146, %v165
    %v167 = vlaneseq
    %v168 = vshrl.u32 %v167, 7
    %v169 = vsub.s32 0, %v168
    %v170 = vrot.slane %v150, %v169
    %v171 = vlaneseq
    %v172 = vshrl.u32 %v171, 7
    %v173 = vsub.s32 0, %v172
    %v174 = vrot.slane %v154, %v173
    %v175 = vlaneseq
    %v176 = vshrl.u32 %v175, 7
    %v177 = vsub.s32 0, %v176
    %v178 = vrot.slane %v158, %v177
    %v179 = vmul.f32 %v64, %v166
    %v180 = vmul.f32 %v64, %v170
    %v181 = vmul.f32 %v69, %v166
    %v182 = vmul.f32 %v69, %v170
    %v183 = vmul.f32 %v74, %v166
    %v184 = vmul.f32 %v74, %v170
    %v185 = vmul.f32 %v79, %v166
    %v186 = vmul.f32 %v79, %v170
    %v187 = vmul.f32 %v84, %v166
    %v188 = vmul.f32 %v84, %v170
    %v189 = vmul.f32 %v89, %v166
    %v190 = vmul.f32 %v89, %v170
    %v191 = vmul.f32 %v94, %v166
    %v192 = vmul.f32 %v94, %v170
    %v193 = vmul.f32 %v99, %v166
    %v194 = vmul.f32 %v99, %v170
    %v195 = vmul.f32 %v104, %v166
    %v196 = vmul.f32 %v104, %v170
    %v197 = vmul.f32 %v109, %v166
    %v198 = vmul.f32 %v109, %v170
    %v199 = vmul.f32 %v114, %v166
    %v200 = vmul.f32 %v114, %v170
    %v201 = vmul.f32 %v119, %v166
    %v202 = vmul.f32 %v119, %v170
    %v203 = vmul.f32 %v124, %v166
    %v204 = vmul.f32 %v124, %v170
    %v205 = vmul.f32 %v129, %v166
    %v206 = vmul.f32 %v129, %v170
    %v207 = vmul.f32 %v134, %v166
    %v208 = vmul.f32 %v134, %v170
    %v209 = vmul.f32 %v139, %v166
    %v210 = vmul.f32 %v139, %v170
    %v211 = vmul.f32 %v64, %v174
    %v212 = vmul.f32 %v64, %v178
    %v213 = vmul.f32 %v69, %v174
    %v214 = vmul.f32 %v69, %v178
    %v215 = vmul.f32 %v74, %v174
    %v216 = vmul.f32 %v74, %v178
    %v217 = vmul.f32 %v79, %v174
    %v218 = vmul.f32 %v79, %v178
    %v219 = vmul.f32 %v84, %v174
    %v220 = vmul.f32 %v84, %v178
    %v221 = vmul.f32 %v89, %v174
    %v222 = vmul.f32 %v89, %v178
    %v223 = vmul.f32 %v94, %v174
    %v224 = vmul.f32 %v94, %v178
    %v225 = vmul.f32 %v99, %v174
    %v226 = vmul.f32 %v99, %v178
    %v227 = vmul.f32 %v104, %v174
    %v228 = vmul.f32 %v104, %v178
    %v229 = vmul.f32 %v109, %v174
    %v230 = vmul.f32 %v109, %v178
    %v231 = vmul.f32 %v114, %v174
    %v232 = vmul.f32 %v114, %v178
    %v233 = vmul.f32 %v119, %v174
    %v234 = vmul.f32 %v119, %v178
    %v235 = vmul.f32 %v124, %v174
    %v236 = vmul.f32 %v124, %v178
    %v237 = vmul.f32 %v129, %v174
    %v238 = vmul.f32 %v129, %v178
    %v239 = vmul.f32 %v134, %v174
    %v240 = vmul.f32 %v134, %v178
    %v241 = vmul.f32 %v139, %v174
    %v242 = vmul.f32 %v139, %v178
    %243 = vset.pattern.permute.xlu0 1
    %244 = vperm.xlu0 %243, %v29
    %v245 = vpop.permute.xlu0 %244
    %247 = vset.pattern.permute.xlu0 1
    %248 = vperm.xlu0 %247, %v30
    %v249 = vpop.permute.xlu0 %248
    %251 = vset.pattern.permute.xlu0 1
    %252 = vperm.xlu0 %251, %v31
    %v253 = vpop.permute.xlu0 %252
    %255 = vset.pattern.permute.xlu0 1
    %256 = vperm.xlu0 %255, %v32
    %v257 = vpop.permute.xlu0 %256
    %259 = vset.pattern.permute.xlu0 1
    %260 = vperm.xlu0 %259, %v33
    %v261 = vpop.permute.xlu0 %260
    %263 = vset.pattern.permute.xlu0 1
    %264 = vperm.xlu0 %263, %v34
    %v265 = vpop.permute.xlu0 %264
    %267 = vset.pattern.permute.xlu0 1
    %268 = vperm.xlu0 %267, %v35
    %v269 = vpop.permute.xlu0 %268
    %271 = vset.pattern.permute.xlu0 1
    %272 = vperm.xlu0 %271, %v36
    %v273 = vpop.permute.xlu0 %272
    %275 = vset.pattern.permute.xlu0 1
    %276 = vperm.xlu0 %275, %v37
    %v277 = vpop.permute.xlu0 %276
    %279 = vset.pattern.permute.xlu0 1
    %280 = vperm.xlu0 %279, %v38
    %v281 = vpop.permute.xlu0 %280
    %283 = vset.pattern.permute.xlu0 1
    %284 = vperm.xlu0 %283, %v39
    %v285 = vpop.permute.xlu0 %284
    %287 = vset.pattern.permute.xlu0 1
    %288 = vperm.xlu0 %287, %v40
    %v289 = vpop.permute.xlu0 %288
    %291 = vset.pattern.permute.xlu0 1
    %292 = vperm.xlu0 %291, %v41
    %v293 = vpop.permute.xlu0 %292
    %295 = vset.pattern.permute.xlu0 1
    %296 = vperm.xlu0 %295, %v42
    %v297 = vpop.permute.xlu0 %296
    %299 = vset.pattern.permute.xlu0 1
    %300 = vperm.xlu0 %299, %v43
    %v301 = vpop.permute.xlu0 %300
    %303 = vset.pattern.permute.xlu0 1
    %304 = vperm.xlu0 %303, %v44
    %v305 = vpop.permute.xlu0 %304
    %v307 = vlaneseq
    %v308 = vshrl.u32 %v307, 7
    %v309 = vsub.s32 1, %v308
    %v310 = vrot.slane %v27, %v309
    %v311 = vlaneseq
    %v312 = vshrl.u32 %v311, 7
    %v313 = vsub.s32 5, %v312
    %v314 = vrot.slane %v27, %v313
    %v315 = vlaneseq
    %v316 = vshrl.u32 %v315, 7
    %v317 = vsub.s32 1, %v316
    %v318 = vrot.slane %v28, %v317
    %v319 = vlaneseq
    %v320 = vshrl.u32 %v319, 7
    %v321 = vsub.s32 5, %v320
    %v322 = vrot.slane %v28, %v321
    %v327 = vlaneseq
    %v328 = vshrl.u32 %v327, 7
    %v329 = vsub.s32 1, %v328
    %v330 = vrot.slane %v310, %v329
    %v331 = vlaneseq
    %v332 = vshrl.u32 %v331, 7
    %v333 = vsub.s32 1, %v332
    %v334 = vrot.slane %v314, %v333
    %v335 = vlaneseq
    %v336 = vshrl.u32 %v335, 7
    %v337 = vsub.s32 1, %v336
    %v338 = vrot.slane %v318, %v337
    %v339 = vlaneseq
    %v340 = vshrl.u32 %v339, 7
    %v341 = vsub.s32 1, %v340
    %v342 = vrot.slane %v322, %v341
    %v343 = vmul.f32 %v245, %v330
    %v344 = vmul.f32 %v245, %v334
    %v345 = vmul.f32 %v249, %v330
    %v346 = vmul.f32 %v249, %v334
    %v347 = vmul.f32 %v253, %v330
    %v348 = vmul.f32 %v253, %v334
    %v349 = vmul.f32 %v257, %v330
    %v350 = vmul.f32 %v257, %v334
    %v351 = vmul.f32 %v261, %v330
    %v352 = vmul.f32 %v261, %v334
    %v353 = vmul.f32 %v265, %v330
    %v354 = vmul.f32 %v265, %v334
    %v355 = vmul.f32 %v269, %v330
    %v356 = vmul.f32 %v269, %v334
    %v357 = vmul.f32 %v273, %v330
    %v358 = vmul.f32 %v273, %v334
    %v359 = vmul.f32 %v277, %v330
    %v360 = vmul.f32 %v277, %v334
    %v361 = vmul.f32 %v281, %v330
    %v362 = vmul.f32 %v281, %v334
    %v363 = vmul.f32 %v285, %v330
    %v364 = vmul.f32 %v285, %v334
    %v365 = vmul.f32 %v289, %v330
    %v366 = vmul.f32 %v289, %v334
    %v367 = vmul.f32 %v293, %v330
    %v368 = vmul.f32 %v293, %v334
    %v369 = vmul.f32 %v297, %v330
    %v370 = vmul.f32 %v297, %v334
    %v371 = vmul.f32 %v301, %v330
    %v372 = vmul.f32 %v301, %v334
    %v373 = vmul.f32 %v305, %v330
    %v374 = vmul.f32 %v305, %v334
    %v375 = vmul.f32 %v245, %v338
    %v376 = vmul.f32 %v245, %v342
    %v377 = vmul.f32 %v249, %v338
    %v378 = vmul.f32 %v249, %v342
    %v379 = vmul.f32 %v253, %v338
    %v380 = vmul.f32 %v253, %v342
    %v381 = vmul.f32 %v257, %v338
    %v382 = vmul.f32 %v257, %v342
    %v383 = vmul.f32 %v261, %v338
    %v384 = vmul.f32 %v261, %v342
    %v385 = vmul.f32 %v265, %v338
    %v386 = vmul.f32 %v265, %v342
    %v387 = vmul.f32 %v269, %v338
    %v388 = vmul.f32 %v269, %v342
    %v389 = vmul.f32 %v273, %v338
    %v390 = vmul.f32 %v273, %v342
    %v391 = vmul.f32 %v277, %v338
    %v392 = vmul.f32 %v277, %v342
    %v393 = vmul.f32 %v281, %v338
    %v394 = vmul.f32 %v281, %v342
    %v395 = vmul.f32 %v285, %v338
    %v396 = vmul.f32 %v285, %v342
    %v397 = vmul.f32 %v289, %v338
    %v398 = vmul.f32 %v289, %v342
    %v399 = vmul.f32 %v293, %v338
    %v400 = vmul.f32 %v293, %v342
    %v401 = vmul.f32 %v297, %v338
    %v402 = vmul.f32 %v297, %v342
    %v403 = vmul.f32 %v301, %v338
    %v404 = vmul.f32 %v301, %v342
    %v405 = vmul.f32 %v305, %v338
    %v406 = vmul.f32 %v305, %v342
    %v407 = vadd.f32 %v179, %v343
    %v408 = vadd.f32 %v180, %v344
    %v409 = vadd.f32 %v181, %v345
    %v410 = vadd.f32 %v182, %v346
    %v411 = vadd.f32 %v183, %v347
    %v412 = vadd.f32 %v184, %v348
    %v413 = vadd.f32 %v185, %v349
    %v414 = vadd.f32 %v186, %v350
    %v415 = vadd.f32 %v187, %v351
    %v416 = vadd.f32 %v188, %v352
    %v417 = vadd.f32 %v189, %v353
    %v418 = vadd.f32 %v190, %v354
    %v419 = vadd.f32 %v191, %v355
    %v420 = vadd.f32 %v192, %v356
    %v421 = vadd.f32 %v193, %v357
    %v422 = vadd.f32 %v194, %v358
    %v423 = vadd.f32 %v195, %v359
    %v424 = vadd.f32 %v196, %v360
    %v425 = vadd.f32 %v197, %v361
    %v426 = vadd.f32 %v198, %v362
    %v427 = vadd.f32 %v199, %v363
    %v428 = vadd.f32 %v200, %v364
    %v429 = vadd.f32 %v201, %v365
    %v430 = vadd.f32 %v202, %v366
    %v431 = vadd.f32 %v203, %v367
    %v432 = vadd.f32 %v204, %v368
    %v433 = vadd.f32 %v205, %v369
    %v434 = vadd.f32 %v206, %v370
    %v435 = vadd.f32 %v207, %v371
    %v436 = vadd.f32 %v208, %v372
    %v437 = vadd.f32 %v209, %v373
    %v438 = vadd.f32 %v210, %v374
    %v439 = vadd.f32 %v211, %v375
    %v440 = vadd.f32 %v212, %v376
    %v441 = vadd.f32 %v213, %v377
    %v442 = vadd.f32 %v214, %v378
    %v443 = vadd.f32 %v215, %v379
    %v444 = vadd.f32 %v216, %v380
    %v445 = vadd.f32 %v217, %v381
    %v446 = vadd.f32 %v218, %v382
    %v447 = vadd.f32 %v219, %v383
    %v448 = vadd.f32 %v220, %v384
    %v449 = vadd.f32 %v221, %v385
    %v450 = vadd.f32 %v222, %v386
    %v451 = vadd.f32 %v223, %v387
    %v452 = vadd.f32 %v224, %v388
    %v453 = vadd.f32 %v225, %v389
    %v454 = vadd.f32 %v226, %v390
    %v455 = vadd.f32 %v227, %v391
    %v456 = vadd.f32 %v228, %v392
    %v457 = vadd.f32 %v229, %v393
    %v458 = vadd.f32 %v230, %v394
    %v459 = vadd.f32 %v231, %v395
    %v460 = vadd.f32 %v232, %v396
    %v461 = vadd.f32 %v233, %v397
    %v462 = vadd.f32 %v234, %v398
    %v463 = vadd.f32 %v235, %v399
    %v464 = vadd.f32 %v236, %v400
    %v465 = vadd.f32 %v237, %v401
    %v466 = vadd.f32 %v238, %v402
    %v467 = vadd.f32 %v239, %v403
    %v468 = vadd.f32 %v240, %v404
    %v469 = vadd.f32 %v241, %v405
    %v470 = vadd.f32 %v242, %v406
    %471 = vset.pattern.permute.xlu0 2
    %472 = vperm.xlu0 %471, %v29
    %v473 = vpop.permute.xlu0 %472
    %475 = vset.pattern.permute.xlu0 2
    %476 = vperm.xlu0 %475, %v30
    %v477 = vpop.permute.xlu0 %476
    %479 = vset.pattern.permute.xlu0 2
    %480 = vperm.xlu0 %479, %v31
    %v481 = vpop.permute.xlu0 %480
    %483 = vset.pattern.permute.xlu0 2
    %484 = vperm.xlu0 %483, %v32
    %v485 = vpop.permute.xlu0 %484
    %487 = vset.pattern.permute.xlu0 2
    %488 = vperm.xlu0 %487, %v33
    %v489 = vpop.permute.xlu0 %488
    %491 = vset.pattern.permute.xlu0 2
    %492 = vperm.xlu0 %491, %v34
    %v493 = vpop.permute.xlu0 %492
    %495 = vset.pattern.permute.xlu0 2
    %496 = vperm.xlu0 %495, %v35
    %v497 = vpop.permute.xlu0 %496
    %499 = vset.pattern.permute.xlu0 2
    %500 = vperm.xlu0 %499, %v36
    %v501 = vpop.permute.xlu0 %500
    %503 = vset.pattern.permute.xlu0 2
    %504 = vperm.xlu0 %503, %v37
    %v505 = vpop.permute.xlu0 %504
    %507 = vset.pattern.permute.xlu0 2
    %508 = vperm.xlu0 %507, %v38
    %v509 = vpop.permute.xlu0 %508
    %511 = vset.pattern.permute.xlu0 2
    %512 = vperm.xlu0 %511, %v39
    %v513 = vpop.permute.xlu0 %512
    %515 = vset.pattern.permute.xlu0 2
    %516 = vperm.xlu0 %515, %v40
    %v517 = vpop.permute.xlu0 %516
    %519 = vset.pattern.permute.xlu0 2
    %520 = vperm.xlu0 %519, %v41
    %v521 = vpop.permute.xlu0 %520
    %523 = vset.pattern.permute.xlu0 2
    %524 = vperm.xlu0 %523, %v42
    %v525 = vpop.permute.xlu0 %524
    %527 = vset.pattern.permute.xlu0 2
    %528 = vperm.xlu0 %527, %v43
    %v529 = vpop.permute.xlu0 %528
    %531 = vset.pattern.permute.xlu0 2
    %532 = vperm.xlu0 %531, %v44
    %v533 = vpop.permute.xlu0 %532
    %v535 = vlaneseq
    %v536 = vshrl.u32 %v535, 7
    %v537 = vsub.s32 2, %v536
    %v538 = vrot.slane %v27, %v537
    %v539 = vlaneseq
    %v540 = vshrl.u32 %v539, 7
    %v541 = vsub.s32 6, %v540
    %v542 = vrot.slane %v27, %v541
    %v543 = vlaneseq
    %v544 = vshrl.u32 %v543, 7
    %v545 = vsub.s32 2, %v544
    %v546 = vrot.slane %v28, %v545
    %v547 = vlaneseq
    %v548 = vshrl.u32 %v547, 7
    %v549 = vsub.s32 6, %v548
    %v550 = vrot.slane %v28, %v549
    %v555 = vlaneseq
    %v556 = vshrl.u32 %v555, 7
    %v557 = vsub.s32 2, %v556
    %v558 = vrot.slane %v538, %v557
    %v559 = vlaneseq
    %v560 = vshrl.u32 %v559, 7
    %v561 = vsub.s32 2, %v560
    %v562 = vrot.slane %v542, %v561
    %v563 = vlaneseq
    %v564 = vshrl.u32 %v563, 7
    %v565 = vsub.s32 2, %v564
    %v566 = vrot.slane %v546, %v565
    %v567 = vlaneseq
    %v568 = vshrl.u32 %v567, 7
    %v569 = vsub.s32 2, %v568
    %v570 = vrot.slane %v550, %v569
    %v571 = vmul.f32 %v473, %v558
    %v572 = vmul.f32 %v473, %v562
    %v573 = vmul.f32 %v477, %v558
    %v574 = vmul.f32 %v477, %v562
    %v575 = vmul.f32 %v481, %v558
    %v576 = vmul.f32 %v481, %v562
    %v577 = vmul.f32 %v485, %v558
    %v578 = vmul.f32 %v485, %v562
    %v579 = vmul.f32 %v489, %v558
    %v580 = vmul.f32 %v489, %v562
    %v581 = vmul.f32 %v493, %v558
    %v582 = vmul.f32 %v493, %v562
    %v583 = vmul.f32 %v497, %v558
    %v584 = vmul.f32 %v497, %v562
    %v585 = vmul.f32 %v501, %v558
    %v586 = vmul.f32 %v501, %v562
    %v587 = vmul.f32 %v505, %v558
    %v588 = vmul.f32 %v505, %v562
    %v589 = vmul.f32 %v509, %v558
    %v590 = vmul.f32 %v509, %v562
    %v591 = vmul.f32 %v513, %v558
    %v592 = vmul.f32 %v513, %v562
    %v593 = vmul.f32 %v517, %v558
    %v594 = vmul.f32 %v517, %v562
    %v595 = vmul.f32 %v521, %v558
    %v596 = vmul.f32 %v521, %v562
    %v597 = vmul.f32 %v525, %v558
    %v598 = vmul.f32 %v525, %v562
    %v599 = vmul.f32 %v529, %v558
    %v600 = vmul.f32 %v529, %v562
    %v601 = vmul.f32 %v533, %v558
    %v602 = vmul.f32 %v533, %v562
    %v603 = vmul.f32 %v473, %v566
    %v604 = vmul.f32 %v473, %v570
    %v605 = vmul.f32 %v477, %v566
    %v606 = vmul.f32 %v477, %v570
    %v607 = vmul.f32 %v481, %v566
    %v608 = vmul.f32 %v481, %v570
    %v609 = vmul.f32 %v485, %v566
    %v610 = vmul.f32 %v485, %v570
    %v611 = vmul.f32 %v489, %v566
    %v612 = vmul.f32 %v489, %v570
    %v613 = vmul.f32 %v493, %v566
    %v614 = vmul.f32 %v493, %v570
    %v615 = vmul.f32 %v497, %v566
    %v616 = vmul.f32 %v497, %v570
    %v617 = vmul.f32 %v501, %v566
    %v618 = vmul.f32 %v501, %v570
    %v619 = vmul.f32 %v505, %v566
    %v620 = vmul.f32 %v505, %v570
    %v621 = vmul.f32 %v509, %v566
    %v622 = vmul.f32 %v509, %v570
    %v623 = vmul.f32 %v513, %v566
    %v624 = vmul.f32 %v513, %v570
    %v625 = vmul.f32 %v517, %v566
    %v626 = vmul.f32 %v517, %v570
    %v627 = vmul.f32 %v521, %v566
    %v628 = vmul.f32 %v521, %v570
    %v629 = vmul.f32 %v525, %v566
    %v630 = vmul.f32 %v525, %v570
    %v631 = vmul.f32 %v529, %v566
    %v632 = vmul.f32 %v529, %v570
    %v633 = vmul.f32 %v533, %v566
    %v634 = vmul.f32 %v533, %v570
    %v635 = vadd.f32 %v407, %v571
    %v636 = vadd.f32 %v408, %v572
    %v637 = vadd.f32 %v409, %v573
    %v638 = vadd.f32 %v410, %v574
    %v639 = vadd.f32 %v411, %v575
    %v640 = vadd.f32 %v412, %v576
    %v641 = vadd.f32 %v413, %v577
    %v642 = vadd.f32 %v414, %v578
    %v643 = vadd.f32 %v415, %v579
    %v644 = vadd.f32 %v416, %v580
    %v645 = vadd.f32 %v417, %v581
    %v646 = vadd.f32 %v418, %v582
    %v647 = vadd.f32 %v419, %v583
    %v648 = vadd.f32 %v420, %v584
    %v649 = vadd.f32 %v421, %v585
    %v650 = vadd.f32 %v422, %v586
    %v651 = vadd.f32 %v423, %v587
    %v652 = vadd.f32 %v424, %v588
    %v653 = vadd.f32 %v425, %v589
    %v654 = vadd.f32 %v426, %v590
    %v655 = vadd.f32 %v427, %v591
    %v656 = vadd.f32 %v428, %v592
    %v657 = vadd.f32 %v429, %v593
    %v658 = vadd.f32 %v430, %v594
    %v659 = vadd.f32 %v431, %v595
    %v660 = vadd.f32 %v432, %v596
    %v661 = vadd.f32 %v433, %v597
    %v662 = vadd.f32 %v434, %v598
    %v663 = vadd.f32 %v435, %v599
    %v664 = vadd.f32 %v436, %v600
    %v665 = vadd.f32 %v437, %v601
    %v666 = vadd.f32 %v438, %v602
    %v667 = vadd.f32 %v439, %v603
    %v668 = vadd.f32 %v440, %v604
    %v669 = vadd.f32 %v441, %v605
    %v670 = vadd.f32 %v442, %v606
    %v671 = vadd.f32 %v443, %v607
    %v672 = vadd.f32 %v444, %v608
    %v673 = vadd.f32 %v445, %v609
    %v674 = vadd.f32 %v446, %v610
    %v675 = vadd.f32 %v447, %v611
    %v676 = vadd.f32 %v448, %v612
    %v677 = vadd.f32 %v449, %v613
    %v678 = vadd.f32 %v450, %v614
    %v679 = vadd.f32 %v451, %v615
    %v680 = vadd.f32 %v452, %v616
    %v681 = vadd.f32 %v453, %v617
    %v682 = vadd.f32 %v454, %v618
    %v683 = vadd.f32 %v455, %v619
    %v684 = vadd.f32 %v456, %v620
    %v685 = vadd.f32 %v457, %v621
    %v686 = vadd.f32 %v458, %v622
    %v687 = vadd.f32 %v459, %v623
    %v688 = vadd.f32 %v460, %v624
    %v689 = vadd.f32 %v461, %v625
    %v690 = vadd.f32 %v462, %v626
    %v691 = vadd.f32 %v463, %v627
    %v692 = vadd.f32 %v464, %v628
    %v693 = vadd.f32 %v465, %v629
    %v694 = vadd.f32 %v466, %v630
    %v695 = vadd.f32 %v467, %v631
    %v696 = vadd.f32 %v468, %v632
    %v697 = vadd.f32 %v469, %v633
    %v698 = vadd.f32 %v470, %v634
    %699 = vset.pattern.permute.xlu0 3
    %700 = vperm.xlu0 %699, %v29
    %v701 = vpop.permute.xlu0 %700
    %703 = vset.pattern.permute.xlu0 3
    %704 = vperm.xlu0 %703, %v30
    %v705 = vpop.permute.xlu0 %704
    %707 = vset.pattern.permute.xlu0 3
    %708 = vperm.xlu0 %707, %v31
    %v709 = vpop.permute.xlu0 %708
    %711 = vset.pattern.permute.xlu0 3
    %712 = vperm.xlu0 %711, %v32
    %v713 = vpop.permute.xlu0 %712
    %715 = vset.pattern.permute.xlu0 3
    %716 = vperm.xlu0 %715, %v33
    %v717 = vpop.permute.xlu0 %716
    %719 = vset.pattern.permute.xlu0 3
    %720 = vperm.xlu0 %719, %v34
    %v721 = vpop.permute.xlu0 %720
    %723 = vset.pattern.permute.xlu0 3
    %724 = vperm.xlu0 %723, %v35
    %v725 = vpop.permute.xlu0 %724
    %727 = vset.pattern.permute.xlu0 3
    %728 = vperm.xlu0 %727, %v36
    %v729 = vpop.permute.xlu0 %728
    %731 = vset.pattern.permute.xlu0 3
    %732 = vperm.xlu0 %731, %v37
    %v733 = vpop.permute.xlu0 %732
    %735 = vset.pattern.permute.xlu0 3
    %736 = vperm.xlu0 %735, %v38
    %v737 = vpop.permute.xlu0 %736
    %739 = vset.pattern.permute.xlu0 3
    %740 = vperm.xlu0 %739, %v39
    %v741 = vpop.permute.xlu0 %740
    %743 = vset.pattern.permute.xlu0 3
    %744 = vperm.xlu0 %743, %v40
    %v745 = vpop.permute.xlu0 %744
    %747 = vset.pattern.permute.xlu0 3
    %748 = vperm.xlu0 %747, %v41
    %v749 = vpop.permute.xlu0 %748
    %751 = vset.pattern.permute.xlu0 3
    %752 = vperm.xlu0 %751, %v42
    %v753 = vpop.permute.xlu0 %752
    %755 = vset.pattern.permute.xlu0 3
    %756 = vperm.xlu0 %755, %v43
    %v757 = vpop.permute.xlu0 %756
    %759 = vset.pattern.permute.xlu0 3
    %760 = vperm.xlu0 %759, %v44
    %v761 = vpop.permute.xlu0 %760
    %v763 = vlaneseq
    %v764 = vshrl.u32 %v763, 7
    %v765 = vsub.s32 3, %v764
    %v766 = vrot.slane %v27, %v765
    %v767 = vlaneseq
    %v768 = vshrl.u32 %v767, 7
    %v769 = vsub.s32 7, %v768
    %v770 = vrot.slane %v27, %v769
    %v771 = vlaneseq
    %v772 = vshrl.u32 %v771, 7
    %v773 = vsub.s32 3, %v772
    %v774 = vrot.slane %v28, %v773
    %v775 = vlaneseq
    %v776 = vshrl.u32 %v775, 7
    %v777 = vsub.s32 7, %v776
    %v778 = vrot.slane %v28, %v777
    %v783 = vlaneseq
    %v784 = vshrl.u32 %v783, 7
    %v785 = vsub.s32 3, %v784
    %v786 = vrot.slane %v766, %v785
    %v787 = vlaneseq
    %v788 = vshrl.u32 %v787, 7
    %v789 = vsub.s32 3, %v788
    %v790 = vrot.slane %v770, %v789
    %v791 = vlaneseq
    %v792 = vshrl.u32 %v791, 7
    %v793 = vsub.s32 3, %v792
    %v794 = vrot.slane %v774, %v793
    %v795 = vlaneseq
    %v796 = vshrl.u32 %v795, 7
    %v797 = vsub.s32 3, %v796
    %v798 = vrot.slane %v778, %v797
    %v799 = vmul.f32 %v701, %v786
    %v800 = vmul.f32 %v701, %v790
    %v801 = vmul.f32 %v705, %v786
    %v802 = vmul.f32 %v705, %v790
    %v803 = vmul.f32 %v709, %v786
    %v804 = vmul.f32 %v709, %v790
    %v805 = vmul.f32 %v713, %v786
    %v806 = vmul.f32 %v713, %v790
    %v807 = vmul.f32 %v717, %v786
    %v808 = vmul.f32 %v717, %v790
    %v809 = vmul.f32 %v721, %v786
    %v810 = vmul.f32 %v721, %v790
    %v811 = vmul.f32 %v725, %v786
    %v812 = vmul.f32 %v725, %v790
    %v813 = vmul.f32 %v729, %v786
    %v814 = vmul.f32 %v729, %v790
    %v815 = vmul.f32 %v733, %v786
    %v816 = vmul.f32 %v733, %v790
    %v817 = vmul.f32 %v737, %v786
    %v818 = vmul.f32 %v737, %v790
    %v819 = vmul.f32 %v741, %v786
    %v820 = vmul.f32 %v741, %v790
    %v821 = vmul.f32 %v745, %v786
    %v822 = vmul.f32 %v745, %v790
    %v823 = vmul.f32 %v749, %v786
    %v824 = vmul.f32 %v749, %v790
    %v825 = vmul.f32 %v753, %v786
    %v826 = vmul.f32 %v753, %v790
    %v827 = vmul.f32 %v757, %v786
    %v828 = vmul.f32 %v757, %v790
    %v829 = vmul.f32 %v761, %v786
    %v830 = vmul.f32 %v761, %v790
    %v831 = vmul.f32 %v701, %v794
    %v832 = vmul.f32 %v701, %v798
    %v833 = vmul.f32 %v705, %v794
    %v834 = vmul.f32 %v705, %v798
    %v835 = vmul.f32 %v709, %v794
    %v836 = vmul.f32 %v709, %v798
    %v837 = vmul.f32 %v713, %v794
    %v838 = vmul.f32 %v713, %v798
    %v839 = vmul.f32 %v717, %v794
    %v840 = vmul.f32 %v717, %v798
    %v841 = vmul.f32 %v721, %v794
    %v842 = vmul.f32 %v721, %v798
    %v843 = vmul.f32 %v725, %v794
    %v844 = vmul.f32 %v725, %v798
    %v845 = vmul.f32 %v729, %v794
    %v846 = vmul.f32 %v729, %v798
    %v847 = vmul.f32 %v733, %v794
    %v848 = vmul.f32 %v733, %v798
    %v849 = vmul.f32 %v737, %v794
    %v850 = vmul.f32 %v737, %v798
    %v851 = vmul.f32 %v741, %v794
    %v852 = vmul.f32 %v741, %v798
    %v853 = vmul.f32 %v745, %v794
    %v854 = vmul.f32 %v745, %v798
    %v855 = vmul.f32 %v749, %v794
    %v856 = vmul.f32 %v749, %v798
    %v857 = vmul.f32 %v753, %v794
    %v858 = vmul.f32 %v753, %v798
    %v859 = vmul.f32 %v757, %v794
    %v860 = vmul.f32 %v757, %v798
    %v861 = vmul.f32 %v761, %v794
    %v862 = vmul.f32 %v761, %v798
    %v863 = vadd.f32 %v635, %v799
    %v864 = vadd.f32 %v636, %v800
    %v865 = vadd.f32 %v637, %v801
    %v866 = vadd.f32 %v638, %v802
    %v867 = vadd.f32 %v639, %v803
    %v868 = vadd.f32 %v640, %v804
    %v869 = vadd.f32 %v641, %v805
    %v870 = vadd.f32 %v642, %v806
    %v871 = vadd.f32 %v643, %v807
    %v872 = vadd.f32 %v644, %v808
    %v873 = vadd.f32 %v645, %v809
    %v874 = vadd.f32 %v646, %v810
    %v875 = vadd.f32 %v647, %v811
    %v876 = vadd.f32 %v648, %v812
    %v877 = vadd.f32 %v649, %v813
    %v878 = vadd.f32 %v650, %v814
    %v879 = vadd.f32 %v651, %v815
    %v880 = vadd.f32 %v652, %v816
    %v881 = vadd.f32 %v653, %v817
    %v882 = vadd.f32 %v654, %v818
    %v883 = vadd.f32 %v655, %v819
    %v884 = vadd.f32 %v656, %v820
    %v885 = vadd.f32 %v657, %v821
    %v886 = vadd.f32 %v658, %v822
    %v887 = vadd.f32 %v659, %v823
    %v888 = vadd.f32 %v660, %v824
    %v889 = vadd.f32 %v661, %v825
    %v890 = vadd.f32 %v662, %v826
    %v891 = vadd.f32 %v663, %v827
    %v892 = vadd.f32 %v664, %v828
    %v893 = vadd.f32 %v665, %v829
    %v894 = vadd.f32 %v666, %v830
    %v895 = vadd.f32 %v667, %v831
    %v896 = vadd.f32 %v668, %v832
    %v897 = vadd.f32 %v669, %v833
    %v898 = vadd.f32 %v670, %v834
    %v899 = vadd.f32 %v671, %v835
    %v900 = vadd.f32 %v672, %v836
    %v901 = vadd.f32 %v673, %v837
    %v902 = vadd.f32 %v674, %v838
    %v903 = vadd.f32 %v675, %v839
    %v904 = vadd.f32 %v676, %v840
    %v905 = vadd.f32 %v677, %v841
    %v906 = vadd.f32 %v678, %v842
    %v907 = vadd.f32 %v679, %v843
    %v908 = vadd.f32 %v680, %v844
    %v909 = vadd.f32 %v681, %v845
    %v910 = vadd.f32 %v682, %v846
    %v911 = vadd.f32 %v683, %v847
    %v912 = vadd.f32 %v684, %v848
    %v913 = vadd.f32 %v685, %v849
    %v914 = vadd.f32 %v686, %v850
    %v915 = vadd.f32 %v687, %v851
    %v916 = vadd.f32 %v688, %v852
    %v917 = vadd.f32 %v689, %v853
    %v918 = vadd.f32 %v690, %v854
    %v919 = vadd.f32 %v691, %v855
    %v920 = vadd.f32 %v692, %v856
    %v921 = vadd.f32 %v693, %v857
    %v922 = vadd.f32 %v694, %v858
    %v923 = vadd.f32 %v695, %v859
    %v924 = vadd.f32 %v696, %v860
    %v925 = vadd.f32 %v697, %v861
    %v926 = vadd.f32 %v698, %v862
    %928 = vset.pattern.permute.xlu0 0
    %929 = vperm.xlu0 %928, %v45
    %v930 = vpop.permute.xlu0 %929
    %933 = vset.pattern.permute.xlu0 0
    %934 = vperm.xlu0 %933, %v46
    %v935 = vpop.permute.xlu0 %934
    %938 = vset.pattern.permute.xlu0 0
    %939 = vperm.xlu0 %938, %v47
    %v940 = vpop.permute.xlu0 %939
    %943 = vset.pattern.permute.xlu0 0
    %944 = vperm.xlu0 %943, %v48
    %v945 = vpop.permute.xlu0 %944
    %948 = vset.pattern.permute.xlu0 0
    %949 = vperm.xlu0 %948, %v49
    %v950 = vpop.permute.xlu0 %949
    %953 = vset.pattern.permute.xlu0 0
    %954 = vperm.xlu0 %953, %v50
    %v955 = vpop.permute.xlu0 %954
    %958 = vset.pattern.permute.xlu0 0
    %959 = vperm.xlu0 %958, %v51
    %v960 = vpop.permute.xlu0 %959
    %963 = vset.pattern.permute.xlu0 0
    %964 = vperm.xlu0 %963, %v52
    %v965 = vpop.permute.xlu0 %964
    %968 = vset.pattern.permute.xlu0 0
    %969 = vperm.xlu0 %968, %v53
    %v970 = vpop.permute.xlu0 %969
    %973 = vset.pattern.permute.xlu0 0
    %974 = vperm.xlu0 %973, %v54
    %v975 = vpop.permute.xlu0 %974
    %978 = vset.pattern.permute.xlu0 0
    %979 = vperm.xlu0 %978, %v55
    %v980 = vpop.permute.xlu0 %979
    %983 = vset.pattern.permute.xlu0 0
    %984 = vperm.xlu0 %983, %v56
    %v985 = vpop.permute.xlu0 %984
    %988 = vset.pattern.permute.xlu0 0
    %989 = vperm.xlu0 %988, %v57
    %v990 = vpop.permute.xlu0 %989
    %993 = vset.pattern.permute.xlu0 0
    %994 = vperm.xlu0 %993, %v58
    %v995 = vpop.permute.xlu0 %994
    %998 = vset.pattern.permute.xlu0 0
    %999 = vperm.xlu0 %998, %v59
    %v1000 = vpop.permute.xlu0 %999
    %1003 = vset.pattern.permute.xlu0 0
    %1004 = vperm.xlu0 %1003, %v60
    %v1005 = vpop.permute.xlu0 %1004
    %v1007 = vadd.f32 %v863, %v930
    %v1008 = vadd.f32 %v864, %v930
    %v1009 = vadd.f32 %v865, %v935
    %v1010 = vadd.f32 %v866, %v935
    %v1011 = vadd.f32 %v867, %v940
    %v1012 = vadd.f32 %v868, %v940
    %v1013 = vadd.f32 %v869, %v945
    %v1014 = vadd.f32 %v870, %v945
    %v1015 = vadd.f32 %v871, %v950
    %v1016 = vadd.f32 %v872, %v950
    %v1017 = vadd.f32 %v873, %v955
    %v1018 = vadd.f32 %v874, %v955
    %v1019 = vadd.f32 %v875, %v960
    %v1020 = vadd.f32 %v876, %v960
    %v1021 = vadd.f32 %v877, %v965
    %v1022 = vadd.f32 %v878, %v965
    %v1023 = vadd.f32 %v879, %v970
    %v1024 = vadd.f32 %v880, %v970
    %v1025 = vadd.f32 %v881, %v975
    %v1026 = vadd.f32 %v882, %v975
    %v1027 = vadd.f32 %v883, %v980
    %v1028 = vadd.f32 %v884, %v980
    %v1029 = vadd.f32 %v885, %v985
    %v1030 = vadd.f32 %v886, %v985
    %v1031 = vadd.f32 %v887, %v990
    %v1032 = vadd.f32 %v888, %v990
    %v1033 = vadd.f32 %v889, %v995
    %v1034 = vadd.f32 %v890, %v995
    %v1035 = vadd.f32 %v891, %v1000
    %v1036 = vadd.f32 %v892, %v1000
    %v1037 = vadd.f32 %v893, %v1005
    %v1038 = vadd.f32 %v894, %v1005
    %v1039 = vadd.f32 %v895, %v930
    %v1040 = vadd.f32 %v896, %v930
    %v1041 = vadd.f32 %v897, %v935
    %v1042 = vadd.f32 %v898, %v935
    %v1043 = vadd.f32 %v899, %v940
    %v1044 = vadd.f32 %v900, %v940
    %v1045 = vadd.f32 %v901, %v945
    %v1046 = vadd.f32 %v902, %v945
    %v1047 = vadd.f32 %v903, %v950
    %v1048 = vadd.f32 %v904, %v950
    %v1049 = vadd.f32 %v905, %v955
    %v1050 = vadd.f32 %v906, %v955
    %v1051 = vadd.f32 %v907, %v960
    %v1052 = vadd.f32 %v908, %v960
    %v1053 = vadd.f32 %v909, %v965
    %v1054 = vadd.f32 %v910, %v965
    %v1055 = vadd.f32 %v911, %v970
    %v1056 = vadd.f32 %v912, %v970
    %v1057 = vadd.f32 %v913, %v975
    %v1058 = vadd.f32 %v914, %v975
    %v1059 = vadd.f32 %v915, %v980
    %v1060 = vadd.f32 %v916, %v980
    %v1061 = vadd.f32 %v917, %v985
    %v1062 = vadd.f32 %v918, %v985
    %v1063 = vadd.f32 %v919, %v990
    %v1064 = vadd.f32 %v920, %v990
    %v1065 = vadd.f32 %v921, %v995
    %v1066 = vadd.f32 %v922, %v995
    %v1067 = vadd.f32 %v923, %v1000
    %v1068 = vadd.f32 %v924, %v1000
    %v1069 = vadd.f32 %v925, %v1005
    %v1070 = vadd.f32 %v926, %v1005
    %v1071 = vmax.f32 %v1007, 0.0
    %v1072 = vmax.f32 %v1008, 0.0
    %v1073 = vmax.f32 %v1009, 0.0
    %v1074 = vmax.f32 %v1010, 0.0
    %v1075 = vmax.f32 %v1011, 0.0
    %v1076 = vmax.f32 %v1012, 0.0
    %v1077 = vmax.f32 %v1013, 0.0
    %v1078 = vmax.f32 %v1014, 0.0
    %v1079 = vmax.f32 %v1015, 0.0
    %v1080 = vmax.f32 %v1016, 0.0
    %v1081 = vmax.f32 %v1017, 0.0
    %v1082 = vmax.f32 %v1018, 0.0
    %v1083 = vmax.f32 %v1019, 0.0
    %v1084 = vmax.f32 %v1020, 0.0
    %v1085 = vmax.f32 %v1021, 0.0
    %v1086 = vmax.f32 %v1022, 0.0
    %v1087 = vmax.f32 %v1023, 0.0
    %v1088 = vmax.f32 %v1024, 0.0
    %v1089 = vmax.f32 %v1025, 0.0
    %v1090 = vmax.f32 %v1026, 0.0
    %v1091 = vmax.f32 %v1027, 0.0
    %v1092 = vmax.f32 %v1028, 0.0
    %v1093 = vmax.f32 %v1029, 0.0
    %v1094 = vmax.f32 %v1030, 0.0
    %v1095 = vmax.f32 %v1031, 0.0
    %v1096 = vmax.f32 %v1032, 0.0
    %v1097 = vmax.f32 %v1033, 0.0
    %v1098 = vmax.f32 %v1034, 0.0
    %v1099 = vmax.f32 %v1035, 0.0
    %v1100 = vmax.f32 %v1036, 0.0
    %v1101 = vmax.f32 %v1037, 0.0
    %v1102 = vmax.f32 %v1038, 0.0
    %v1103 = vmax.f32 %v1039, 0.0
    %v1104 = vmax.f32 %v1040, 0.0
    %v1105 = vmax.f32 %v1041, 0.0
    %v1106 = vmax.f32 %v1042, 0.0
    %v1107 = vmax.f32 %v1043, 0.0
    %v1108 = vmax.f32 %v1044, 0.0
    %v1109 = vmax.f32 %v1045, 0.0
    %v1110 = vmax.f32 %v1046, 0.0
    %v1111 = vmax.f32 %v1047, 0.0
    %v1112 = vmax.f32 %v1048, 0.0
    %v1113 = vmax.f32 %v1049, 0.0
    %v1114 = vmax.f32 %v1050, 0.0
    %v1115 = vmax.f32 %v1051, 0.0
    %v1116 = vmax.f32 %v1052, 0.0
    %v1117 = vmax.f32 %v1053, 0.0
    %v1118 = vmax.f32 %v1054, 0.0
    %v1119 = vmax.f32 %v1055, 0.0
    %v1120 = vmax.f32 %v1056, 0.0
    %v1121 = vmax.f32 %v1057, 0.0
    %v1122 = vmax.f32 %v1058, 0.0
    %v1123 = vmax.f32 %v1059, 0.0
    %v1124 = vmax.f32 %v1060, 0.0
    %v1125 = vmax.f32 %v1061, 0.0
    %v1126 = vmax.f32 %v1062, 0.0
    %v1127 = vmax.f32 %v1063, 0.0
    %v1128 = vmax.f32 %v1064, 0.0
    %v1129 = vmax.f32 %v1065, 0.0
    %v1130 = vmax.f32 %v1066, 0.0
    %v1131 = vmax.f32 %v1067, 0.0
    %v1132 = vmax.f32 %v1068, 0.0
    %v1133 = vmax.f32 %v1069, 0.0
    %v1134 = vmax.f32 %v1070, 0.0
    %v1135 = vadd.f32 %v1071, %v1072
    %1136 = vadd.xlane.f32.xlu0 %v1135
    %v1137 = vpop.xlane.xlu0 %1136
    %v1138 = vadd.f32 %v1073, %v1074
    %1139 = vadd.xlane.f32.xlu0 %v1138
    %v1140 = vpop.xlane.xlu0 %1139
    %v1141 = vadd.f32 %v1075, %v1076
    %1142 = vadd.xlane.f32.xlu0 %v1141
    %v1143 = vpop.xlane.xlu0 %1142
    %v1144 = vadd.f32 %v1077, %v1078
    %1145 = vadd.xlane.f32.xlu0 %v1144
    %v1146 = vpop.xlane.xlu0 %1145
    %v1147 = vadd.f32 %v1079, %v1080
    %1148 = vadd.xlane.f32.xlu0 %v1147
    %v1149 = vpop.xlane.xlu0 %1148
    %v1150 = vadd.f32 %v1081, %v1082
    %1151 = vadd.xlane.f32.xlu0 %v1150
    %v1152 = vpop.xlane.xlu0 %1151
    %v1153 = vadd.f32 %v1083, %v1084
    %1154 = vadd.xlane.f32.xlu0 %v1153
    %v1155 = vpop.xlane.xlu0 %1154
    %v1156 = vadd.f32 %v1085, %v1086
    %1157 = vadd.xlane.f32.xlu0 %v1156
    %v1158 = vpop.xlane.xlu0 %1157
    %v1159 = vadd.f32 %v1087, %v1088
    %1160 = vadd.xlane.f32.xlu0 %v1159
    %v1161 = vpop.xlane.xlu0 %1160
    %v1162 = vadd.f32 %v1089, %v1090
    %1163 = vadd.xlane.f32.xlu0 %v1162
    %v1164 = vpop.xlane.xlu0 %1163
    %v1165 = vadd.f32 %v1091, %v1092
    %1166 = vadd.xlane.f32.xlu0 %v1165
    %v1167 = vpop.xlane.xlu0 %1166
    %v1168 = vadd.f32 %v1093, %v1094
    %1169 = vadd.xlane.f32.xlu0 %v1168
    %v1170 = vpop.xlane.xlu0 %1169
    %v1171 = vadd.f32 %v1095, %v1096
    %1172 = vadd.xlane.f32.xlu0 %v1171
    %v1173 = vpop.xlane.xlu0 %1172
    %v1174 = vadd.f32 %v1097, %v1098
    %1175 = vadd.xlane.f32.xlu0 %v1174
    %v1176 = vpop.xlane.xlu0 %1175
    %v1177 = vadd.f32 %v1099, %v1100
    %1178 = vadd.xlane.f32.xlu0 %v1177
    %v1179 = vpop.xlane.xlu0 %1178
    %v1180 = vadd.f32 %v1101, %v1102
    %1181 = vadd.xlane.f32.xlu0 %v1180
    %v1182 = vpop.xlane.xlu0 %1181
    %v1183 = vadd.f32 %v1103, %v1104
    %1184 = vadd.xlane.f32.xlu0 %v1183
    %v1185 = vpop.xlane.xlu0 %1184
    %v1186 = vadd.f32 %v1105, %v1106
    %1187 = vadd.xlane.f32.xlu0 %v1186
    %v1188 = vpop.xlane.xlu0 %1187
    %v1189 = vadd.f32 %v1107, %v1108
    %1190 = vadd.xlane.f32.xlu0 %v1189
    %v1191 = vpop.xlane.xlu0 %1190
    %v1192 = vadd.f32 %v1109, %v1110
    %1193 = vadd.xlane.f32.xlu0 %v1192
    %v1194 = vpop.xlane.xlu0 %1193
    %v1195 = vadd.f32 %v1111, %v1112
    %1196 = vadd.xlane.f32.xlu0 %v1195
    %v1197 = vpop.xlane.xlu0 %1196
    %v1198 = vadd.f32 %v1113, %v1114
    %1199 = vadd.xlane.f32.xlu0 %v1198
    %v1200 = vpop.xlane.xlu0 %1199
    %v1201 = vadd.f32 %v1115, %v1116
    %1202 = vadd.xlane.f32.xlu0 %v1201
    %v1203 = vpop.xlane.xlu0 %1202
    %v1204 = vadd.f32 %v1117, %v1118
    %1205 = vadd.xlane.f32.xlu0 %v1204
    %v1206 = vpop.xlane.xlu0 %1205
    %v1207 = vadd.f32 %v1119, %v1120
    %1208 = vadd.xlane.f32.xlu0 %v1207
    %v1209 = vpop.xlane.xlu0 %1208
    %v1210 = vadd.f32 %v1121, %v1122
    %1211 = vadd.xlane.f32.xlu0 %v1210
    %v1212 = vpop.xlane.xlu0 %1211
    %v1213 = vadd.f32 %v1123, %v1124
    %1214 = vadd.xlane.f32.xlu0 %v1213
    %v1215 = vpop.xlane.xlu0 %1214
    %v1216 = vadd.f32 %v1125, %v1126
    %1217 = vadd.xlane.f32.xlu0 %v1216
    %v1218 = vpop.xlane.xlu0 %1217
    %v1219 = vadd.f32 %v1127, %v1128
    %1220 = vadd.xlane.f32.xlu0 %v1219
    %v1221 = vpop.xlane.xlu0 %1220
    %v1222 = vadd.f32 %v1129, %v1130
    %1223 = vadd.xlane.f32.xlu0 %v1222
    %v1224 = vpop.xlane.xlu0 %1223
    %v1225 = vadd.f32 %v1131, %v1132
    %1226 = vadd.xlane.f32.xlu0 %v1225
    %v1227 = vpop.xlane.xlu0 %1226
    %v1228 = vadd.f32 %v1133, %v1134
    %1229 = vadd.xlane.f32.xlu0 %v1228
    %v1230 = vpop.xlane.xlu0 %1229
    %v1231 = vld [vmem:[%s3] sm:$0xff]
    %v1232 = vld [vmem:[%s3 + $0x8] sm:$0xff]
    %v1233 = vld [vmem:[%s3 + $0x10] sm:$0xff]
    %v1234 = vld [vmem:[%s3 + $0x18] sm:$0xff]
    %v1235 = vld [vmem:[%s3 + $0x20] sm:$0xff]
    %v1236 = vld [vmem:[%s3 + $0x28] sm:$0xff]
    %v1237 = vld [vmem:[%s3 + $0x30] sm:$0xff]
    %v1238 = vld [vmem:[%s3 + $0x38] sm:$0xff]
    %v1239 = vld [vmem:[%s3 + $0x40] sm:$0xff]
    %v1240 = vld [vmem:[%s3 + $0x48] sm:$0xff]
    %v1241 = vld [vmem:[%s3 + $0x50] sm:$0xff]
    %v1242 = vld [vmem:[%s3 + $0x58] sm:$0xff]
    %v1243 = vld [vmem:[%s3 + $0x60] sm:$0xff]
    %v1244 = vld [vmem:[%s3 + $0x68] sm:$0xff]
    %v1245 = vld [vmem:[%s3 + $0x70] sm:$0xff]
    %v1246 = vld [vmem:[%s3 + $0x78] sm:$0xff]
    %v1247 = vmul.f32 %v1137, %v1231
    %v1248 = vmul.f32 %v1140, %v1232
    %v1249 = vmul.f32 %v1143, %v1233
    %v1250 = vmul.f32 %v1146, %v1234
    %v1251 = vmul.f32 %v1149, %v1235
    %v1252 = vmul.f32 %v1152, %v1236
    %v1253 = vmul.f32 %v1155, %v1237
    %v1254 = vmul.f32 %v1158, %v1238
    %v1255 = vmul.f32 %v1161, %v1239
    %v1256 = vmul.f32 %v1164, %v1240
    %v1257 = vmul.f32 %v1167, %v1241
    %v1258 = vmul.f32 %v1170, %v1242
    %v1259 = vmul.f32 %v1173, %v1243
    %v1260 = vmul.f32 %v1176, %v1244
    %v1261 = vmul.f32 %v1179, %v1245
    %v1262 = vmul.f32 %v1182, %v1246
    %v1263 = vmul.f32 %v1185, %v1231
    %v1264 = vmul.f32 %v1188, %v1232
    %v1265 = vmul.f32 %v1191, %v1233
    %v1266 = vmul.f32 %v1194, %v1234
    %v1267 = vmul.f32 %v1197, %v1235
    %v1268 = vmul.f32 %v1200, %v1236
    %v1269 = vmul.f32 %v1203, %v1237
    %v1270 = vmul.f32 %v1206, %v1238
    %v1271 = vmul.f32 %v1209, %v1239
    %v1272 = vmul.f32 %v1212, %v1240
    %v1273 = vmul.f32 %v1215, %v1241
    %v1274 = vmul.f32 %v1218, %v1242
    %v1275 = vmul.f32 %v1221, %v1243
    %v1276 = vmul.f32 %v1224, %v1244
    %v1277 = vmul.f32 %v1227, %v1245
    %v1278 = vmul.f32 %v1230, %v1246
    %vm1279 = vcmask 64512
    %v1280 = vsel %vm1279, %v1247, 0.0
    %v1281 = vsel %vm1279, %v1248, 0.0
    %v1282 = vadd.f32 %v1280, %v1281
    %v1283 = vsel %vm1279, %v1249, 0.0
    %v1284 = vadd.f32 %v1282, %v1283
    %v1285 = vsel %vm1279, %v1250, 0.0
    %v1286 = vadd.f32 %v1284, %v1285
    %v1287 = vsel %vm1279, %v1251, 0.0
    %v1288 = vadd.f32 %v1286, %v1287
    %v1289 = vsel %vm1279, %v1252, 0.0
    %v1290 = vadd.f32 %v1288, %v1289
    %v1291 = vsel %vm1279, %v1253, 0.0
    %v1292 = vadd.f32 %v1290, %v1291
    %v1293 = vsel %vm1279, %v1254, 0.0
    %v1294 = vadd.f32 %v1292, %v1293
    %v1295 = vsel %vm1279, %v1255, 0.0
    %v1296 = vadd.f32 %v1294, %v1295
    %v1297 = vsel %vm1279, %v1256, 0.0
    %v1298 = vadd.f32 %v1296, %v1297
    %v1299 = vsel %vm1279, %v1257, 0.0
    %v1300 = vadd.f32 %v1298, %v1299
    %v1301 = vsel %vm1279, %v1258, 0.0
    %v1302 = vadd.f32 %v1300, %v1301
    %v1303 = vsel %vm1279, %v1259, 0.0
    %v1304 = vadd.f32 %v1302, %v1303
    %v1305 = vsel %vm1279, %v1260, 0.0
    %v1306 = vadd.f32 %v1304, %v1305
    %v1307 = vsel %vm1279, %v1261, 0.0
    %v1308 = vadd.f32 %v1306, %v1307
    %v1309 = vsel %vm1279, %v1262, 0.0
    %v1310 = vadd.f32 %v1308, %v1309
    %v1311 = vrot.slane %v1310, 4
    %v1312 = vadd.f32 %v1310, %v1311
    %v1313 = vrot.slane %v1312, 2
    %v1314 = vadd.f32 %v1312, %v1313
    %v1315 = vrot.slane %v1314, 1
    %v1316 = vadd.f32 %v1314, %v1315
    %v1317 = vsel %vm1279, %v1263, 0.0
    %v1318 = vsel %vm1279, %v1264, 0.0
    %v1319 = vadd.f32 %v1317, %v1318
    %v1320 = vsel %vm1279, %v1265, 0.0
    %v1321 = vadd.f32 %v1319, %v1320
    %v1322 = vsel %vm1279, %v1266, 0.0
    %v1323 = vadd.f32 %v1321, %v1322
    %v1324 = vsel %vm1279, %v1267, 0.0
    %v1325 = vadd.f32 %v1323, %v1324
    %v1326 = vsel %vm1279, %v1268, 0.0
    %v1327 = vadd.f32 %v1325, %v1326
    %v1328 = vsel %vm1279, %v1269, 0.0
    %v1329 = vadd.f32 %v1327, %v1328
    %v1330 = vsel %vm1279, %v1270, 0.0
    %v1331 = vadd.f32 %v1329, %v1330
    %v1332 = vsel %vm1279, %v1271, 0.0
    %v1333 = vadd.f32 %v1331, %v1332
    %v1334 = vsel %vm1279, %v1272, 0.0
    %v1335 = vadd.f32 %v1333, %v1334
    %v1336 = vsel %vm1279, %v1273, 0.0
    %v1337 = vadd.f32 %v1335, %v1336
    %v1338 = vsel %vm1279, %v1274, 0.0
    %v1339 = vadd.f32 %v1337, %v1338
    %v1340 = vsel %vm1279, %v1275, 0.0
    %v1341 = vadd.f32 %v1339, %v1340
    %v1342 = vsel %vm1279, %v1276, 0.0
    %v1343 = vadd.f32 %v1341, %v1342
    %v1344 = vsel %vm1279, %v1277, 0.0
    %v1345 = vadd.f32 %v1343, %v1344
    %v1346 = vsel %vm1279, %v1278, 0.0
    %v1347 = vadd.f32 %v1345, %v1346
    %v1348 = vrot.slane %v1347, 4
    %v1349 = vadd.f32 %v1347, %v1348
    %v1350 = vrot.slane %v1349, 2
    %v1351 = vadd.f32 %v1349, %v1350
    %v1352 = vrot.slane %v1351, 1
    %v1353 = vadd.f32 %v1351, %v1352
    %v1354 = vadd.f32 %v1316, 0.0
    %v1355 = vadd.f32 %v1353, 0.0
    %s1356 = scalar_lea.vmem %s1, 128
    %v1357 = vld [vmem:[%s1356] sm:$0xff]
    %v1358 = vld [vmem:[%s1356 + $0x8] sm:$0xff]
    %v1359 = vld [vmem:[%s1356 + $0x10] sm:$0xff]
    %v1360 = vld [vmem:[%s1356 + $0x18] sm:$0xff]
    %v1361 = vld [vmem:[%s1356 + $0x20] sm:$0xff]
    %v1362 = vld [vmem:[%s1356 + $0x28] sm:$0xff]
    %v1363 = vld [vmem:[%s1356 + $0x30] sm:$0xff]
    %v1364 = vld [vmem:[%s1356 + $0x38] sm:$0xff]
    %v1365 = vld [vmem:[%s1356 + $0x40] sm:$0xff]
    %v1366 = vld [vmem:[%s1356 + $0x48] sm:$0xff]
    %v1367 = vld [vmem:[%s1356 + $0x50] sm:$0xff]
    %v1368 = vld [vmem:[%s1356 + $0x58] sm:$0xff]
    %v1369 = vld [vmem:[%s1356 + $0x60] sm:$0xff]
    %v1370 = vld [vmem:[%s1356 + $0x68] sm:$0xff]
    %v1371 = vld [vmem:[%s1356 + $0x70] sm:$0xff]
    %v1372 = vld [vmem:[%s1356 + $0x78] sm:$0xff]
    %s1373 = scalar_lea.vmem %s2, 128
    %v1374 = vld [vmem:[%s1373] sm:$0xff]
    %v1375 = vld [vmem:[%s1373 + $0x8] sm:$0xff]
    %v1376 = vld [vmem:[%s1373 + $0x10] sm:$0xff]
    %v1377 = vld [vmem:[%s1373 + $0x18] sm:$0xff]
    %v1378 = vld [vmem:[%s1373 + $0x20] sm:$0xff]
    %v1379 = vld [vmem:[%s1373 + $0x28] sm:$0xff]
    %v1380 = vld [vmem:[%s1373 + $0x30] sm:$0xff]
    %v1381 = vld [vmem:[%s1373 + $0x38] sm:$0xff]
    %v1382 = vld [vmem:[%s1373 + $0x40] sm:$0xff]
    %v1383 = vld [vmem:[%s1373 + $0x48] sm:$0xff]
    %v1384 = vld [vmem:[%s1373 + $0x50] sm:$0xff]
    %v1385 = vld [vmem:[%s1373 + $0x58] sm:$0xff]
    %v1386 = vld [vmem:[%s1373 + $0x60] sm:$0xff]
    %v1387 = vld [vmem:[%s1373 + $0x68] sm:$0xff]
    %v1388 = vld [vmem:[%s1373 + $0x70] sm:$0xff]
    %v1389 = vld [vmem:[%s1373 + $0x78] sm:$0xff]
    %1391 = vset.pattern.permute.xlu0 0
    %1392 = vperm.xlu0 %1391, %v1357
    %v1393 = vpop.permute.xlu0 %1392
    %1396 = vset.pattern.permute.xlu0 0
    %1397 = vperm.xlu0 %1396, %v1358
    %v1398 = vpop.permute.xlu0 %1397
    %1401 = vset.pattern.permute.xlu0 0
    %1402 = vperm.xlu0 %1401, %v1359
    %v1403 = vpop.permute.xlu0 %1402
    %1406 = vset.pattern.permute.xlu0 0
    %1407 = vperm.xlu0 %1406, %v1360
    %v1408 = vpop.permute.xlu0 %1407
    %1411 = vset.pattern.permute.xlu0 0
    %1412 = vperm.xlu0 %1411, %v1361
    %v1413 = vpop.permute.xlu0 %1412
    %1416 = vset.pattern.permute.xlu0 0
    %1417 = vperm.xlu0 %1416, %v1362
    %v1418 = vpop.permute.xlu0 %1417
    %1421 = vset.pattern.permute.xlu0 0
    %1422 = vperm.xlu0 %1421, %v1363
    %v1423 = vpop.permute.xlu0 %1422
    %1426 = vset.pattern.permute.xlu0 0
    %1427 = vperm.xlu0 %1426, %v1364
    %v1428 = vpop.permute.xlu0 %1427
    %1431 = vset.pattern.permute.xlu0 0
    %1432 = vperm.xlu0 %1431, %v1365
    %v1433 = vpop.permute.xlu0 %1432
    %1436 = vset.pattern.permute.xlu0 0
    %1437 = vperm.xlu0 %1436, %v1366
    %v1438 = vpop.permute.xlu0 %1437
    %1441 = vset.pattern.permute.xlu0 0
    %1442 = vperm.xlu0 %1441, %v1367
    %v1443 = vpop.permute.xlu0 %1442
    %1446 = vset.pattern.permute.xlu0 0
    %1447 = vperm.xlu0 %1446, %v1368
    %v1448 = vpop.permute.xlu0 %1447
    %1451 = vset.pattern.permute.xlu0 0
    %1452 = vperm.xlu0 %1451, %v1369
    %v1453 = vpop.permute.xlu0 %1452
    %1456 = vset.pattern.permute.xlu0 0
    %1457 = vperm.xlu0 %1456, %v1370
    %v1458 = vpop.permute.xlu0 %1457
    %1461 = vset.pattern.permute.xlu0 0
    %1462 = vperm.xlu0 %1461, %v1371
    %v1463 = vpop.permute.xlu0 %1462
    %1466 = vset.pattern.permute.xlu0 0
    %1467 = vperm.xlu0 %1466, %v1372
    %v1468 = vpop.permute.xlu0 %1467
    %v1470 = vmul.f32 %v1393, %v166
    %v1471 = vmul.f32 %v1393, %v170
    %v1472 = vmul.f32 %v1398, %v166
    %v1473 = vmul.f32 %v1398, %v170
    %v1474 = vmul.f32 %v1403, %v166
    %v1475 = vmul.f32 %v1403, %v170
    %v1476 = vmul.f32 %v1408, %v166
    %v1477 = vmul.f32 %v1408, %v170
    %v1478 = vmul.f32 %v1413, %v166
    %v1479 = vmul.f32 %v1413, %v170
    %v1480 = vmul.f32 %v1418, %v166
    %v1481 = vmul.f32 %v1418, %v170
    %v1482 = vmul.f32 %v1423, %v166
    %v1483 = vmul.f32 %v1423, %v170
    %v1484 = vmul.f32 %v1428, %v166
    %v1485 = vmul.f32 %v1428, %v170
    %v1486 = vmul.f32 %v1433, %v166
    %v1487 = vmul.f32 %v1433, %v170
    %v1488 = vmul.f32 %v1438, %v166
    %v1489 = vmul.f32 %v1438, %v170
    %v1490 = vmul.f32 %v1443, %v166
    %v1491 = vmul.f32 %v1443, %v170
    %v1492 = vmul.f32 %v1448, %v166
    %v1493 = vmul.f32 %v1448, %v170
    %v1494 = vmul.f32 %v1453, %v166
    %v1495 = vmul.f32 %v1453, %v170
    %v1496 = vmul.f32 %v1458, %v166
    %v1497 = vmul.f32 %v1458, %v170
    %v1498 = vmul.f32 %v1463, %v166
    %v1499 = vmul.f32 %v1463, %v170
    %v1500 = vmul.f32 %v1468, %v166
    %v1501 = vmul.f32 %v1468, %v170
    %v1502 = vmul.f32 %v1393, %v174
    %v1503 = vmul.f32 %v1393, %v178
    %v1504 = vmul.f32 %v1398, %v174
    %v1505 = vmul.f32 %v1398, %v178
    %v1506 = vmul.f32 %v1403, %v174
    %v1507 = vmul.f32 %v1403, %v178
    %v1508 = vmul.f32 %v1408, %v174
    %v1509 = vmul.f32 %v1408, %v178
    %v1510 = vmul.f32 %v1413, %v174
    %v1511 = vmul.f32 %v1413, %v178
    %v1512 = vmul.f32 %v1418, %v174
    %v1513 = vmul.f32 %v1418, %v178
    %v1514 = vmul.f32 %v1423, %v174
    %v1515 = vmul.f32 %v1423, %v178
    %v1516 = vmul.f32 %v1428, %v174
    %v1517 = vmul.f32 %v1428, %v178
    %v1518 = vmul.f32 %v1433, %v174
    %v1519 = vmul.f32 %v1433, %v178
    %v1520 = vmul.f32 %v1438, %v174
    %v1521 = vmul.f32 %v1438, %v178
    %v1522 = vmul.f32 %v1443, %v174
    %v1523 = vmul.f32 %v1443, %v178
    %v1524 = vmul.f32 %v1448, %v174
    %v1525 = vmul.f32 %v1448, %v178
    %v1526 = vmul.f32 %v1453, %v174
    %v1527 = vmul.f32 %v1453, %v178
    %v1528 = vmul.f32 %v1458, %v174
    %v1529 = vmul.f32 %v1458, %v178
    %v1530 = vmul.f32 %v1463, %v174
    %v1531 = vmul.f32 %v1463, %v178
    %v1532 = vmul.f32 %v1468, %v174
    %v1533 = vmul.f32 %v1468, %v178
    %1534 = vset.pattern.permute.xlu0 1
    %1535 = vperm.xlu0 %1534, %v1357
    %v1536 = vpop.permute.xlu0 %1535
    %1538 = vset.pattern.permute.xlu0 1
    %1539 = vperm.xlu0 %1538, %v1358
    %v1540 = vpop.permute.xlu0 %1539
    %1542 = vset.pattern.permute.xlu0 1
    %1543 = vperm.xlu0 %1542, %v1359
    %v1544 = vpop.permute.xlu0 %1543
    %1546 = vset.pattern.permute.xlu0 1
    %1547 = vperm.xlu0 %1546, %v1360
    %v1548 = vpop.permute.xlu0 %1547
    %1550 = vset.pattern.permute.xlu0 1
    %1551 = vperm.xlu0 %1550, %v1361
    %v1552 = vpop.permute.xlu0 %1551
    %1554 = vset.pattern.permute.xlu0 1
    %1555 = vperm.xlu0 %1554, %v1362
    %v1556 = vpop.permute.xlu0 %1555
    %1558 = vset.pattern.permute.xlu0 1
    %1559 = vperm.xlu0 %1558, %v1363
    %v1560 = vpop.permute.xlu0 %1559
    %1562 = vset.pattern.permute.xlu0 1
    %1563 = vperm.xlu0 %1562, %v1364
    %v1564 = vpop.permute.xlu0 %1563
    %1566 = vset.pattern.permute.xlu0 1
    %1567 = vperm.xlu0 %1566, %v1365
    %v1568 = vpop.permute.xlu0 %1567
    %1570 = vset.pattern.permute.xlu0 1
    %1571 = vperm.xlu0 %1570, %v1366
    %v1572 = vpop.permute.xlu0 %1571
    %1574 = vset.pattern.permute.xlu0 1
    %1575 = vperm.xlu0 %1574, %v1367
    %v1576 = vpop.permute.xlu0 %1575
    %1578 = vset.pattern.permute.xlu0 1
    %1579 = vperm.xlu0 %1578, %v1368
    %v1580 = vpop.permute.xlu0 %1579
    %1582 = vset.pattern.permute.xlu0 1
    %1583 = vperm.xlu0 %1582, %v1369
    %v1584 = vpop.permute.xlu0 %1583
    %1586 = vset.pattern.permute.xlu0 1
    %1587 = vperm.xlu0 %1586, %v1370
    %v1588 = vpop.permute.xlu0 %1587
    %1590 = vset.pattern.permute.xlu0 1
    %1591 = vperm.xlu0 %1590, %v1371
    %v1592 = vpop.permute.xlu0 %1591
    %1594 = vset.pattern.permute.xlu0 1
    %1595 = vperm.xlu0 %1594, %v1372
    %v1596 = vpop.permute.xlu0 %1595
    %v1598 = vmul.f32 %v1536, %v330
    %v1599 = vmul.f32 %v1536, %v334
    %v1600 = vmul.f32 %v1540, %v330
    %v1601 = vmul.f32 %v1540, %v334
    %v1602 = vmul.f32 %v1544, %v330
    %v1603 = vmul.f32 %v1544, %v334
    %v1604 = vmul.f32 %v1548, %v330
    %v1605 = vmul.f32 %v1548, %v334
    %v1606 = vmul.f32 %v1552, %v330
    %v1607 = vmul.f32 %v1552, %v334
    %v1608 = vmul.f32 %v1556, %v330
    %v1609 = vmul.f32 %v1556, %v334
    %v1610 = vmul.f32 %v1560, %v330
    %v1611 = vmul.f32 %v1560, %v334
    %v1612 = vmul.f32 %v1564, %v330
    %v1613 = vmul.f32 %v1564, %v334
    %v1614 = vmul.f32 %v1568, %v330
    %v1615 = vmul.f32 %v1568, %v334
    %v1616 = vmul.f32 %v1572, %v330
    %v1617 = vmul.f32 %v1572, %v334
    %v1618 = vmul.f32 %v1576, %v330
    %v1619 = vmul.f32 %v1576, %v334
    %v1620 = vmul.f32 %v1580, %v330
    %v1621 = vmul.f32 %v1580, %v334
    %v1622 = vmul.f32 %v1584, %v330
    %v1623 = vmul.f32 %v1584, %v334
    %v1624 = vmul.f32 %v1588, %v330
    %v1625 = vmul.f32 %v1588, %v334
    %v1626 = vmul.f32 %v1592, %v330
    %v1627 = vmul.f32 %v1592, %v334
    %v1628 = vmul.f32 %v1596, %v330
    %v1629 = vmul.f32 %v1596, %v334
    %v1630 = vmul.f32 %v1536, %v338
    %v1631 = vmul.f32 %v1536, %v342
    %v1632 = vmul.f32 %v1540, %v338
    %v1633 = vmul.f32 %v1540, %v342
    %v1634 = vmul.f32 %v1544, %v338
    %v1635 = vmul.f32 %v1544, %v342
    %v1636 = vmul.f32 %v1548, %v338
    %v1637 = vmul.f32 %v1548, %v342
    %v1638 = vmul.f32 %v1552, %v338
    %v1639 = vmul.f32 %v1552, %v342
    %v1640 = vmul.f32 %v1556, %v338
    %v1641 = vmul.f32 %v1556, %v342
    %v1642 = vmul.f32 %v1560, %v338
    %v1643 = vmul.f32 %v1560, %v342
    %v1644 = vmul.f32 %v1564, %v338
    %v1645 = vmul.f32 %v1564, %v342
    %v1646 = vmul.f32 %v1568, %v338
    %v1647 = vmul.f32 %v1568, %v342
    %v1648 = vmul.f32 %v1572, %v338
    %v1649 = vmul.f32 %v1572, %v342
    %v1650 = vmul.f32 %v1576, %v338
    %v1651 = vmul.f32 %v1576, %v342
    %v1652 = vmul.f32 %v1580, %v338
    %v1653 = vmul.f32 %v1580, %v342
    %v1654 = vmul.f32 %v1584, %v338
    %v1655 = vmul.f32 %v1584, %v342
    %v1656 = vmul.f32 %v1588, %v338
    %v1657 = vmul.f32 %v1588, %v342
    %v1658 = vmul.f32 %v1592, %v338
    %v1659 = vmul.f32 %v1592, %v342
    %v1660 = vmul.f32 %v1596, %v338
    %v1661 = vmul.f32 %v1596, %v342
    %v1662 = vadd.f32 %v1470, %v1598
    %v1663 = vadd.f32 %v1471, %v1599
    %v1664 = vadd.f32 %v1472, %v1600
    %v1665 = vadd.f32 %v1473, %v1601
    %v1666 = vadd.f32 %v1474, %v1602
    %v1667 = vadd.f32 %v1475, %v1603
    %v1668 = vadd.f32 %v1476, %v1604
    %v1669 = vadd.f32 %v1477, %v1605
    %v1670 = vadd.f32 %v1478, %v1606
    %v1671 = vadd.f32 %v1479, %v1607
    %v1672 = vadd.f32 %v1480, %v1608
    %v1673 = vadd.f32 %v1481, %v1609
    %v1674 = vadd.f32 %v1482, %v1610
    %v1675 = vadd.f32 %v1483, %v1611
    %v1676 = vadd.f32 %v1484, %v1612
    %v1677 = vadd.f32 %v1485, %v1613
    %v1678 = vadd.f32 %v1486, %v1614
    %v1679 = vadd.f32 %v1487, %v1615
    %v1680 = vadd.f32 %v1488, %v1616
    %v1681 = vadd.f32 %v1489, %v1617
    %v1682 = vadd.f32 %v1490, %v1618
    %v1683 = vadd.f32 %v1491, %v1619
    %v1684 = vadd.f32 %v1492, %v1620
    %v1685 = vadd.f32 %v1493, %v1621
    %v1686 = vadd.f32 %v1494, %v1622
    %v1687 = vadd.f32 %v1495, %v1623
    %v1688 = vadd.f32 %v1496, %v1624
    %v1689 = vadd.f32 %v1497, %v1625
    %v1690 = vadd.f32 %v1498, %v1626
    %v1691 = vadd.f32 %v1499, %v1627
    %v1692 = vadd.f32 %v1500, %v1628
    %v1693 = vadd.f32 %v1501, %v1629
    %v1694 = vadd.f32 %v1502, %v1630
    %v1695 = vadd.f32 %v1503, %v1631
    %v1696 = vadd.f32 %v1504, %v1632
    %v1697 = vadd.f32 %v1505, %v1633
    %v1698 = vadd.f32 %v1506, %v1634
    %v1699 = vadd.f32 %v1507, %v1635
    %v1700 = vadd.f32 %v1508, %v1636
    %v1701 = vadd.f32 %v1509, %v1637
    %v1702 = vadd.f32 %v1510, %v1638
    %v1703 = vadd.f32 %v1511, %v1639
    %v1704 = vadd.f32 %v1512, %v1640
    %v1705 = vadd.f32 %v1513, %v1641
    %v1706 = vadd.f32 %v1514, %v1642
    %v1707 = vadd.f32 %v1515, %v1643
    %v1708 = vadd.f32 %v1516, %v1644
    %v1709 = vadd.f32 %v1517, %v1645
    %v1710 = vadd.f32 %v1518, %v1646
    %v1711 = vadd.f32 %v1519, %v1647
    %v1712 = vadd.f32 %v1520, %v1648
    %v1713 = vadd.f32 %v1521, %v1649
    %v1714 = vadd.f32 %v1522, %v1650
    %v1715 = vadd.f32 %v1523, %v1651
    %v1716 = vadd.f32 %v1524, %v1652
    %v1717 = vadd.f32 %v1525, %v1653
    %v1718 = vadd.f32 %v1526, %v1654
    %v1719 = vadd.f32 %v1527, %v1655
    %v1720 = vadd.f32 %v1528, %v1656
    %v1721 = vadd.f32 %v1529, %v1657
    %v1722 = vadd.f32 %v1530, %v1658
    %v1723 = vadd.f32 %v1531, %v1659
    %v1724 = vadd.f32 %v1532, %v1660
    %v1725 = vadd.f32 %v1533, %v1661
    %1726 = vset.pattern.permute.xlu0 2
    %1727 = vperm.xlu0 %1726, %v1357
    %v1728 = vpop.permute.xlu0 %1727
    %1730 = vset.pattern.permute.xlu0 2
    %1731 = vperm.xlu0 %1730, %v1358
    %v1732 = vpop.permute.xlu0 %1731
    %1734 = vset.pattern.permute.xlu0 2
    %1735 = vperm.xlu0 %1734, %v1359
    %v1736 = vpop.permute.xlu0 %1735
    %1738 = vset.pattern.permute.xlu0 2
    %1739 = vperm.xlu0 %1738, %v1360
    %v1740 = vpop.permute.xlu0 %1739
    %1742 = vset.pattern.permute.xlu0 2
    %1743 = vperm.xlu0 %1742, %v1361
    %v1744 = vpop.permute.xlu0 %1743
    %1746 = vset.pattern.permute.xlu0 2
    %1747 = vperm.xlu0 %1746, %v1362
    %v1748 = vpop.permute.xlu0 %1747
    %1750 = vset.pattern.permute.xlu0 2
    %1751 = vperm.xlu0 %1750, %v1363
    %v1752 = vpop.permute.xlu0 %1751
    %1754 = vset.pattern.permute.xlu0 2
    %1755 = vperm.xlu0 %1754, %v1364
    %v1756 = vpop.permute.xlu0 %1755
    %1758 = vset.pattern.permute.xlu0 2
    %1759 = vperm.xlu0 %1758, %v1365
    %v1760 = vpop.permute.xlu0 %1759
    %1762 = vset.pattern.permute.xlu0 2
    %1763 = vperm.xlu0 %1762, %v1366
    %v1764 = vpop.permute.xlu0 %1763
    %1766 = vset.pattern.permute.xlu0 2
    %1767 = vperm.xlu0 %1766, %v1367
    %v1768 = vpop.permute.xlu0 %1767
    %1770 = vset.pattern.permute.xlu0 2
    %1771 = vperm.xlu0 %1770, %v1368
    %v1772 = vpop.permute.xlu0 %1771
    %1774 = vset.pattern.permute.xlu0 2
    %1775 = vperm.xlu0 %1774, %v1369
    %v1776 = vpop.permute.xlu0 %1775
    %1778 = vset.pattern.permute.xlu0 2
    %1779 = vperm.xlu0 %1778, %v1370
    %v1780 = vpop.permute.xlu0 %1779
    %1782 = vset.pattern.permute.xlu0 2
    %1783 = vperm.xlu0 %1782, %v1371
    %v1784 = vpop.permute.xlu0 %1783
    %1786 = vset.pattern.permute.xlu0 2
    %1787 = vperm.xlu0 %1786, %v1372
    %v1788 = vpop.permute.xlu0 %1787
    %v1790 = vmul.f32 %v1728, %v558
    %v1791 = vmul.f32 %v1728, %v562
    %v1792 = vmul.f32 %v1732, %v558
    %v1793 = vmul.f32 %v1732, %v562
    %v1794 = vmul.f32 %v1736, %v558
    %v1795 = vmul.f32 %v1736, %v562
    %v1796 = vmul.f32 %v1740, %v558
    %v1797 = vmul.f32 %v1740, %v562
    %v1798 = vmul.f32 %v1744, %v558
    %v1799 = vmul.f32 %v1744, %v562
    %v1800 = vmul.f32 %v1748, %v558
    %v1801 = vmul.f32 %v1748, %v562
    %v1802 = vmul.f32 %v1752, %v558
    %v1803 = vmul.f32 %v1752, %v562
    %v1804 = vmul.f32 %v1756, %v558
    %v1805 = vmul.f32 %v1756, %v562
    %v1806 = vmul.f32 %v1760, %v558
    %v1807 = vmul.f32 %v1760, %v562
    %v1808 = vmul.f32 %v1764, %v558
    %v1809 = vmul.f32 %v1764, %v562
    %v1810 = vmul.f32 %v1768, %v558
    %v1811 = vmul.f32 %v1768, %v562
    %v1812 = vmul.f32 %v1772, %v558
    %v1813 = vmul.f32 %v1772, %v562
    %v1814 = vmul.f32 %v1776, %v558
    %v1815 = vmul.f32 %v1776, %v562
    %v1816 = vmul.f32 %v1780, %v558
    %v1817 = vmul.f32 %v1780, %v562
    %v1818 = vmul.f32 %v1784, %v558
    %v1819 = vmul.f32 %v1784, %v562
    %v1820 = vmul.f32 %v1788, %v558
    %v1821 = vmul.f32 %v1788, %v562
    %v1822 = vmul.f32 %v1728, %v566
    %v1823 = vmul.f32 %v1728, %v570
    %v1824 = vmul.f32 %v1732, %v566
    %v1825 = vmul.f32 %v1732, %v570
    %v1826 = vmul.f32 %v1736, %v566
    %v1827 = vmul.f32 %v1736, %v570
    %v1828 = vmul.f32 %v1740, %v566
    %v1829 = vmul.f32 %v1740, %v570
    %v1830 = vmul.f32 %v1744, %v566
    %v1831 = vmul.f32 %v1744, %v570
    %v1832 = vmul.f32 %v1748, %v566
    %v1833 = vmul.f32 %v1748, %v570
    %v1834 = vmul.f32 %v1752, %v566
    %v1835 = vmul.f32 %v1752, %v570
    %v1836 = vmul.f32 %v1756, %v566
    %v1837 = vmul.f32 %v1756, %v570
    %v1838 = vmul.f32 %v1760, %v566
    %v1839 = vmul.f32 %v1760, %v570
    %v1840 = vmul.f32 %v1764, %v566
    %v1841 = vmul.f32 %v1764, %v570
    %v1842 = vmul.f32 %v1768, %v566
    %v1843 = vmul.f32 %v1768, %v570
    %v1844 = vmul.f32 %v1772, %v566
    %v1845 = vmul.f32 %v1772, %v570
    %v1846 = vmul.f32 %v1776, %v566
    %v1847 = vmul.f32 %v1776, %v570
    %v1848 = vmul.f32 %v1780, %v566
    %v1849 = vmul.f32 %v1780, %v570
    %v1850 = vmul.f32 %v1784, %v566
    %v1851 = vmul.f32 %v1784, %v570
    %v1852 = vmul.f32 %v1788, %v566
    %v1853 = vmul.f32 %v1788, %v570
    %v1854 = vadd.f32 %v1662, %v1790
    %v1855 = vadd.f32 %v1663, %v1791
    %v1856 = vadd.f32 %v1664, %v1792
    %v1857 = vadd.f32 %v1665, %v1793
    %v1858 = vadd.f32 %v1666, %v1794
    %v1859 = vadd.f32 %v1667, %v1795
    %v1860 = vadd.f32 %v1668, %v1796
    %v1861 = vadd.f32 %v1669, %v1797
    %v1862 = vadd.f32 %v1670, %v1798
    %v1863 = vadd.f32 %v1671, %v1799
    %v1864 = vadd.f32 %v1672, %v1800
    %v1865 = vadd.f32 %v1673, %v1801
    %v1866 = vadd.f32 %v1674, %v1802
    %v1867 = vadd.f32 %v1675, %v1803
    %v1868 = vadd.f32 %v1676, %v1804
    %v1869 = vadd.f32 %v1677, %v1805
    %v1870 = vadd.f32 %v1678, %v1806
    %v1871 = vadd.f32 %v1679, %v1807
    %v1872 = vadd.f32 %v1680, %v1808
    %v1873 = vadd.f32 %v1681, %v1809
    %v1874 = vadd.f32 %v1682, %v1810
    %v1875 = vadd.f32 %v1683, %v1811
    %v1876 = vadd.f32 %v1684, %v1812
    %v1877 = vadd.f32 %v1685, %v1813
    %v1878 = vadd.f32 %v1686, %v1814
    %v1879 = vadd.f32 %v1687, %v1815
    %v1880 = vadd.f32 %v1688, %v1816
    %v1881 = vadd.f32 %v1689, %v1817
    %v1882 = vadd.f32 %v1690, %v1818
    %v1883 = vadd.f32 %v1691, %v1819
    %v1884 = vadd.f32 %v1692, %v1820
    %v1885 = vadd.f32 %v1693, %v1821
    %v1886 = vadd.f32 %v1694, %v1822
    %v1887 = vadd.f32 %v1695, %v1823
    %v1888 = vadd.f32 %v1696, %v1824
    %v1889 = vadd.f32 %v1697, %v1825
    %v1890 = vadd.f32 %v1698, %v1826
    %v1891 = vadd.f32 %v1699, %v1827
    %v1892 = vadd.f32 %v1700, %v1828
    %v1893 = vadd.f32 %v1701, %v1829
    %v1894 = vadd.f32 %v1702, %v1830
    %v1895 = vadd.f32 %v1703, %v1831
    %v1896 = vadd.f32 %v1704, %v1832
    %v1897 = vadd.f32 %v1705, %v1833
    %v1898 = vadd.f32 %v1706, %v1834
    %v1899 = vadd.f32 %v1707, %v1835
    %v1900 = vadd.f32 %v1708, %v1836
    %v1901 = vadd.f32 %v1709, %v1837
    %v1902 = vadd.f32 %v1710, %v1838
    %v1903 = vadd.f32 %v1711, %v1839
    %v1904 = vadd.f32 %v1712, %v1840
    %v1905 = vadd.f32 %v1713, %v1841
    %v1906 = vadd.f32 %v1714, %v1842
    %v1907 = vadd.f32 %v1715, %v1843
    %v1908 = vadd.f32 %v1716, %v1844
    %v1909 = vadd.f32 %v1717, %v1845
    %v1910 = vadd.f32 %v1718, %v1846
    %v1911 = vadd.f32 %v1719, %v1847
    %v1912 = vadd.f32 %v1720, %v1848
    %v1913 = vadd.f32 %v1721, %v1849
    %v1914 = vadd.f32 %v1722, %v1850
    %v1915 = vadd.f32 %v1723, %v1851
    %v1916 = vadd.f32 %v1724, %v1852
    %v1917 = vadd.f32 %v1725, %v1853
    %1918 = vset.pattern.permute.xlu0 3
    %1919 = vperm.xlu0 %1918, %v1357
    %v1920 = vpop.permute.xlu0 %1919
    %1922 = vset.pattern.permute.xlu0 3
    %1923 = vperm.xlu0 %1922, %v1358
    %v1924 = vpop.permute.xlu0 %1923
    %1926 = vset.pattern.permute.xlu0 3
    %1927 = vperm.xlu0 %1926, %v1359
    %v1928 = vpop.permute.xlu0 %1927
    %1930 = vset.pattern.permute.xlu0 3
    %1931 = vperm.xlu0 %1930, %v1360
    %v1932 = vpop.permute.xlu0 %1931
    %1934 = vset.pattern.permute.xlu0 3
    %1935 = vperm.xlu0 %1934, %v1361
    %v1936 = vpop.permute.xlu0 %1935
    %1938 = vset.pattern.permute.xlu0 3
    %1939 = vperm.xlu0 %1938, %v1362
    %v1940 = vpop.permute.xlu0 %1939
    %1942 = vset.pattern.permute.xlu0 3
    %1943 = vperm.xlu0 %1942, %v1363
    %v1944 = vpop.permute.xlu0 %1943
    %1946 = vset.pattern.permute.xlu0 3
    %1947 = vperm.xlu0 %1946, %v1364
    %v1948 = vpop.permute.xlu0 %1947
    %1950 = vset.pattern.permute.xlu0 3
    %1951 = vperm.xlu0 %1950, %v1365
    %v1952 = vpop.permute.xlu0 %1951
    %1954 = vset.pattern.permute.xlu0 3
    %1955 = vperm.xlu0 %1954, %v1366
    %v1956 = vpop.permute.xlu0 %1955
    %1958 = vset.pattern.permute.xlu0 3
    %1959 = vperm.xlu0 %1958, %v1367
    %v1960 = vpop.permute.xlu0 %1959
    %1962 = vset.pattern.permute.xlu0 3
    %1963 = vperm.xlu0 %1962, %v1368
    %v1964 = vpop.permute.xlu0 %1963
    %1966 = vset.pattern.permute.xlu0 3
    %1967 = vperm.xlu0 %1966, %v1369
    %v1968 = vpop.permute.xlu0 %1967
    %1970 = vset.pattern.permute.xlu0 3
    %1971 = vperm.xlu0 %1970, %v1370
    %v1972 = vpop.permute.xlu0 %1971
    %1974 = vset.pattern.permute.xlu0 3
    %1975 = vperm.xlu0 %1974, %v1371
    %v1976 = vpop.permute.xlu0 %1975
    %1978 = vset.pattern.permute.xlu0 3
    %1979 = vperm.xlu0 %1978, %v1372
    %v1980 = vpop.permute.xlu0 %1979
    %v1982 = vmul.f32 %v1920, %v786
    %v1983 = vmul.f32 %v1920, %v790
    %v1984 = vmul.f32 %v1924, %v786
    %v1985 = vmul.f32 %v1924, %v790
    %v1986 = vmul.f32 %v1928, %v786
    %v1987 = vmul.f32 %v1928, %v790
    %v1988 = vmul.f32 %v1932, %v786
    %v1989 = vmul.f32 %v1932, %v790
    %v1990 = vmul.f32 %v1936, %v786
    %v1991 = vmul.f32 %v1936, %v790
    %v1992 = vmul.f32 %v1940, %v786
    %v1993 = vmul.f32 %v1940, %v790
    %v1994 = vmul.f32 %v1944, %v786
    %v1995 = vmul.f32 %v1944, %v790
    %v1996 = vmul.f32 %v1948, %v786
    %v1997 = vmul.f32 %v1948, %v790
    %v1998 = vmul.f32 %v1952, %v786
    %v1999 = vmul.f32 %v1952, %v790
    %v2000 = vmul.f32 %v1956, %v786
    %v2001 = vmul.f32 %v1956, %v790
    %v2002 = vmul.f32 %v1960, %v786
    %v2003 = vmul.f32 %v1960, %v790
    %v2004 = vmul.f32 %v1964, %v786
    %v2005 = vmul.f32 %v1964, %v790
    %v2006 = vmul.f32 %v1968, %v786
    %v2007 = vmul.f32 %v1968, %v790
    %v2008 = vmul.f32 %v1972, %v786
    %v2009 = vmul.f32 %v1972, %v790
    %v2010 = vmul.f32 %v1976, %v786
    %v2011 = vmul.f32 %v1976, %v790
    %v2012 = vmul.f32 %v1980, %v786
    %v2013 = vmul.f32 %v1980, %v790
    %v2014 = vmul.f32 %v1920, %v794
    %v2015 = vmul.f32 %v1920, %v798
    %v2016 = vmul.f32 %v1924, %v794
    %v2017 = vmul.f32 %v1924, %v798
    %v2018 = vmul.f32 %v1928, %v794
    %v2019 = vmul.f32 %v1928, %v798
    %v2020 = vmul.f32 %v1932, %v794
    %v2021 = vmul.f32 %v1932, %v798
    %v2022 = vmul.f32 %v1936, %v794
    %v2023 = vmul.f32 %v1936, %v798
    %v2024 = vmul.f32 %v1940, %v794
    %v2025 = vmul.f32 %v1940, %v798
    %v2026 = vmul.f32 %v1944, %v794
    %v2027 = vmul.f32 %v1944, %v798
    %v2028 = vmul.f32 %v1948, %v794
    %v2029 = vmul.f32 %v1948, %v798
    %v2030 = vmul.f32 %v1952, %v794
    %v2031 = vmul.f32 %v1952, %v798
    %v2032 = vmul.f32 %v1956, %v794
    %v2033 = vmul.f32 %v1956, %v798
    %v2034 = vmul.f32 %v1960, %v794
    %v2035 = vmul.f32 %v1960, %v798
    %v2036 = vmul.f32 %v1964, %v794
    %v2037 = vmul.f32 %v1964, %v798
    %v2038 = vmul.f32 %v1968, %v794
    %v2039 = vmul.f32 %v1968, %v798
    %v2040 = vmul.f32 %v1972, %v794
    %v2041 = vmul.f32 %v1972, %v798
    %v2042 = vmul.f32 %v1976, %v794
    %v2043 = vmul.f32 %v1976, %v798
    %v2044 = vmul.f32 %v1980, %v794
    %v2045 = vmul.f32 %v1980, %v798
    %v2046 = vadd.f32 %v1854, %v1982
    %v2047 = vadd.f32 %v1855, %v1983
    %v2048 = vadd.f32 %v1856, %v1984
    %v2049 = vadd.f32 %v1857, %v1985
    %v2050 = vadd.f32 %v1858, %v1986
    %v2051 = vadd.f32 %v1859, %v1987
    %v2052 = vadd.f32 %v1860, %v1988
    %v2053 = vadd.f32 %v1861, %v1989
    %v2054 = vadd.f32 %v1862, %v1990
    %v2055 = vadd.f32 %v1863, %v1991
    %v2056 = vadd.f32 %v1864, %v1992
    %v2057 = vadd.f32 %v1865, %v1993
    %v2058 = vadd.f32 %v1866, %v1994
    %v2059 = vadd.f32 %v1867, %v1995
    %v2060 = vadd.f32 %v1868, %v1996
    %v2061 = vadd.f32 %v1869, %v1997
    %v2062 = vadd.f32 %v1870, %v1998
    %v2063 = vadd.f32 %v1871, %v1999
    %v2064 = vadd.f32 %v1872, %v2000
    %v2065 = vadd.f32 %v1873, %v2001
    %v2066 = vadd.f32 %v1874, %v2002
    %v2067 = vadd.f32 %v1875, %v2003
    %v2068 = vadd.f32 %v1876, %v2004
    %v2069 = vadd.f32 %v1877, %v2005
    %v2070 = vadd.f32 %v1878, %v2006
    %v2071 = vadd.f32 %v1879, %v2007
    %v2072 = vadd.f32 %v1880, %v2008
    %v2073 = vadd.f32 %v1881, %v2009
    %v2074 = vadd.f32 %v1882, %v2010
    %v2075 = vadd.f32 %v1883, %v2011
    %v2076 = vadd.f32 %v1884, %v2012
    %v2077 = vadd.f32 %v1885, %v2013
    %v2078 = vadd.f32 %v1886, %v2014
    %v2079 = vadd.f32 %v1887, %v2015
    %v2080 = vadd.f32 %v1888, %v2016
    %v2081 = vadd.f32 %v1889, %v2017
    %v2082 = vadd.f32 %v1890, %v2018
    %v2083 = vadd.f32 %v1891, %v2019
    %v2084 = vadd.f32 %v1892, %v2020
    %v2085 = vadd.f32 %v1893, %v2021
    %v2086 = vadd.f32 %v1894, %v2022
    %v2087 = vadd.f32 %v1895, %v2023
    %v2088 = vadd.f32 %v1896, %v2024
    %v2089 = vadd.f32 %v1897, %v2025
    %v2090 = vadd.f32 %v1898, %v2026
    %v2091 = vadd.f32 %v1899, %v2027
    %v2092 = vadd.f32 %v1900, %v2028
    %v2093 = vadd.f32 %v1901, %v2029
    %v2094 = vadd.f32 %v1902, %v2030
    %v2095 = vadd.f32 %v1903, %v2031
    %v2096 = vadd.f32 %v1904, %v2032
    %v2097 = vadd.f32 %v1905, %v2033
    %v2098 = vadd.f32 %v1906, %v2034
    %v2099 = vadd.f32 %v1907, %v2035
    %v2100 = vadd.f32 %v1908, %v2036
    %v2101 = vadd.f32 %v1909, %v2037
    %v2102 = vadd.f32 %v1910, %v2038
    %v2103 = vadd.f32 %v1911, %v2039
    %v2104 = vadd.f32 %v1912, %v2040
    %v2105 = vadd.f32 %v1913, %v2041
    %v2106 = vadd.f32 %v1914, %v2042
    %v2107 = vadd.f32 %v1915, %v2043
    %v2108 = vadd.f32 %v1916, %v2044
    %v2109 = vadd.f32 %v1917, %v2045
    %2111 = vset.pattern.permute.xlu0 0
    %2112 = vperm.xlu0 %2111, %v1374
    %v2113 = vpop.permute.xlu0 %2112
    %2116 = vset.pattern.permute.xlu0 0
    %2117 = vperm.xlu0 %2116, %v1375
    %v2118 = vpop.permute.xlu0 %2117
    %2121 = vset.pattern.permute.xlu0 0
    %2122 = vperm.xlu0 %2121, %v1376
    %v2123 = vpop.permute.xlu0 %2122
    %2126 = vset.pattern.permute.xlu0 0
    %2127 = vperm.xlu0 %2126, %v1377
    %v2128 = vpop.permute.xlu0 %2127
    %2131 = vset.pattern.permute.xlu0 0
    %2132 = vperm.xlu0 %2131, %v1378
    %v2133 = vpop.permute.xlu0 %2132
    %2136 = vset.pattern.permute.xlu0 0
    %2137 = vperm.xlu0 %2136, %v1379
    %v2138 = vpop.permute.xlu0 %2137
    %2141 = vset.pattern.permute.xlu0 0
    %2142 = vperm.xlu0 %2141, %v1380
    %v2143 = vpop.permute.xlu0 %2142
    %2146 = vset.pattern.permute.xlu0 0
    %2147 = vperm.xlu0 %2146, %v1381
    %v2148 = vpop.permute.xlu0 %2147
    %2151 = vset.pattern.permute.xlu0 0
    %2152 = vperm.xlu0 %2151, %v1382
    %v2153 = vpop.permute.xlu0 %2152
    %2156 = vset.pattern.permute.xlu0 0
    %2157 = vperm.xlu0 %2156, %v1383
    %v2158 = vpop.permute.xlu0 %2157
    %2161 = vset.pattern.permute.xlu0 0
    %2162 = vperm.xlu0 %2161, %v1384
    %v2163 = vpop.permute.xlu0 %2162
    %2166 = vset.pattern.permute.xlu0 0
    %2167 = vperm.xlu0 %2166, %v1385
    %v2168 = vpop.permute.xlu0 %2167
    %2171 = vset.pattern.permute.xlu0 0
    %2172 = vperm.xlu0 %2171, %v1386
    %v2173 = vpop.permute.xlu0 %2172
    %2176 = vset.pattern.permute.xlu0 0
    %2177 = vperm.xlu0 %2176, %v1387
    %v2178 = vpop.permute.xlu0 %2177
    %2181 = vset.pattern.permute.xlu0 0
    %2182 = vperm.xlu0 %2181, %v1388
    %v2183 = vpop.permute.xlu0 %2182
    %2186 = vset.pattern.permute.xlu0 0
    %2187 = vperm.xlu0 %2186, %v1389
    %v2188 = vpop.permute.xlu0 %2187
    %v2190 = vadd.f32 %v2046, %v2113
    %v2191 = vadd.f32 %v2047, %v2113
    %v2192 = vadd.f32 %v2048, %v2118
    %v2193 = vadd.f32 %v2049, %v2118
    %v2194 = vadd.f32 %v2050, %v2123
    %v2195 = vadd.f32 %v2051, %v2123
    %v2196 = vadd.f32 %v2052, %v2128
    %v2197 = vadd.f32 %v2053, %v2128
    %v2198 = vadd.f32 %v2054, %v2133
    %v2199 = vadd.f32 %v2055, %v2133
    %v2200 = vadd.f32 %v2056, %v2138
    %v2201 = vadd.f32 %v2057, %v2138
    %v2202 = vadd.f32 %v2058, %v2143
    %v2203 = vadd.f32 %v2059, %v2143
    %v2204 = vadd.f32 %v2060, %v2148
    %v2205 = vadd.f32 %v2061, %v2148
    %v2206 = vadd.f32 %v2062, %v2153
    %v2207 = vadd.f32 %v2063, %v2153
    %v2208 = vadd.f32 %v2064, %v2158
    %v2209 = vadd.f32 %v2065, %v2158
    %v2210 = vadd.f32 %v2066, %v2163
    %v2211 = vadd.f32 %v2067, %v2163
    %v2212 = vadd.f32 %v2068, %v2168
    %v2213 = vadd.f32 %v2069, %v2168
    %v2214 = vadd.f32 %v2070, %v2173
    %v2215 = vadd.f32 %v2071, %v2173
    %v2216 = vadd.f32 %v2072, %v2178
    %v2217 = vadd.f32 %v2073, %v2178
    %v2218 = vadd.f32 %v2074, %v2183
    %v2219 = vadd.f32 %v2075, %v2183
    %v2220 = vadd.f32 %v2076, %v2188
    %v2221 = vadd.f32 %v2077, %v2188
    %v2222 = vadd.f32 %v2078, %v2113
    %v2223 = vadd.f32 %v2079, %v2113
    %v2224 = vadd.f32 %v2080, %v2118
    %v2225 = vadd.f32 %v2081, %v2118
    %v2226 = vadd.f32 %v2082, %v2123
    %v2227 = vadd.f32 %v2083, %v2123
    %v2228 = vadd.f32 %v2084, %v2128
    %v2229 = vadd.f32 %v2085, %v2128
    %v2230 = vadd.f32 %v2086, %v2133
    %v2231 = vadd.f32 %v2087, %v2133
    %v2232 = vadd.f32 %v2088, %v2138
    %v2233 = vadd.f32 %v2089, %v2138
    %v2234 = vadd.f32 %v2090, %v2143
    %v2235 = vadd.f32 %v2091, %v2143
    %v2236 = vadd.f32 %v2092, %v2148
    %v2237 = vadd.f32 %v2093, %v2148
    %v2238 = vadd.f32 %v2094, %v2153
    %v2239 = vadd.f32 %v2095, %v2153
    %v2240 = vadd.f32 %v2096, %v2158
    %v2241 = vadd.f32 %v2097, %v2158
    %v2242 = vadd.f32 %v2098, %v2163
    %v2243 = vadd.f32 %v2099, %v2163
    %v2244 = vadd.f32 %v2100, %v2168
    %v2245 = vadd.f32 %v2101, %v2168
    %v2246 = vadd.f32 %v2102, %v2173
    %v2247 = vadd.f32 %v2103, %v2173
    %v2248 = vadd.f32 %v2104, %v2178
    %v2249 = vadd.f32 %v2105, %v2178
    %v2250 = vadd.f32 %v2106, %v2183
    %v2251 = vadd.f32 %v2107, %v2183
    %v2252 = vadd.f32 %v2108, %v2188
    %v2253 = vadd.f32 %v2109, %v2188
    %v2254 = vmax.f32 %v2190, 0.0
    %v2255 = vmax.f32 %v2191, 0.0
    %v2256 = vmax.f32 %v2192, 0.0
    %v2257 = vmax.f32 %v2193, 0.0
    %v2258 = vmax.f32 %v2194, 0.0
    %v2259 = vmax.f32 %v2195, 0.0
    %v2260 = vmax.f32 %v2196, 0.0
    %v2261 = vmax.f32 %v2197, 0.0
    %v2262 = vmax.f32 %v2198, 0.0
    %v2263 = vmax.f32 %v2199, 0.0
    %v2264 = vmax.f32 %v2200, 0.0
    %v2265 = vmax.f32 %v2201, 0.0
    %v2266 = vmax.f32 %v2202, 0.0
    %v2267 = vmax.f32 %v2203, 0.0
    %v2268 = vmax.f32 %v2204, 0.0
    %v2269 = vmax.f32 %v2205, 0.0
    %v2270 = vmax.f32 %v2206, 0.0
    %v2271 = vmax.f32 %v2207, 0.0
    %v2272 = vmax.f32 %v2208, 0.0
    %v2273 = vmax.f32 %v2209, 0.0
    %v2274 = vmax.f32 %v2210, 0.0
    %v2275 = vmax.f32 %v2211, 0.0
    %v2276 = vmax.f32 %v2212, 0.0
    %v2277 = vmax.f32 %v2213, 0.0
    %v2278 = vmax.f32 %v2214, 0.0
    %v2279 = vmax.f32 %v2215, 0.0
    %v2280 = vmax.f32 %v2216, 0.0
    %v2281 = vmax.f32 %v2217, 0.0
    %v2282 = vmax.f32 %v2218, 0.0
    %v2283 = vmax.f32 %v2219, 0.0
    %v2284 = vmax.f32 %v2220, 0.0
    %v2285 = vmax.f32 %v2221, 0.0
    %v2286 = vmax.f32 %v2222, 0.0
    %v2287 = vmax.f32 %v2223, 0.0
    %v2288 = vmax.f32 %v2224, 0.0
    %v2289 = vmax.f32 %v2225, 0.0
    %v2290 = vmax.f32 %v2226, 0.0
    %v2291 = vmax.f32 %v2227, 0.0
    %v2292 = vmax.f32 %v2228, 0.0
    %v2293 = vmax.f32 %v2229, 0.0
    %v2294 = vmax.f32 %v2230, 0.0
    %v2295 = vmax.f32 %v2231, 0.0
    %v2296 = vmax.f32 %v2232, 0.0
    %v2297 = vmax.f32 %v2233, 0.0
    %v2298 = vmax.f32 %v2234, 0.0
    %v2299 = vmax.f32 %v2235, 0.0
    %v2300 = vmax.f32 %v2236, 0.0
    %v2301 = vmax.f32 %v2237, 0.0
    %v2302 = vmax.f32 %v2238, 0.0
    %v2303 = vmax.f32 %v2239, 0.0
    %v2304 = vmax.f32 %v2240, 0.0
    %v2305 = vmax.f32 %v2241, 0.0
    %v2306 = vmax.f32 %v2242, 0.0
    %v2307 = vmax.f32 %v2243, 0.0
    %v2308 = vmax.f32 %v2244, 0.0
    %v2309 = vmax.f32 %v2245, 0.0
    %v2310 = vmax.f32 %v2246, 0.0
    %v2311 = vmax.f32 %v2247, 0.0
    %v2312 = vmax.f32 %v2248, 0.0
    %v2313 = vmax.f32 %v2249, 0.0
    %v2314 = vmax.f32 %v2250, 0.0
    %v2315 = vmax.f32 %v2251, 0.0
    %v2316 = vmax.f32 %v2252, 0.0
    %v2317 = vmax.f32 %v2253, 0.0
    %v2318 = vadd.f32 %v2254, %v2255
    %2319 = vadd.xlane.f32.xlu0 %v2318
    %v2320 = vpop.xlane.xlu0 %2319
    %v2321 = vadd.f32 %v2256, %v2257
    %2322 = vadd.xlane.f32.xlu0 %v2321
    %v2323 = vpop.xlane.xlu0 %2322
    %v2324 = vadd.f32 %v2258, %v2259
    %2325 = vadd.xlane.f32.xlu0 %v2324
    %v2326 = vpop.xlane.xlu0 %2325
    %v2327 = vadd.f32 %v2260, %v2261
    %2328 = vadd.xlane.f32.xlu0 %v2327
    %v2329 = vpop.xlane.xlu0 %2328
    %v2330 = vadd.f32 %v2262, %v2263
    %2331 = vadd.xlane.f32.xlu0 %v2330
    %v2332 = vpop.xlane.xlu0 %2331
    %v2333 = vadd.f32 %v2264, %v2265
    %2334 = vadd.xlane.f32.xlu0 %v2333
    %v2335 = vpop.xlane.xlu0 %2334
    %v2336 = vadd.f32 %v2266, %v2267
    %2337 = vadd.xlane.f32.xlu0 %v2336
    %v2338 = vpop.xlane.xlu0 %2337
    %v2339 = vadd.f32 %v2268, %v2269
    %2340 = vadd.xlane.f32.xlu0 %v2339
    %v2341 = vpop.xlane.xlu0 %2340
    %v2342 = vadd.f32 %v2270, %v2271
    %2343 = vadd.xlane.f32.xlu0 %v2342
    %v2344 = vpop.xlane.xlu0 %2343
    %v2345 = vadd.f32 %v2272, %v2273
    %2346 = vadd.xlane.f32.xlu0 %v2345
    %v2347 = vpop.xlane.xlu0 %2346
    %v2348 = vadd.f32 %v2274, %v2275
    %2349 = vadd.xlane.f32.xlu0 %v2348
    %v2350 = vpop.xlane.xlu0 %2349
    %v2351 = vadd.f32 %v2276, %v2277
    %2352 = vadd.xlane.f32.xlu0 %v2351
    %v2353 = vpop.xlane.xlu0 %2352
    %v2354 = vadd.f32 %v2278, %v2279
    %2355 = vadd.xlane.f32.xlu0 %v2354
    %v2356 = vpop.xlane.xlu0 %2355
    %v2357 = vadd.f32 %v2280, %v2281
    %2358 = vadd.xlane.f32.xlu0 %v2357
    %v2359 = vpop.xlane.xlu0 %2358
    %v2360 = vadd.f32 %v2282, %v2283
    %2361 = vadd.xlane.f32.xlu0 %v2360
    %v2362 = vpop.xlane.xlu0 %2361
    %v2363 = vadd.f32 %v2284, %v2285
    %2364 = vadd.xlane.f32.xlu0 %v2363
    %v2365 = vpop.xlane.xlu0 %2364
    %v2366 = vadd.f32 %v2286, %v2287
    %2367 = vadd.xlane.f32.xlu0 %v2366
    %v2368 = vpop.xlane.xlu0 %2367
    %v2369 = vadd.f32 %v2288, %v2289
    %2370 = vadd.xlane.f32.xlu0 %v2369
    %v2371 = vpop.xlane.xlu0 %2370
    %v2372 = vadd.f32 %v2290, %v2291
    %2373 = vadd.xlane.f32.xlu0 %v2372
    %v2374 = vpop.xlane.xlu0 %2373
    %v2375 = vadd.f32 %v2292, %v2293
    %2376 = vadd.xlane.f32.xlu0 %v2375
    %v2377 = vpop.xlane.xlu0 %2376
    %v2378 = vadd.f32 %v2294, %v2295
    %2379 = vadd.xlane.f32.xlu0 %v2378
    %v2380 = vpop.xlane.xlu0 %2379
    %v2381 = vadd.f32 %v2296, %v2297
    %2382 = vadd.xlane.f32.xlu0 %v2381
    %v2383 = vpop.xlane.xlu0 %2382
    %v2384 = vadd.f32 %v2298, %v2299
    %2385 = vadd.xlane.f32.xlu0 %v2384
    %v2386 = vpop.xlane.xlu0 %2385
    %v2387 = vadd.f32 %v2300, %v2301
    %2388 = vadd.xlane.f32.xlu0 %v2387
    %v2389 = vpop.xlane.xlu0 %2388
    %v2390 = vadd.f32 %v2302, %v2303
    %2391 = vadd.xlane.f32.xlu0 %v2390
    %v2392 = vpop.xlane.xlu0 %2391
    %v2393 = vadd.f32 %v2304, %v2305
    %2394 = vadd.xlane.f32.xlu0 %v2393
    %v2395 = vpop.xlane.xlu0 %2394
    %v2396 = vadd.f32 %v2306, %v2307
    %2397 = vadd.xlane.f32.xlu0 %v2396
    %v2398 = vpop.xlane.xlu0 %2397
    %v2399 = vadd.f32 %v2308, %v2309
    %2400 = vadd.xlane.f32.xlu0 %v2399
    %v2401 = vpop.xlane.xlu0 %2400
    %v2402 = vadd.f32 %v2310, %v2311
    %2403 = vadd.xlane.f32.xlu0 %v2402
    %v2404 = vpop.xlane.xlu0 %2403
    %v2405 = vadd.f32 %v2312, %v2313
    %2406 = vadd.xlane.f32.xlu0 %v2405
    %v2407 = vpop.xlane.xlu0 %2406
    %v2408 = vadd.f32 %v2314, %v2315
    %2409 = vadd.xlane.f32.xlu0 %v2408
    %v2410 = vpop.xlane.xlu0 %2409
    %v2411 = vadd.f32 %v2316, %v2317
    %2412 = vadd.xlane.f32.xlu0 %v2411
    %v2413 = vpop.xlane.xlu0 %2412
    %s2414 = scalar_lea.vmem %s3, 128
    %v2415 = vld [vmem:[%s2414] sm:$0xff]
    %v2416 = vld [vmem:[%s2414 + $0x8] sm:$0xff]
    %v2417 = vld [vmem:[%s2414 + $0x10] sm:$0xff]
    %v2418 = vld [vmem:[%s2414 + $0x18] sm:$0xff]
    %v2419 = vld [vmem:[%s2414 + $0x20] sm:$0xff]
    %v2420 = vld [vmem:[%s2414 + $0x28] sm:$0xff]
    %v2421 = vld [vmem:[%s2414 + $0x30] sm:$0xff]
    %v2422 = vld [vmem:[%s2414 + $0x38] sm:$0xff]
    %v2423 = vld [vmem:[%s2414 + $0x40] sm:$0xff]
    %v2424 = vld [vmem:[%s2414 + $0x48] sm:$0xff]
    %v2425 = vld [vmem:[%s2414 + $0x50] sm:$0xff]
    %v2426 = vld [vmem:[%s2414 + $0x58] sm:$0xff]
    %v2427 = vld [vmem:[%s2414 + $0x60] sm:$0xff]
    %v2428 = vld [vmem:[%s2414 + $0x68] sm:$0xff]
    %v2429 = vld [vmem:[%s2414 + $0x70] sm:$0xff]
    %v2430 = vld [vmem:[%s2414 + $0x78] sm:$0xff]
    %v2431 = vmul.f32 %v2320, %v2415
    %v2432 = vmul.f32 %v2323, %v2416
    %v2433 = vmul.f32 %v2326, %v2417
    %v2434 = vmul.f32 %v2329, %v2418
    %v2435 = vmul.f32 %v2332, %v2419
    %v2436 = vmul.f32 %v2335, %v2420
    %v2437 = vmul.f32 %v2338, %v2421
    %v2438 = vmul.f32 %v2341, %v2422
    %v2439 = vmul.f32 %v2344, %v2423
    %v2440 = vmul.f32 %v2347, %v2424
    %v2441 = vmul.f32 %v2350, %v2425
    %v2442 = vmul.f32 %v2353, %v2426
    %v2443 = vmul.f32 %v2356, %v2427
    %v2444 = vmul.f32 %v2359, %v2428
    %v2445 = vmul.f32 %v2362, %v2429
    %v2446 = vmul.f32 %v2365, %v2430
    %v2447 = vmul.f32 %v2368, %v2415
    %v2448 = vmul.f32 %v2371, %v2416
    %v2449 = vmul.f32 %v2374, %v2417
    %v2450 = vmul.f32 %v2377, %v2418
    %v2451 = vmul.f32 %v2380, %v2419
    %v2452 = vmul.f32 %v2383, %v2420
    %v2453 = vmul.f32 %v2386, %v2421
    %v2454 = vmul.f32 %v2389, %v2422
    %v2455 = vmul.f32 %v2392, %v2423
    %v2456 = vmul.f32 %v2395, %v2424
    %v2457 = vmul.f32 %v2398, %v2425
    %v2458 = vmul.f32 %v2401, %v2426
    %v2459 = vmul.f32 %v2404, %v2427
    %v2460 = vmul.f32 %v2407, %v2428
    %v2461 = vmul.f32 %v2410, %v2429
    %v2462 = vmul.f32 %v2413, %v2430
    %v2463 = vsel %vm1279, %v2431, 0.0
    %v2464 = vsel %vm1279, %v2432, 0.0
    %v2465 = vadd.f32 %v2463, %v2464
    %v2466 = vsel %vm1279, %v2433, 0.0
    %v2467 = vadd.f32 %v2465, %v2466
    %v2468 = vsel %vm1279, %v2434, 0.0
    %v2469 = vadd.f32 %v2467, %v2468
    %v2470 = vsel %vm1279, %v2435, 0.0
    %v2471 = vadd.f32 %v2469, %v2470
    %v2472 = vsel %vm1279, %v2436, 0.0
    %v2473 = vadd.f32 %v2471, %v2472
    %v2474 = vsel %vm1279, %v2437, 0.0
    %v2475 = vadd.f32 %v2473, %v2474
    %v2476 = vsel %vm1279, %v2438, 0.0
    %v2477 = vadd.f32 %v2475, %v2476
    %v2478 = vsel %vm1279, %v2439, 0.0
    %v2479 = vadd.f32 %v2477, %v2478
    %v2480 = vsel %vm1279, %v2440, 0.0
    %v2481 = vadd.f32 %v2479, %v2480
    %v2482 = vsel %vm1279, %v2441, 0.0
    %v2483 = vadd.f32 %v2481, %v2482
    %v2484 = vsel %vm1279, %v2442, 0.0
    %v2485 = vadd.f32 %v2483, %v2484
    %v2486 = vsel %vm1279, %v2443, 0.0
    %v2487 = vadd.f32 %v2485, %v2486
    %v2488 = vsel %vm1279, %v2444, 0.0
    %v2489 = vadd.f32 %v2487, %v2488
    %v2490 = vsel %vm1279, %v2445, 0.0
    %v2491 = vadd.f32 %v2489, %v2490
    %v2492 = vsel %vm1279, %v2446, 0.0
    %v2493 = vadd.f32 %v2491, %v2492
    %v2494 = vrot.slane %v2493, 4
    %v2495 = vadd.f32 %v2493, %v2494
    %v2496 = vrot.slane %v2495, 2
    %v2497 = vadd.f32 %v2495, %v2496
    %v2498 = vrot.slane %v2497, 1
    %v2499 = vadd.f32 %v2497, %v2498
    %v2500 = vsel %vm1279, %v2447, 0.0
    %v2501 = vsel %vm1279, %v2448, 0.0
    %v2502 = vadd.f32 %v2500, %v2501
    %v2503 = vsel %vm1279, %v2449, 0.0
    %v2504 = vadd.f32 %v2502, %v2503
    %v2505 = vsel %vm1279, %v2450, 0.0
    %v2506 = vadd.f32 %v2504, %v2505
    %v2507 = vsel %vm1279, %v2451, 0.0
    %v2508 = vadd.f32 %v2506, %v2507
    %v2509 = vsel %vm1279, %v2452, 0.0
    %v2510 = vadd.f32 %v2508, %v2509
    %v2511 = vsel %vm1279, %v2453, 0.0
    %v2512 = vadd.f32 %v2510, %v2511
    %v2513 = vsel %vm1279, %v2454, 0.0
    %v2514 = vadd.f32 %v2512, %v2513
    %v2515 = vsel %vm1279, %v2455, 0.0
    %v2516 = vadd.f32 %v2514, %v2515
    %v2517 = vsel %vm1279, %v2456, 0.0
    %v2518 = vadd.f32 %v2516, %v2517
    %v2519 = vsel %vm1279, %v2457, 0.0
    %v2520 = vadd.f32 %v2518, %v2519
    %v2521 = vsel %vm1279, %v2458, 0.0
    %v2522 = vadd.f32 %v2520, %v2521
    %v2523 = vsel %vm1279, %v2459, 0.0
    %v2524 = vadd.f32 %v2522, %v2523
    %v2525 = vsel %vm1279, %v2460, 0.0
    %v2526 = vadd.f32 %v2524, %v2525
    %v2527 = vsel %vm1279, %v2461, 0.0
    %v2528 = vadd.f32 %v2526, %v2527
    %v2529 = vsel %vm1279, %v2462, 0.0
    %v2530 = vadd.f32 %v2528, %v2529
    %v2531 = vrot.slane %v2530, 4
    %v2532 = vadd.f32 %v2530, %v2531
    %v2533 = vrot.slane %v2532, 2
    %v2534 = vadd.f32 %v2532, %v2533
    %v2535 = vrot.slane %v2534, 1
    %v2536 = vadd.f32 %v2534, %v2535
    %v2537 = vadd.f32 %v1354, %v2499
    %v2538 = vadd.f32 %v1355, %v2536
    %s2539 = scalar_lea.vmem %s1, 256
    %v2540 = vld [vmem:[%s2539] sm:$0xff]
    %v2541 = vld [vmem:[%s2539 + $0x8] sm:$0xff]
    %v2542 = vld [vmem:[%s2539 + $0x10] sm:$0xff]
    %v2543 = vld [vmem:[%s2539 + $0x18] sm:$0xff]
    %v2544 = vld [vmem:[%s2539 + $0x20] sm:$0xff]
    %v2545 = vld [vmem:[%s2539 + $0x28] sm:$0xff]
    %v2546 = vld [vmem:[%s2539 + $0x30] sm:$0xff]
    %v2547 = vld [vmem:[%s2539 + $0x38] sm:$0xff]
    %v2548 = vld [vmem:[%s2539 + $0x40] sm:$0xff]
    %v2549 = vld [vmem:[%s2539 + $0x48] sm:$0xff]
    %v2550 = vld [vmem:[%s2539 + $0x50] sm:$0xff]
    %v2551 = vld [vmem:[%s2539 + $0x58] sm:$0xff]
    %v2552 = vld [vmem:[%s2539 + $0x60] sm:$0xff]
    %v2553 = vld [vmem:[%s2539 + $0x68] sm:$0xff]
    %v2554 = vld [vmem:[%s2539 + $0x70] sm:$0xff]
    %v2555 = vld [vmem:[%s2539 + $0x78] sm:$0xff]
    %s2556 = scalar_lea.vmem %s2, 256
    %v2557 = vld [vmem:[%s2556] sm:$0xff]
    %v2558 = vld [vmem:[%s2556 + $0x8] sm:$0xff]
    %v2559 = vld [vmem:[%s2556 + $0x10] sm:$0xff]
    %v2560 = vld [vmem:[%s2556 + $0x18] sm:$0xff]
    %v2561 = vld [vmem:[%s2556 + $0x20] sm:$0xff]
    %v2562 = vld [vmem:[%s2556 + $0x28] sm:$0xff]
    %v2563 = vld [vmem:[%s2556 + $0x30] sm:$0xff]
    %v2564 = vld [vmem:[%s2556 + $0x38] sm:$0xff]
    %v2565 = vld [vmem:[%s2556 + $0x40] sm:$0xff]
    %v2566 = vld [vmem:[%s2556 + $0x48] sm:$0xff]
    %v2567 = vld [vmem:[%s2556 + $0x50] sm:$0xff]
    %v2568 = vld [vmem:[%s2556 + $0x58] sm:$0xff]
    %v2569 = vld [vmem:[%s2556 + $0x60] sm:$0xff]
    %v2570 = vld [vmem:[%s2556 + $0x68] sm:$0xff]
    %v2571 = vld [vmem:[%s2556 + $0x70] sm:$0xff]
    %v2572 = vld [vmem:[%s2556 + $0x78] sm:$0xff]
    %2574 = vset.pattern.permute.xlu0 0
    %2575 = vperm.xlu0 %2574, %v2540
    %v2576 = vpop.permute.xlu0 %2575
    %2579 = vset.pattern.permute.xlu0 0
    %2580 = vperm.xlu0 %2579, %v2541
    %v2581 = vpop.permute.xlu0 %2580
    %2584 = vset.pattern.permute.xlu0 0
    %2585 = vperm.xlu0 %2584, %v2542
    %v2586 = vpop.permute.xlu0 %2585
    %2589 = vset.pattern.permute.xlu0 0
    %2590 = vperm.xlu0 %2589, %v2543
    %v2591 = vpop.permute.xlu0 %2590
    %2594 = vset.pattern.permute.xlu0 0
    %2595 = vperm.xlu0 %2594, %v2544
    %v2596 = vpop.permute.xlu0 %2595
    %2599 = vset.pattern.permute.xlu0 0
    %2600 = vperm.xlu0 %2599, %v2545
    %v2601 = vpop.permute.xlu0 %2600
    %2604 = vset.pattern.permute.xlu0 0
    %2605 = vperm.xlu0 %2604, %v2546
    %v2606 = vpop.permute.xlu0 %2605
    %2609 = vset.pattern.permute.xlu0 0
    %2610 = vperm.xlu0 %2609, %v2547
    %v2611 = vpop.permute.xlu0 %2610
    %2614 = vset.pattern.permute.xlu0 0
    %2615 = vperm.xlu0 %2614, %v2548
    %v2616 = vpop.permute.xlu0 %2615
    %2619 = vset.pattern.permute.xlu0 0
    %2620 = vperm.xlu0 %2619, %v2549
    %v2621 = vpop.permute.xlu0 %2620
    %2624 = vset.pattern.permute.xlu0 0
    %2625 = vperm.xlu0 %2624, %v2550
    %v2626 = vpop.permute.xlu0 %2625
    %2629 = vset.pattern.permute.xlu0 0
    %2630 = vperm.xlu0 %2629, %v2551
    %v2631 = vpop.permute.xlu0 %2630
    %2634 = vset.pattern.permute.xlu0 0
    %2635 = vperm.xlu0 %2634, %v2552
    %v2636 = vpop.permute.xlu0 %2635
    %2639 = vset.pattern.permute.xlu0 0
    %2640 = vperm.xlu0 %2639, %v2553
    %v2641 = vpop.permute.xlu0 %2640
    %2644 = vset.pattern.permute.xlu0 0
    %2645 = vperm.xlu0 %2644, %v2554
    %v2646 = vpop.permute.xlu0 %2645
    %2649 = vset.pattern.permute.xlu0 0
    %2650 = vperm.xlu0 %2649, %v2555
    %v2651 = vpop.permute.xlu0 %2650
    %v2653 = vmul.f32 %v2576, %v166
    %v2654 = vmul.f32 %v2576, %v170
    %v2655 = vmul.f32 %v2581, %v166
    %v2656 = vmul.f32 %v2581, %v170
    %v2657 = vmul.f32 %v2586, %v166
    %v2658 = vmul.f32 %v2586, %v170
    %v2659 = vmul.f32 %v2591, %v166
    %v2660 = vmul.f32 %v2591, %v170
    %v2661 = vmul.f32 %v2596, %v166
    %v2662 = vmul.f32 %v2596, %v170
    %v2663 = vmul.f32 %v2601, %v166
    %v2664 = vmul.f32 %v2601, %v170
    %v2665 = vmul.f32 %v2606, %v166
    %v2666 = vmul.f32 %v2606, %v170
    %v2667 = vmul.f32 %v2611, %v166
    %v2668 = vmul.f32 %v2611, %v170
    %v2669 = vmul.f32 %v2616, %v166
    %v2670 = vmul.f32 %v2616, %v170
    %v2671 = vmul.f32 %v2621, %v166
    %v2672 = vmul.f32 %v2621, %v170
    %v2673 = vmul.f32 %v2626, %v166
    %v2674 = vmul.f32 %v2626, %v170
    %v2675 = vmul.f32 %v2631, %v166
    %v2676 = vmul.f32 %v2631, %v170
    %v2677 = vmul.f32 %v2636, %v166
    %v2678 = vmul.f32 %v2636, %v170
    %v2679 = vmul.f32 %v2641, %v166
    %v2680 = vmul.f32 %v2641, %v170
    %v2681 = vmul.f32 %v2646, %v166
    %v2682 = vmul.f32 %v2646, %v170
    %v2683 = vmul.f32 %v2651, %v166
    %v2684 = vmul.f32 %v2651, %v170
    %v2685 = vmul.f32 %v2576, %v174
    %v2686 = vmul.f32 %v2576, %v178
    %v2687 = vmul.f32 %v2581, %v174
    %v2688 = vmul.f32 %v2581, %v178
    %v2689 = vmul.f32 %v2586, %v174
    %v2690 = vmul.f32 %v2586, %v178
    %v2691 = vmul.f32 %v2591, %v174
    %v2692 = vmul.f32 %v2591, %v178
    %v2693 = vmul.f32 %v2596, %v174
    %v2694 = vmul.f32 %v2596, %v178
    %v2695 = vmul.f32 %v2601, %v174
    %v2696 = vmul.f32 %v2601, %v178
    %v2697 = vmul.f32 %v2606, %v174
    %v2698 = vmul.f32 %v2606, %v178
    %v2699 = vmul.f32 %v2611, %v174
    %v2700 = vmul.f32 %v2611, %v178
    %v2701 = vmul.f32 %v2616, %v174
    %v2702 = vmul.f32 %v2616, %v178
    %v2703 = vmul.f32 %v2621, %v174
    %v2704 = vmul.f32 %v2621, %v178
    %v2705 = vmul.f32 %v2626, %v174
    %v2706 = vmul.f32 %v2626, %v178
    %v2707 = vmul.f32 %v2631, %v174
    %v2708 = vmul.f32 %v2631, %v178
    %v2709 = vmul.f32 %v2636, %v174
    %v2710 = vmul.f32 %v2636, %v178
    %v2711 = vmul.f32 %v2641, %v174
    %v2712 = vmul.f32 %v2641, %v178
    %v2713 = vmul.f32 %v2646, %v174
    %v2714 = vmul.f32 %v2646, %v178
    %v2715 = vmul.f32 %v2651, %v174
    %v2716 = vmul.f32 %v2651, %v178
    %2717 = vset.pattern.permute.xlu0 1
    %2718 = vperm.xlu0 %2717, %v2540
    %v2719 = vpop.permute.xlu0 %2718
    %2721 = vset.pattern.permute.xlu0 1
    %2722 = vperm.xlu0 %2721, %v2541
    %v2723 = vpop.permute.xlu0 %2722
    %2725 = vset.pattern.permute.xlu0 1
    %2726 = vperm.xlu0 %2725, %v2542
    %v2727 = vpop.permute.xlu0 %2726
    %2729 = vset.pattern.permute.xlu0 1
    %2730 = vperm.xlu0 %2729, %v2543
    %v2731 = vpop.permute.xlu0 %2730
    %2733 = vset.pattern.permute.xlu0 1
    %2734 = vperm.xlu0 %2733, %v2544
    %v2735 = vpop.permute.xlu0 %2734
    %2737 = vset.pattern.permute.xlu0 1
    %2738 = vperm.xlu0 %2737, %v2545
    %v2739 = vpop.permute.xlu0 %2738
    %2741 = vset.pattern.permute.xlu0 1
    %2742 = vperm.xlu0 %2741, %v2546
    %v2743 = vpop.permute.xlu0 %2742
    %2745 = vset.pattern.permute.xlu0 1
    %2746 = vperm.xlu0 %2745, %v2547
    %v2747 = vpop.permute.xlu0 %2746
    %2749 = vset.pattern.permute.xlu0 1
    %2750 = vperm.xlu0 %2749, %v2548
    %v2751 = vpop.permute.xlu0 %2750
    %2753 = vset.pattern.permute.xlu0 1
    %2754 = vperm.xlu0 %2753, %v2549
    %v2755 = vpop.permute.xlu0 %2754
    %2757 = vset.pattern.permute.xlu0 1
    %2758 = vperm.xlu0 %2757, %v2550
    %v2759 = vpop.permute.xlu0 %2758
    %2761 = vset.pattern.permute.xlu0 1
    %2762 = vperm.xlu0 %2761, %v2551
    %v2763 = vpop.permute.xlu0 %2762
    %2765 = vset.pattern.permute.xlu0 1
    %2766 = vperm.xlu0 %2765, %v2552
    %v2767 = vpop.permute.xlu0 %2766
    %2769 = vset.pattern.permute.xlu0 1
    %2770 = vperm.xlu0 %2769, %v2553
    %v2771 = vpop.permute.xlu0 %2770
    %2773 = vset.pattern.permute.xlu0 1
    %2774 = vperm.xlu0 %2773, %v2554
    %v2775 = vpop.permute.xlu0 %2774
    %2777 = vset.pattern.permute.xlu0 1
    %2778 = vperm.xlu0 %2777, %v2555
    %v2779 = vpop.permute.xlu0 %2778
    %v2781 = vmul.f32 %v2719, %v330
    %v2782 = vmul.f32 %v2719, %v334
    %v2783 = vmul.f32 %v2723, %v330
    %v2784 = vmul.f32 %v2723, %v334
    %v2785 = vmul.f32 %v2727, %v330
    %v2786 = vmul.f32 %v2727, %v334
    %v2787 = vmul.f32 %v2731, %v330
    %v2788 = vmul.f32 %v2731, %v334
    %v2789 = vmul.f32 %v2735, %v330
    %v2790 = vmul.f32 %v2735, %v334
    %v2791 = vmul.f32 %v2739, %v330
    %v2792 = vmul.f32 %v2739, %v334
    %v2793 = vmul.f32 %v2743, %v330
    %v2794 = vmul.f32 %v2743, %v334
    %v2795 = vmul.f32 %v2747, %v330
    %v2796 = vmul.f32 %v2747, %v334
    %v2797 = vmul.f32 %v2751, %v330
    %v2798 = vmul.f32 %v2751, %v334
    %v2799 = vmul.f32 %v2755, %v330
    %v2800 = vmul.f32 %v2755, %v334
    %v2801 = vmul.f32 %v2759, %v330
    %v2802 = vmul.f32 %v2759, %v334
    %v2803 = vmul.f32 %v2763, %v330
    %v2804 = vmul.f32 %v2763, %v334
    %v2805 = vmul.f32 %v2767, %v330
    %v2806 = vmul.f32 %v2767, %v334
    %v2807 = vmul.f32 %v2771, %v330
    %v2808 = vmul.f32 %v2771, %v334
    %v2809 = vmul.f32 %v2775, %v330
    %v2810 = vmul.f32 %v2775, %v334
    %v2811 = vmul.f32 %v2779, %v330
    %v2812 = vmul.f32 %v2779, %v334
    %v2813 = vmul.f32 %v2719, %v338
    %v2814 = vmul.f32 %v2719, %v342
    %v2815 = vmul.f32 %v2723, %v338
    %v2816 = vmul.f32 %v2723, %v342
    %v2817 = vmul.f32 %v2727, %v338
    %v2818 = vmul.f32 %v2727, %v342
    %v2819 = vmul.f32 %v2731, %v338
    %v2820 = vmul.f32 %v2731, %v342
    %v2821 = vmul.f32 %v2735, %v338
    %v2822 = vmul.f32 %v2735, %v342
    %v2823 = vmul.f32 %v2739, %v338
    %v2824 = vmul.f32 %v2739, %v342
    %v2825 = vmul.f32 %v2743, %v338
    %v2826 = vmul.f32 %v2743, %v342
    %v2827 = vmul.f32 %v2747, %v338
    %v2828 = vmul.f32 %v2747, %v342
    %v2829 = vmul.f32 %v2751, %v338
    %v2830 = vmul.f32 %v2751, %v342
    %v2831 = vmul.f32 %v2755, %v338
    %v2832 = vmul.f32 %v2755, %v342
    %v2833 = vmul.f32 %v2759, %v338
    %v2834 = vmul.f32 %v2759, %v342
    %v2835 = vmul.f32 %v2763, %v338
    %v2836 = vmul.f32 %v2763, %v342
    %v2837 = vmul.f32 %v2767, %v338
    %v2838 = vmul.f32 %v2767, %v342
    %v2839 = vmul.f32 %v2771, %v338
    %v2840 = vmul.f32 %v2771, %v342
    %v2841 = vmul.f32 %v2775, %v338
    %v2842 = vmul.f32 %v2775, %v342
    %v2843 = vmul.f32 %v2779, %v338
    %v2844 = vmul.f32 %v2779, %v342
    %v2845 = vadd.f32 %v2653, %v2781
    %v2846 = vadd.f32 %v2654, %v2782
    %v2847 = vadd.f32 %v2655, %v2783
    %v2848 = vadd.f32 %v2656, %v2784
    %v2849 = vadd.f32 %v2657, %v2785
    %v2850 = vadd.f32 %v2658, %v2786
    %v2851 = vadd.f32 %v2659, %v2787
    %v2852 = vadd.f32 %v2660, %v2788
    %v2853 = vadd.f32 %v2661, %v2789
    %v2854 = vadd.f32 %v2662, %v2790
    %v2855 = vadd.f32 %v2663, %v2791
    %v2856 = vadd.f32 %v2664, %v2792
    %v2857 = vadd.f32 %v2665, %v2793
    %v2858 = vadd.f32 %v2666, %v2794
    %v2859 = vadd.f32 %v2667, %v2795
    %v2860 = vadd.f32 %v2668, %v2796
    %v2861 = vadd.f32 %v2669, %v2797
    %v2862 = vadd.f32 %v2670, %v2798
    %v2863 = vadd.f32 %v2671, %v2799
    %v2864 = vadd.f32 %v2672, %v2800
    %v2865 = vadd.f32 %v2673, %v2801
    %v2866 = vadd.f32 %v2674, %v2802
    %v2867 = vadd.f32 %v2675, %v2803
    %v2868 = vadd.f32 %v2676, %v2804
    %v2869 = vadd.f32 %v2677, %v2805
    %v2870 = vadd.f32 %v2678, %v2806
    %v2871 = vadd.f32 %v2679, %v2807
    %v2872 = vadd.f32 %v2680, %v2808
    %v2873 = vadd.f32 %v2681, %v2809
    %v2874 = vadd.f32 %v2682, %v2810
    %v2875 = vadd.f32 %v2683, %v2811
    %v2876 = vadd.f32 %v2684, %v2812
    %v2877 = vadd.f32 %v2685, %v2813
    %v2878 = vadd.f32 %v2686, %v2814
    %v2879 = vadd.f32 %v2687, %v2815
    %v2880 = vadd.f32 %v2688, %v2816
    %v2881 = vadd.f32 %v2689, %v2817
    %v2882 = vadd.f32 %v2690, %v2818
    %v2883 = vadd.f32 %v2691, %v2819
    %v2884 = vadd.f32 %v2692, %v2820
    %v2885 = vadd.f32 %v2693, %v2821
    %v2886 = vadd.f32 %v2694, %v2822
    %v2887 = vadd.f32 %v2695, %v2823
    %v2888 = vadd.f32 %v2696, %v2824
    %v2889 = vadd.f32 %v2697, %v2825
    %v2890 = vadd.f32 %v2698, %v2826
    %v2891 = vadd.f32 %v2699, %v2827
    %v2892 = vadd.f32 %v2700, %v2828
    %v2893 = vadd.f32 %v2701, %v2829
    %v2894 = vadd.f32 %v2702, %v2830
    %v2895 = vadd.f32 %v2703, %v2831
    %v2896 = vadd.f32 %v2704, %v2832
    %v2897 = vadd.f32 %v2705, %v2833
    %v2898 = vadd.f32 %v2706, %v2834
    %v2899 = vadd.f32 %v2707, %v2835
    %v2900 = vadd.f32 %v2708, %v2836
    %v2901 = vadd.f32 %v2709, %v2837
    %v2902 = vadd.f32 %v2710, %v2838
    %v2903 = vadd.f32 %v2711, %v2839
    %v2904 = vadd.f32 %v2712, %v2840
    %v2905 = vadd.f32 %v2713, %v2841
    %v2906 = vadd.f32 %v2714, %v2842
    %v2907 = vadd.f32 %v2715, %v2843
    %v2908 = vadd.f32 %v2716, %v2844
    %2909 = vset.pattern.permute.xlu0 2
    %2910 = vperm.xlu0 %2909, %v2540
    %v2911 = vpop.permute.xlu0 %2910
    %2913 = vset.pattern.permute.xlu0 2
    %2914 = vperm.xlu0 %2913, %v2541
    %v2915 = vpop.permute.xlu0 %2914
    %2917 = vset.pattern.permute.xlu0 2
    %2918 = vperm.xlu0 %2917, %v2542
    %v2919 = vpop.permute.xlu0 %2918
    %2921 = vset.pattern.permute.xlu0 2
    %2922 = vperm.xlu0 %2921, %v2543
    %v2923 = vpop.permute.xlu0 %2922
    %2925 = vset.pattern.permute.xlu0 2
    %2926 = vperm.xlu0 %2925, %v2544
    %v2927 = vpop.permute.xlu0 %2926
    %2929 = vset.pattern.permute.xlu0 2
    %2930 = vperm.xlu0 %2929, %v2545
    %v2931 = vpop.permute.xlu0 %2930
    %2933 = vset.pattern.permute.xlu0 2
    %2934 = vperm.xlu0 %2933, %v2546
    %v2935 = vpop.permute.xlu0 %2934
    %2937 = vset.pattern.permute.xlu0 2
    %2938 = vperm.xlu0 %2937, %v2547
    %v2939 = vpop.permute.xlu0 %2938
    %2941 = vset.pattern.permute.xlu0 2
    %2942 = vperm.xlu0 %2941, %v2548
    %v2943 = vpop.permute.xlu0 %2942
    %2945 = vset.pattern.permute.xlu0 2
    %2946 = vperm.xlu0 %2945, %v2549
    %v2947 = vpop.permute.xlu0 %2946
    %2949 = vset.pattern.permute.xlu0 2
    %2950 = vperm.xlu0 %2949, %v2550
    %v2951 = vpop.permute.xlu0 %2950
    %2953 = vset.pattern.permute.xlu0 2
    %2954 = vperm.xlu0 %2953, %v2551
    %v2955 = vpop.permute.xlu0 %2954
    %2957 = vset.pattern.permute.xlu0 2
    %2958 = vperm.xlu0 %2957, %v2552
    %v2959 = vpop.permute.xlu0 %2958
    %2961 = vset.pattern.permute.xlu0 2
    %2962 = vperm.xlu0 %2961, %v2553
    %v2963 = vpop.permute.xlu0 %2962
    %2965 = vset.pattern.permute.xlu0 2
    %2966 = vperm.xlu0 %2965, %v2554
    %v2967 = vpop.permute.xlu0 %2966
    %2969 = vset.pattern.permute.xlu0 2
    %2970 = vperm.xlu0 %2969, %v2555
    %v2971 = vpop.permute.xlu0 %2970
    %v2973 = vmul.f32 %v2911, %v558
    %v2974 = vmul.f32 %v2911, %v562
    %v2975 = vmul.f32 %v2915, %v558
    %v2976 = vmul.f32 %v2915, %v562
    %v2977 = vmul.f32 %v2919, %v558
    %v2978 = vmul.f32 %v2919, %v562
    %v2979 = vmul.f32 %v2923, %v558
    %v2980 = vmul.f32 %v2923, %v562
    %v2981 = vmul.f32 %v2927, %v558
    %v2982 = vmul.f32 %v2927, %v562
    %v2983 = vmul.f32 %v2931, %v558
    %v2984 = vmul.f32 %v2931, %v562
    %v2985 = vmul.f32 %v2935, %v558
    %v2986 = vmul.f32 %v2935, %v562
    %v2987 = vmul.f32 %v2939, %v558
    %v2988 = vmul.f32 %v2939, %v562
    %v2989 = vmul.f32 %v2943, %v558
    %v2990 = vmul.f32 %v2943, %v562
    %v2991 = vmul.f32 %v2947, %v558
    %v2992 = vmul.f32 %v2947, %v562
    %v2993 = vmul.f32 %v2951, %v558
    %v2994 = vmul.f32 %v2951, %v562
    %v2995 = vmul.f32 %v2955, %v558
    %v2996 = vmul.f32 %v2955, %v562
    %v2997 = vmul.f32 %v2959, %v558
    %v2998 = vmul.f32 %v2959, %v562
    %v2999 = vmul.f32 %v2963, %v558
    %v3000 = vmul.f32 %v2963, %v562
    %v3001 = vmul.f32 %v2967, %v558
    %v3002 = vmul.f32 %v2967, %v562
    %v3003 = vmul.f32 %v2971, %v558
    %v3004 = vmul.f32 %v2971, %v562
    %v3005 = vmul.f32 %v2911, %v566
    %v3006 = vmul.f32 %v2911, %v570
    %v3007 = vmul.f32 %v2915, %v566
    %v3008 = vmul.f32 %v2915, %v570
    %v3009 = vmul.f32 %v2919, %v566
    %v3010 = vmul.f32 %v2919, %v570
    %v3011 = vmul.f32 %v2923, %v566
    %v3012 = vmul.f32 %v2923, %v570
    %v3013 = vmul.f32 %v2927, %v566
    %v3014 = vmul.f32 %v2927, %v570
    %v3015 = vmul.f32 %v2931, %v566
    %v3016 = vmul.f32 %v2931, %v570
    %v3017 = vmul.f32 %v2935, %v566
    %v3018 = vmul.f32 %v2935, %v570
    %v3019 = vmul.f32 %v2939, %v566
    %v3020 = vmul.f32 %v2939, %v570
    %v3021 = vmul.f32 %v2943, %v566
    %v3022 = vmul.f32 %v2943, %v570
    %v3023 = vmul.f32 %v2947, %v566
    %v3024 = vmul.f32 %v2947, %v570
    %v3025 = vmul.f32 %v2951, %v566
    %v3026 = vmul.f32 %v2951, %v570
    %v3027 = vmul.f32 %v2955, %v566
    %v3028 = vmul.f32 %v2955, %v570
    %v3029 = vmul.f32 %v2959, %v566
    %v3030 = vmul.f32 %v2959, %v570
    %v3031 = vmul.f32 %v2963, %v566
    %v3032 = vmul.f32 %v2963, %v570
    %v3033 = vmul.f32 %v2967, %v566
    %v3034 = vmul.f32 %v2967, %v570
    %v3035 = vmul.f32 %v2971, %v566
    %v3036 = vmul.f32 %v2971, %v570
    %v3037 = vadd.f32 %v2845, %v2973
    %v3038 = vadd.f32 %v2846, %v2974
    %v3039 = vadd.f32 %v2847, %v2975
    %v3040 = vadd.f32 %v2848, %v2976
    %v3041 = vadd.f32 %v2849, %v2977
    %v3042 = vadd.f32 %v2850, %v2978
    %v3043 = vadd.f32 %v2851, %v2979
    %v3044 = vadd.f32 %v2852, %v2980
    %v3045 = vadd.f32 %v2853, %v2981
    %v3046 = vadd.f32 %v2854, %v2982
    %v3047 = vadd.f32 %v2855, %v2983
    %v3048 = vadd.f32 %v2856, %v2984
    %v3049 = vadd.f32 %v2857, %v2985
    %v3050 = vadd.f32 %v2858, %v2986
    %v3051 = vadd.f32 %v2859, %v2987
    %v3052 = vadd.f32 %v2860, %v2988
    %v3053 = vadd.f32 %v2861, %v2989
    %v3054 = vadd.f32 %v2862, %v2990
    %v3055 = vadd.f32 %v2863, %v2991
    %v3056 = vadd.f32 %v2864, %v2992
    %v3057 = vadd.f32 %v2865, %v2993
    %v3058 = vadd.f32 %v2866, %v2994
    %v3059 = vadd.f32 %v2867, %v2995
    %v3060 = vadd.f32 %v2868, %v2996
    %v3061 = vadd.f32 %v2869, %v2997
    %v3062 = vadd.f32 %v2870, %v2998
    %v3063 = vadd.f32 %v2871, %v2999
    %v3064 = vadd.f32 %v2872, %v3000
    %v3065 = vadd.f32 %v2873, %v3001
    %v3066 = vadd.f32 %v2874, %v3002
    %v3067 = vadd.f32 %v2875, %v3003
    %v3068 = vadd.f32 %v2876, %v3004
    %v3069 = vadd.f32 %v2877, %v3005
    %v3070 = vadd.f32 %v2878, %v3006
    %v3071 = vadd.f32 %v2879, %v3007
    %v3072 = vadd.f32 %v2880, %v3008
    %v3073 = vadd.f32 %v2881, %v3009
    %v3074 = vadd.f32 %v2882, %v3010
    %v3075 = vadd.f32 %v2883, %v3011
    %v3076 = vadd.f32 %v2884, %v3012
    %v3077 = vadd.f32 %v2885, %v3013
    %v3078 = vadd.f32 %v2886, %v3014
    %v3079 = vadd.f32 %v2887, %v3015
    %v3080 = vadd.f32 %v2888, %v3016
    %v3081 = vadd.f32 %v2889, %v3017
    %v3082 = vadd.f32 %v2890, %v3018
    %v3083 = vadd.f32 %v2891, %v3019
    %v3084 = vadd.f32 %v2892, %v3020
    %v3085 = vadd.f32 %v2893, %v3021
    %v3086 = vadd.f32 %v2894, %v3022
    %v3087 = vadd.f32 %v2895, %v3023
    %v3088 = vadd.f32 %v2896, %v3024
    %v3089 = vadd.f32 %v2897, %v3025
    %v3090 = vadd.f32 %v2898, %v3026
    %v3091 = vadd.f32 %v2899, %v3027
    %v3092 = vadd.f32 %v2900, %v3028
    %v3093 = vadd.f32 %v2901, %v3029
    %v3094 = vadd.f32 %v2902, %v3030
    %v3095 = vadd.f32 %v2903, %v3031
    %v3096 = vadd.f32 %v2904, %v3032
    %v3097 = vadd.f32 %v2905, %v3033
    %v3098 = vadd.f32 %v2906, %v3034
    %v3099 = vadd.f32 %v2907, %v3035
    %v3100 = vadd.f32 %v2908, %v3036
    %3101 = vset.pattern.permute.xlu0 3
    %3102 = vperm.xlu0 %3101, %v2540
    %v3103 = vpop.permute.xlu0 %3102
    %3105 = vset.pattern.permute.xlu0 3
    %3106 = vperm.xlu0 %3105, %v2541
    %v3107 = vpop.permute.xlu0 %3106
    %3109 = vset.pattern.permute.xlu0 3
    %3110 = vperm.xlu0 %3109, %v2542
    %v3111 = vpop.permute.xlu0 %3110
    %3113 = vset.pattern.permute.xlu0 3
    %3114 = vperm.xlu0 %3113, %v2543
    %v3115 = vpop.permute.xlu0 %3114
    %3117 = vset.pattern.permute.xlu0 3
    %3118 = vperm.xlu0 %3117, %v2544
    %v3119 = vpop.permute.xlu0 %3118
    %3121 = vset.pattern.permute.xlu0 3
    %3122 = vperm.xlu0 %3121, %v2545
    %v3123 = vpop.permute.xlu0 %3122
    %3125 = vset.pattern.permute.xlu0 3
    %3126 = vperm.xlu0 %3125, %v2546
    %v3127 = vpop.permute.xlu0 %3126
    %3129 = vset.pattern.permute.xlu0 3
    %3130 = vperm.xlu0 %3129, %v2547
    %v3131 = vpop.permute.xlu0 %3130
    %3133 = vset.pattern.permute.xlu0 3
    %3134 = vperm.xlu0 %3133, %v2548
    %v3135 = vpop.permute.xlu0 %3134
    %3137 = vset.pattern.permute.xlu0 3
    %3138 = vperm.xlu0 %3137, %v2549
    %v3139 = vpop.permute.xlu0 %3138
    %3141 = vset.pattern.permute.xlu0 3
    %3142 = vperm.xlu0 %3141, %v2550
    %v3143 = vpop.permute.xlu0 %3142
    %3145 = vset.pattern.permute.xlu0 3
    %3146 = vperm.xlu0 %3145, %v2551
    %v3147 = vpop.permute.xlu0 %3146
    %3149 = vset.pattern.permute.xlu0 3
    %3150 = vperm.xlu0 %3149, %v2552
    %v3151 = vpop.permute.xlu0 %3150
    %3153 = vset.pattern.permute.xlu0 3
    %3154 = vperm.xlu0 %3153, %v2553
    %v3155 = vpop.permute.xlu0 %3154
    %3157 = vset.pattern.permute.xlu0 3
    %3158 = vperm.xlu0 %3157, %v2554
    %v3159 = vpop.permute.xlu0 %3158
    %3161 = vset.pattern.permute.xlu0 3
    %3162 = vperm.xlu0 %3161, %v2555
    %v3163 = vpop.permute.xlu0 %3162
    %v3165 = vmul.f32 %v3103, %v786
    %v3166 = vmul.f32 %v3103, %v790
    %v3167 = vmul.f32 %v3107, %v786
    %v3168 = vmul.f32 %v3107, %v790
    %v3169 = vmul.f32 %v3111, %v786
    %v3170 = vmul.f32 %v3111, %v790
    %v3171 = vmul.f32 %v3115, %v786
    %v3172 = vmul.f32 %v3115, %v790
    %v3173 = vmul.f32 %v3119, %v786
    %v3174 = vmul.f32 %v3119, %v790
    %v3175 = vmul.f32 %v3123, %v786
    %v3176 = vmul.f32 %v3123, %v790
    %v3177 = vmul.f32 %v3127, %v786
    %v3178 = vmul.f32 %v3127, %v790
    %v3179 = vmul.f32 %v3131, %v786
    %v3180 = vmul.f32 %v3131, %v790
    %v3181 = vmul.f32 %v3135, %v786
    %v3182 = vmul.f32 %v3135, %v790
    %v3183 = vmul.f32 %v3139, %v786
    %v3184 = vmul.f32 %v3139, %v790
    %v3185 = vmul.f32 %v3143, %v786
    %v3186 = vmul.f32 %v3143, %v790
    %v3187 = vmul.f32 %v3147, %v786
    %v3188 = vmul.f32 %v3147, %v790
    %v3189 = vmul.f32 %v3151, %v786
    %v3190 = vmul.f32 %v3151, %v790
    %v3191 = vmul.f32 %v3155, %v786
    %v3192 = vmul.f32 %v3155, %v790
    %v3193 = vmul.f32 %v3159, %v786
    %v3194 = vmul.f32 %v3159, %v790
    %v3195 = vmul.f32 %v3163, %v786
    %v3196 = vmul.f32 %v3163, %v790
    %v3197 = vmul.f32 %v3103, %v794
    %v3198 = vmul.f32 %v3103, %v798
    %v3199 = vmul.f32 %v3107, %v794
    %v3200 = vmul.f32 %v3107, %v798
    %v3201 = vmul.f32 %v3111, %v794
    %v3202 = vmul.f32 %v3111, %v798
    %v3203 = vmul.f32 %v3115, %v794
    %v3204 = vmul.f32 %v3115, %v798
    %v3205 = vmul.f32 %v3119, %v794
    %v3206 = vmul.f32 %v3119, %v798
    %v3207 = vmul.f32 %v3123, %v794
    %v3208 = vmul.f32 %v3123, %v798
    %v3209 = vmul.f32 %v3127, %v794
    %v3210 = vmul.f32 %v3127, %v798
    %v3211 = vmul.f32 %v3131, %v794
    %v3212 = vmul.f32 %v3131, %v798
    %v3213 = vmul.f32 %v3135, %v794
    %v3214 = vmul.f32 %v3135, %v798
    %v3215 = vmul.f32 %v3139, %v794
    %v3216 = vmul.f32 %v3139, %v798
    %v3217 = vmul.f32 %v3143, %v794
    %v3218 = vmul.f32 %v3143, %v798
    %v3219 = vmul.f32 %v3147, %v794
    %v3220 = vmul.f32 %v3147, %v798
    %v3221 = vmul.f32 %v3151, %v794
    %v3222 = vmul.f32 %v3151, %v798
    %v3223 = vmul.f32 %v3155, %v794
    %v3224 = vmul.f32 %v3155, %v798
    %v3225 = vmul.f32 %v3159, %v794
    %v3226 = vmul.f32 %v3159, %v798
    %v3227 = vmul.f32 %v3163, %v794
    %v3228 = vmul.f32 %v3163, %v798
    %v3229 = vadd.f32 %v3037, %v3165
    %v3230 = vadd.f32 %v3038, %v3166
    %v3231 = vadd.f32 %v3039, %v3167
    %v3232 = vadd.f32 %v3040, %v3168
    %v3233 = vadd.f32 %v3041, %v3169
    %v3234 = vadd.f32 %v3042, %v3170
    %v3235 = vadd.f32 %v3043, %v3171
    %v3236 = vadd.f32 %v3044, %v3172
    %v3237 = vadd.f32 %v3045, %v3173
    %v3238 = vadd.f32 %v3046, %v3174
    %v3239 = vadd.f32 %v3047, %v3175
    %v3240 = vadd.f32 %v3048, %v3176
    %v3241 = vadd.f32 %v3049, %v3177
    %v3242 = vadd.f32 %v3050, %v3178
    %v3243 = vadd.f32 %v3051, %v3179
    %v3244 = vadd.f32 %v3052, %v3180
    %v3245 = vadd.f32 %v3053, %v3181
    %v3246 = vadd.f32 %v3054, %v3182
    %v3247 = vadd.f32 %v3055, %v3183
    %v3248 = vadd.f32 %v3056, %v3184
    %v3249 = vadd.f32 %v3057, %v3185
    %v3250 = vadd.f32 %v3058, %v3186
    %v3251 = vadd.f32 %v3059, %v3187
    %v3252 = vadd.f32 %v3060, %v3188
    %v3253 = vadd.f32 %v3061, %v3189
    %v3254 = vadd.f32 %v3062, %v3190
    %v3255 = vadd.f32 %v3063, %v3191
    %v3256 = vadd.f32 %v3064, %v3192
    %v3257 = vadd.f32 %v3065, %v3193
    %v3258 = vadd.f32 %v3066, %v3194
    %v3259 = vadd.f32 %v3067, %v3195
    %v3260 = vadd.f32 %v3068, %v3196
    %v3261 = vadd.f32 %v3069, %v3197
    %v3262 = vadd.f32 %v3070, %v3198
    %v3263 = vadd.f32 %v3071, %v3199
    %v3264 = vadd.f32 %v3072, %v3200
    %v3265 = vadd.f32 %v3073, %v3201
    %v3266 = vadd.f32 %v3074, %v3202
    %v3267 = vadd.f32 %v3075, %v3203
    %v3268 = vadd.f32 %v3076, %v3204
    %v3269 = vadd.f32 %v3077, %v3205
    %v3270 = vadd.f32 %v3078, %v3206
    %v3271 = vadd.f32 %v3079, %v3207
    %v3272 = vadd.f32 %v3080, %v3208
    %v3273 = vadd.f32 %v3081, %v3209
    %v3274 = vadd.f32 %v3082, %v3210
    %v3275 = vadd.f32 %v3083, %v3211
    %v3276 = vadd.f32 %v3084, %v3212
    %v3277 = vadd.f32 %v3085, %v3213
    %v3278 = vadd.f32 %v3086, %v3214
    %v3279 = vadd.f32 %v3087, %v3215
    %v3280 = vadd.f32 %v3088, %v3216
    %v3281 = vadd.f32 %v3089, %v3217
    %v3282 = vadd.f32 %v3090, %v3218
    %v3283 = vadd.f32 %v3091, %v3219
    %v3284 = vadd.f32 %v3092, %v3220
    %v3285 = vadd.f32 %v3093, %v3221
    %v3286 = vadd.f32 %v3094, %v3222
    %v3287 = vadd.f32 %v3095, %v3223
    %v3288 = vadd.f32 %v3096, %v3224
    %v3289 = vadd.f32 %v3097, %v3225
    %v3290 = vadd.f32 %v3098, %v3226
    %v3291 = vadd.f32 %v3099, %v3227
    %v3292 = vadd.f32 %v3100, %v3228
    %3294 = vset.pattern.permute.xlu0 0
    %3295 = vperm.xlu0 %3294, %v2557
    %v3296 = vpop.permute.xlu0 %3295
    %3299 = vset.pattern.permute.xlu0 0
    %3300 = vperm.xlu0 %3299, %v2558
    %v3301 = vpop.permute.xlu0 %3300
    %3304 = vset.pattern.permute.xlu0 0
    %3305 = vperm.xlu0 %3304, %v2559
    %v3306 = vpop.permute.xlu0 %3305
    %3309 = vset.pattern.permute.xlu0 0
    %3310 = vperm.xlu0 %3309, %v2560
    %v3311 = vpop.permute.xlu0 %3310
    %3314 = vset.pattern.permute.xlu0 0
    %3315 = vperm.xlu0 %3314, %v2561
    %v3316 = vpop.permute.xlu0 %3315
    %3319 = vset.pattern.permute.xlu0 0
    %3320 = vperm.xlu0 %3319, %v2562
    %v3321 = vpop.permute.xlu0 %3320
    %3324 = vset.pattern.permute.xlu0 0
    %3325 = vperm.xlu0 %3324, %v2563
    %v3326 = vpop.permute.xlu0 %3325
    %3329 = vset.pattern.permute.xlu0 0
    %3330 = vperm.xlu0 %3329, %v2564
    %v3331 = vpop.permute.xlu0 %3330
    %3334 = vset.pattern.permute.xlu0 0
    %3335 = vperm.xlu0 %3334, %v2565
    %v3336 = vpop.permute.xlu0 %3335
    %3339 = vset.pattern.permute.xlu0 0
    %3340 = vperm.xlu0 %3339, %v2566
    %v3341 = vpop.permute.xlu0 %3340
    %3344 = vset.pattern.permute.xlu0 0
    %3345 = vperm.xlu0 %3344, %v2567
    %v3346 = vpop.permute.xlu0 %3345
    %3349 = vset.pattern.permute.xlu0 0
    %3350 = vperm.xlu0 %3349, %v2568
    %v3351 = vpop.permute.xlu0 %3350
    %3354 = vset.pattern.permute.xlu0 0
    %3355 = vperm.xlu0 %3354, %v2569
    %v3356 = vpop.permute.xlu0 %3355
    %3359 = vset.pattern.permute.xlu0 0
    %3360 = vperm.xlu0 %3359, %v2570
    %v3361 = vpop.permute.xlu0 %3360
    %3364 = vset.pattern.permute.xlu0 0
    %3365 = vperm.xlu0 %3364, %v2571
    %v3366 = vpop.permute.xlu0 %3365
    %3369 = vset.pattern.permute.xlu0 0
    %3370 = vperm.xlu0 %3369, %v2572
    %v3371 = vpop.permute.xlu0 %3370
    %v3373 = vadd.f32 %v3229, %v3296
    %v3374 = vadd.f32 %v3230, %v3296
    %v3375 = vadd.f32 %v3231, %v3301
    %v3376 = vadd.f32 %v3232, %v3301
    %v3377 = vadd.f32 %v3233, %v3306
    %v3378 = vadd.f32 %v3234, %v3306
    %v3379 = vadd.f32 %v3235, %v3311
    %v3380 = vadd.f32 %v3236, %v3311
    %v3381 = vadd.f32 %v3237, %v3316
    %v3382 = vadd.f32 %v3238, %v3316
    %v3383 = vadd.f32 %v3239, %v3321
    %v3384 = vadd.f32 %v3240, %v3321
    %v3385 = vadd.f32 %v3241, %v3326
    %v3386 = vadd.f32 %v3242, %v3326
    %v3387 = vadd.f32 %v3243, %v3331
    %v3388 = vadd.f32 %v3244, %v3331
    %v3389 = vadd.f32 %v3245, %v3336
    %v3390 = vadd.f32 %v3246, %v3336
    %v3391 = vadd.f32 %v3247, %v3341
    %v3392 = vadd.f32 %v3248, %v3341
    %v3393 = vadd.f32 %v3249, %v3346
    %v3394 = vadd.f32 %v3250, %v3346
    %v3395 = vadd.f32 %v3251, %v3351
    %v3396 = vadd.f32 %v3252, %v3351
    %v3397 = vadd.f32 %v3253, %v3356
    %v3398 = vadd.f32 %v3254, %v3356
    %v3399 = vadd.f32 %v3255, %v3361
    %v3400 = vadd.f32 %v3256, %v3361
    %v3401 = vadd.f32 %v3257, %v3366
    %v3402 = vadd.f32 %v3258, %v3366
    %v3403 = vadd.f32 %v3259, %v3371
    %v3404 = vadd.f32 %v3260, %v3371
    %v3405 = vadd.f32 %v3261, %v3296
    %v3406 = vadd.f32 %v3262, %v3296
    %v3407 = vadd.f32 %v3263, %v3301
    %v3408 = vadd.f32 %v3264, %v3301
    %v3409 = vadd.f32 %v3265, %v3306
    %v3410 = vadd.f32 %v3266, %v3306
    %v3411 = vadd.f32 %v3267, %v3311
    %v3412 = vadd.f32 %v3268, %v3311
    %v3413 = vadd.f32 %v3269, %v3316
    %v3414 = vadd.f32 %v3270, %v3316
    %v3415 = vadd.f32 %v3271, %v3321
    %v3416 = vadd.f32 %v3272, %v3321
    %v3417 = vadd.f32 %v3273, %v3326
    %v3418 = vadd.f32 %v3274, %v3326
    %v3419 = vadd.f32 %v3275, %v3331
    %v3420 = vadd.f32 %v3276, %v3331
    %v3421 = vadd.f32 %v3277, %v3336
    %v3422 = vadd.f32 %v3278, %v3336
    %v3423 = vadd.f32 %v3279, %v3341
    %v3424 = vadd.f32 %v3280, %v3341
    %v3425 = vadd.f32 %v3281, %v3346
    %v3426 = vadd.f32 %v3282, %v3346
    %v3427 = vadd.f32 %v3283, %v3351
    %v3428 = vadd.f32 %v3284, %v3351
    %v3429 = vadd.f32 %v3285, %v3356
    %v3430 = vadd.f32 %v3286, %v3356
    %v3431 = vadd.f32 %v3287, %v3361
    %v3432 = vadd.f32 %v3288, %v3361
    %v3433 = vadd.f32 %v3289, %v3366
    %v3434 = vadd.f32 %v3290, %v3366
    %v3435 = vadd.f32 %v3291, %v3371
    %v3436 = vadd.f32 %v3292, %v3371
    %v3437 = vmax.f32 %v3373, 0.0
    %v3438 = vmax.f32 %v3374, 0.0
    %v3439 = vmax.f32 %v3375, 0.0
    %v3440 = vmax.f32 %v3376, 0.0
    %v3441 = vmax.f32 %v3377, 0.0
    %v3442 = vmax.f32 %v3378, 0.0
    %v3443 = vmax.f32 %v3379, 0.0
    %v3444 = vmax.f32 %v3380, 0.0
    %v3445 = vmax.f32 %v3381, 0.0
    %v3446 = vmax.f32 %v3382, 0.0
    %v3447 = vmax.f32 %v3383, 0.0
    %v3448 = vmax.f32 %v3384, 0.0
    %v3449 = vmax.f32 %v3385, 0.0
    %v3450 = vmax.f32 %v3386, 0.0
    %v3451 = vmax.f32 %v3387, 0.0
    %v3452 = vmax.f32 %v3388, 0.0
    %v3453 = vmax.f32 %v3389, 0.0
    %v3454 = vmax.f32 %v3390, 0.0
    %v3455 = vmax.f32 %v3391, 0.0
    %v3456 = vmax.f32 %v3392, 0.0
    %v3457 = vmax.f32 %v3393, 0.0
    %v3458 = vmax.f32 %v3394, 0.0
    %v3459 = vmax.f32 %v3395, 0.0
    %v3460 = vmax.f32 %v3396, 0.0
    %v3461 = vmax.f32 %v3397, 0.0
    %v3462 = vmax.f32 %v3398, 0.0
    %v3463 = vmax.f32 %v3399, 0.0
    %v3464 = vmax.f32 %v3400, 0.0
    %v3465 = vmax.f32 %v3401, 0.0
    %v3466 = vmax.f32 %v3402, 0.0
    %v3467 = vmax.f32 %v3403, 0.0
    %v3468 = vmax.f32 %v3404, 0.0
    %v3469 = vmax.f32 %v3405, 0.0
    %v3470 = vmax.f32 %v3406, 0.0
    %v3471 = vmax.f32 %v3407, 0.0
    %v3472 = vmax.f32 %v3408, 0.0
    %v3473 = vmax.f32 %v3409, 0.0
    %v3474 = vmax.f32 %v3410, 0.0
    %v3475 = vmax.f32 %v3411, 0.0
    %v3476 = vmax.f32 %v3412, 0.0
    %v3477 = vmax.f32 %v3413, 0.0
    %v3478 = vmax.f32 %v3414, 0.0
    %v3479 = vmax.f32 %v3415, 0.0
    %v3480 = vmax.f32 %v3416, 0.0
    %v3481 = vmax.f32 %v3417, 0.0
    %v3482 = vmax.f32 %v3418, 0.0
    %v3483 = vmax.f32 %v3419, 0.0
    %v3484 = vmax.f32 %v3420, 0.0
    %v3485 = vmax.f32 %v3421, 0.0
    %v3486 = vmax.f32 %v3422, 0.0
    %v3487 = vmax.f32 %v3423, 0.0
    %v3488 = vmax.f32 %v3424, 0.0
    %v3489 = vmax.f32 %v3425, 0.0
    %v3490 = vmax.f32 %v3426, 0.0
    %v3491 = vmax.f32 %v3427, 0.0
    %v3492 = vmax.f32 %v3428, 0.0
    %v3493 = vmax.f32 %v3429, 0.0
    %v3494 = vmax.f32 %v3430, 0.0
    %v3495 = vmax.f32 %v3431, 0.0
    %v3496 = vmax.f32 %v3432, 0.0
    %v3497 = vmax.f32 %v3433, 0.0
    %v3498 = vmax.f32 %v3434, 0.0
    %v3499 = vmax.f32 %v3435, 0.0
    %v3500 = vmax.f32 %v3436, 0.0
    %v3501 = vadd.f32 %v3437, %v3438
    %3502 = vadd.xlane.f32.xlu0 %v3501
    %v3503 = vpop.xlane.xlu0 %3502
    %v3504 = vadd.f32 %v3439, %v3440
    %3505 = vadd.xlane.f32.xlu0 %v3504
    %v3506 = vpop.xlane.xlu0 %3505
    %v3507 = vadd.f32 %v3441, %v3442
    %3508 = vadd.xlane.f32.xlu0 %v3507
    %v3509 = vpop.xlane.xlu0 %3508
    %v3510 = vadd.f32 %v3443, %v3444
    %3511 = vadd.xlane.f32.xlu0 %v3510
    %v3512 = vpop.xlane.xlu0 %3511
    %v3513 = vadd.f32 %v3445, %v3446
    %3514 = vadd.xlane.f32.xlu0 %v3513
    %v3515 = vpop.xlane.xlu0 %3514
    %v3516 = vadd.f32 %v3447, %v3448
    %3517 = vadd.xlane.f32.xlu0 %v3516
    %v3518 = vpop.xlane.xlu0 %3517
    %v3519 = vadd.f32 %v3449, %v3450
    %3520 = vadd.xlane.f32.xlu0 %v3519
    %v3521 = vpop.xlane.xlu0 %3520
    %v3522 = vadd.f32 %v3451, %v3452
    %3523 = vadd.xlane.f32.xlu0 %v3522
    %v3524 = vpop.xlane.xlu0 %3523
    %v3525 = vadd.f32 %v3453, %v3454
    %3526 = vadd.xlane.f32.xlu0 %v3525
    %v3527 = vpop.xlane.xlu0 %3526
    %v3528 = vadd.f32 %v3455, %v3456
    %3529 = vadd.xlane.f32.xlu0 %v3528
    %v3530 = vpop.xlane.xlu0 %3529
    %v3531 = vadd.f32 %v3457, %v3458
    %3532 = vadd.xlane.f32.xlu0 %v3531
    %v3533 = vpop.xlane.xlu0 %3532
    %v3534 = vadd.f32 %v3459, %v3460
    %3535 = vadd.xlane.f32.xlu0 %v3534
    %v3536 = vpop.xlane.xlu0 %3535
    %v3537 = vadd.f32 %v3461, %v3462
    %3538 = vadd.xlane.f32.xlu0 %v3537
    %v3539 = vpop.xlane.xlu0 %3538
    %v3540 = vadd.f32 %v3463, %v3464
    %3541 = vadd.xlane.f32.xlu0 %v3540
    %v3542 = vpop.xlane.xlu0 %3541
    %v3543 = vadd.f32 %v3465, %v3466
    %3544 = vadd.xlane.f32.xlu0 %v3543
    %v3545 = vpop.xlane.xlu0 %3544
    %v3546 = vadd.f32 %v3467, %v3468
    %3547 = vadd.xlane.f32.xlu0 %v3546
    %v3548 = vpop.xlane.xlu0 %3547
    %v3549 = vadd.f32 %v3469, %v3470
    %3550 = vadd.xlane.f32.xlu0 %v3549
    %v3551 = vpop.xlane.xlu0 %3550
    %v3552 = vadd.f32 %v3471, %v3472
    %3553 = vadd.xlane.f32.xlu0 %v3552
    %v3554 = vpop.xlane.xlu0 %3553
    %v3555 = vadd.f32 %v3473, %v3474
    %3556 = vadd.xlane.f32.xlu0 %v3555
    %v3557 = vpop.xlane.xlu0 %3556
    %v3558 = vadd.f32 %v3475, %v3476
    %3559 = vadd.xlane.f32.xlu0 %v3558
    %v3560 = vpop.xlane.xlu0 %3559
    %v3561 = vadd.f32 %v3477, %v3478
    %3562 = vadd.xlane.f32.xlu0 %v3561
    %v3563 = vpop.xlane.xlu0 %3562
    %v3564 = vadd.f32 %v3479, %v3480
    %3565 = vadd.xlane.f32.xlu0 %v3564
    %v3566 = vpop.xlane.xlu0 %3565
    %v3567 = vadd.f32 %v3481, %v3482
    %3568 = vadd.xlane.f32.xlu0 %v3567
    %v3569 = vpop.xlane.xlu0 %3568
    %v3570 = vadd.f32 %v3483, %v3484
    %3571 = vadd.xlane.f32.xlu0 %v3570
    %v3572 = vpop.xlane.xlu0 %3571
    %v3573 = vadd.f32 %v3485, %v3486
    %3574 = vadd.xlane.f32.xlu0 %v3573
    %v3575 = vpop.xlane.xlu0 %3574
    %v3576 = vadd.f32 %v3487, %v3488
    %3577 = vadd.xlane.f32.xlu0 %v3576
    %v3578 = vpop.xlane.xlu0 %3577
    %v3579 = vadd.f32 %v3489, %v3490
    %3580 = vadd.xlane.f32.xlu0 %v3579
    %v3581 = vpop.xlane.xlu0 %3580
    %v3582 = vadd.f32 %v3491, %v3492
    %3583 = vadd.xlane.f32.xlu0 %v3582
    %v3584 = vpop.xlane.xlu0 %3583
    %v3585 = vadd.f32 %v3493, %v3494
    %3586 = vadd.xlane.f32.xlu0 %v3585
    %v3587 = vpop.xlane.xlu0 %3586
    %v3588 = vadd.f32 %v3495, %v3496
    %3589 = vadd.xlane.f32.xlu0 %v3588
    %v3590 = vpop.xlane.xlu0 %3589
    %v3591 = vadd.f32 %v3497, %v3498
    %3592 = vadd.xlane.f32.xlu0 %v3591
    %v3593 = vpop.xlane.xlu0 %3592
    %v3594 = vadd.f32 %v3499, %v3500
    %3595 = vadd.xlane.f32.xlu0 %v3594
    %v3596 = vpop.xlane.xlu0 %3595
    %s3597 = scalar_lea.vmem %s3, 256
    %v3598 = vld [vmem:[%s3597] sm:$0xff]
    %v3599 = vld [vmem:[%s3597 + $0x8] sm:$0xff]
    %v3600 = vld [vmem:[%s3597 + $0x10] sm:$0xff]
    %v3601 = vld [vmem:[%s3597 + $0x18] sm:$0xff]
    %v3602 = vld [vmem:[%s3597 + $0x20] sm:$0xff]
    %v3603 = vld [vmem:[%s3597 + $0x28] sm:$0xff]
    %v3604 = vld [vmem:[%s3597 + $0x30] sm:$0xff]
    %v3605 = vld [vmem:[%s3597 + $0x38] sm:$0xff]
    %v3606 = vld [vmem:[%s3597 + $0x40] sm:$0xff]
    %v3607 = vld [vmem:[%s3597 + $0x48] sm:$0xff]
    %v3608 = vld [vmem:[%s3597 + $0x50] sm:$0xff]
    %v3609 = vld [vmem:[%s3597 + $0x58] sm:$0xff]
    %v3610 = vld [vmem:[%s3597 + $0x60] sm:$0xff]
    %v3611 = vld [vmem:[%s3597 + $0x68] sm:$0xff]
    %v3612 = vld [vmem:[%s3597 + $0x70] sm:$0xff]
    %v3613 = vld [vmem:[%s3597 + $0x78] sm:$0xff]
    %v3614 = vmul.f32 %v3503, %v3598
    %v3615 = vmul.f32 %v3506, %v3599
    %v3616 = vmul.f32 %v3509, %v3600
    %v3617 = vmul.f32 %v3512, %v3601
    %v3618 = vmul.f32 %v3515, %v3602
    %v3619 = vmul.f32 %v3518, %v3603
    %v3620 = vmul.f32 %v3521, %v3604
    %v3621 = vmul.f32 %v3524, %v3605
    %v3622 = vmul.f32 %v3527, %v3606
    %v3623 = vmul.f32 %v3530, %v3607
    %v3624 = vmul.f32 %v3533, %v3608
    %v3625 = vmul.f32 %v3536, %v3609
    %v3626 = vmul.f32 %v3539, %v3610
    %v3627 = vmul.f32 %v3542, %v3611
    %v3628 = vmul.f32 %v3545, %v3612
    %v3629 = vmul.f32 %v3548, %v3613
    %v3630 = vmul.f32 %v3551, %v3598
    %v3631 = vmul.f32 %v3554, %v3599
    %v3632 = vmul.f32 %v3557, %v3600
    %v3633 = vmul.f32 %v3560, %v3601
    %v3634 = vmul.f32 %v3563, %v3602
    %v3635 = vmul.f32 %v3566, %v3603
    %v3636 = vmul.f32 %v3569, %v3604
    %v3637 = vmul.f32 %v3572, %v3605
    %v3638 = vmul.f32 %v3575, %v3606
    %v3639 = vmul.f32 %v3578, %v3607
    %v3640 = vmul.f32 %v3581, %v3608
    %v3641 = vmul.f32 %v3584, %v3609
    %v3642 = vmul.f32 %v3587, %v3610
    %v3643 = vmul.f32 %v3590, %v3611
    %v3644 = vmul.f32 %v3593, %v3612
    %v3645 = vmul.f32 %v3596, %v3613
    %v3646 = vsel %vm1279, %v3614, 0.0
    %v3647 = vsel %vm1279, %v3615, 0.0
    %v3648 = vadd.f32 %v3646, %v3647
    %v3649 = vsel %vm1279, %v3616, 0.0
    %v3650 = vadd.f32 %v3648, %v3649
    %v3651 = vsel %vm1279, %v3617, 0.0
    %v3652 = vadd.f32 %v3650, %v3651
    %v3653 = vsel %vm1279, %v3618, 0.0
    %v3654 = vadd.f32 %v3652, %v3653
    %v3655 = vsel %vm1279, %v3619, 0.0
    %v3656 = vadd.f32 %v3654, %v3655
    %v3657 = vsel %vm1279, %v3620, 0.0
    %v3658 = vadd.f32 %v3656, %v3657
    %v3659 = vsel %vm1279, %v3621, 0.0
    %v3660 = vadd.f32 %v3658, %v3659
    %v3661 = vsel %vm1279, %v3622, 0.0
    %v3662 = vadd.f32 %v3660, %v3661
    %v3663 = vsel %vm1279, %v3623, 0.0
    %v3664 = vadd.f32 %v3662, %v3663
    %v3665 = vsel %vm1279, %v3624, 0.0
    %v3666 = vadd.f32 %v3664, %v3665
    %v3667 = vsel %vm1279, %v3625, 0.0
    %v3668 = vadd.f32 %v3666, %v3667
    %v3669 = vsel %vm1279, %v3626, 0.0
    %v3670 = vadd.f32 %v3668, %v3669
    %v3671 = vsel %vm1279, %v3627, 0.0
    %v3672 = vadd.f32 %v3670, %v3671
    %v3673 = vsel %vm1279, %v3628, 0.0
    %v3674 = vadd.f32 %v3672, %v3673
    %v3675 = vsel %vm1279, %v3629, 0.0
    %v3676 = vadd.f32 %v3674, %v3675
    %v3677 = vrot.slane %v3676, 4
    %v3678 = vadd.f32 %v3676, %v3677
    %v3679 = vrot.slane %v3678, 2
    %v3680 = vadd.f32 %v3678, %v3679
    %v3681 = vrot.slane %v3680, 1
    %v3682 = vadd.f32 %v3680, %v3681
    %v3683 = vsel %vm1279, %v3630, 0.0
    %v3684 = vsel %vm1279, %v3631, 0.0
    %v3685 = vadd.f32 %v3683, %v3684
    %v3686 = vsel %vm1279, %v3632, 0.0
    %v3687 = vadd.f32 %v3685, %v3686
    %v3688 = vsel %vm1279, %v3633, 0.0
    %v3689 = vadd.f32 %v3687, %v3688
    %v3690 = vsel %vm1279, %v3634, 0.0
    %v3691 = vadd.f32 %v3689, %v3690
    %v3692 = vsel %vm1279, %v3635, 0.0
    %v3693 = vadd.f32 %v3691, %v3692
    %v3694 = vsel %vm1279, %v3636, 0.0
    %v3695 = vadd.f32 %v3693, %v3694
    %v3696 = vsel %vm1279, %v3637, 0.0
    %v3697 = vadd.f32 %v3695, %v3696
    %v3698 = vsel %vm1279, %v3638, 0.0
    %v3699 = vadd.f32 %v3697, %v3698
    %v3700 = vsel %vm1279, %v3639, 0.0
    %v3701 = vadd.f32 %v3699, %v3700
    %v3702 = vsel %vm1279, %v3640, 0.0
    %v3703 = vadd.f32 %v3701, %v3702
    %v3704 = vsel %vm1279, %v3641, 0.0
    %v3705 = vadd.f32 %v3703, %v3704
    %v3706 = vsel %vm1279, %v3642, 0.0
    %v3707 = vadd.f32 %v3705, %v3706
    %v3708 = vsel %vm1279, %v3643, 0.0
    %v3709 = vadd.f32 %v3707, %v3708
    %v3710 = vsel %vm1279, %v3644, 0.0
    %v3711 = vadd.f32 %v3709, %v3710
    %v3712 = vsel %vm1279, %v3645, 0.0
    %v3713 = vadd.f32 %v3711, %v3712
    %v3714 = vrot.slane %v3713, 4
    %v3715 = vadd.f32 %v3713, %v3714
    %v3716 = vrot.slane %v3715, 2
    %v3717 = vadd.f32 %v3715, %v3716
    %v3718 = vrot.slane %v3717, 1
    %v3719 = vadd.f32 %v3717, %v3718
    %v3720 = vadd.f32 %v2537, %v3682
    %v3721 = vadd.f32 %v2538, %v3719
    %s3722 = scalar_lea.vmem %s1, 384
    %v3723 = vld [vmem:[%s3722] sm:$0xff]
    %v3724 = vld [vmem:[%s3722 + $0x8] sm:$0xff]
    %v3725 = vld [vmem:[%s3722 + $0x10] sm:$0xff]
    %v3726 = vld [vmem:[%s3722 + $0x18] sm:$0xff]
    %v3727 = vld [vmem:[%s3722 + $0x20] sm:$0xff]
    %v3728 = vld [vmem:[%s3722 + $0x28] sm:$0xff]
    %v3729 = vld [vmem:[%s3722 + $0x30] sm:$0xff]
    %v3730 = vld [vmem:[%s3722 + $0x38] sm:$0xff]
    %v3731 = vld [vmem:[%s3722 + $0x40] sm:$0xff]
    %v3732 = vld [vmem:[%s3722 + $0x48] sm:$0xff]
    %v3733 = vld [vmem:[%s3722 + $0x50] sm:$0xff]
    %v3734 = vld [vmem:[%s3722 + $0x58] sm:$0xff]
    %v3735 = vld [vmem:[%s3722 + $0x60] sm:$0xff]
    %v3736 = vld [vmem:[%s3722 + $0x68] sm:$0xff]
    %v3737 = vld [vmem:[%s3722 + $0x70] sm:$0xff]
    %v3738 = vld [vmem:[%s3722 + $0x78] sm:$0xff]
    %s3739 = scalar_lea.vmem %s2, 384
    %v3740 = vld [vmem:[%s3739] sm:$0xff]
    %v3741 = vld [vmem:[%s3739 + $0x8] sm:$0xff]
    %v3742 = vld [vmem:[%s3739 + $0x10] sm:$0xff]
    %v3743 = vld [vmem:[%s3739 + $0x18] sm:$0xff]
    %v3744 = vld [vmem:[%s3739 + $0x20] sm:$0xff]
    %v3745 = vld [vmem:[%s3739 + $0x28] sm:$0xff]
    %v3746 = vld [vmem:[%s3739 + $0x30] sm:$0xff]
    %v3747 = vld [vmem:[%s3739 + $0x38] sm:$0xff]
    %v3748 = vld [vmem:[%s3739 + $0x40] sm:$0xff]
    %v3749 = vld [vmem:[%s3739 + $0x48] sm:$0xff]
    %v3750 = vld [vmem:[%s3739 + $0x50] sm:$0xff]
    %v3751 = vld [vmem:[%s3739 + $0x58] sm:$0xff]
    %v3752 = vld [vmem:[%s3739 + $0x60] sm:$0xff]
    %v3753 = vld [vmem:[%s3739 + $0x68] sm:$0xff]
    %v3754 = vld [vmem:[%s3739 + $0x70] sm:$0xff]
    %v3755 = vld [vmem:[%s3739 + $0x78] sm:$0xff]
    %3757 = vset.pattern.permute.xlu0 0
    %3758 = vperm.xlu0 %3757, %v3723
    %v3759 = vpop.permute.xlu0 %3758
    %3762 = vset.pattern.permute.xlu0 0
    %3763 = vperm.xlu0 %3762, %v3724
    %v3764 = vpop.permute.xlu0 %3763
    %3767 = vset.pattern.permute.xlu0 0
    %3768 = vperm.xlu0 %3767, %v3725
    %v3769 = vpop.permute.xlu0 %3768
    %3772 = vset.pattern.permute.xlu0 0
    %3773 = vperm.xlu0 %3772, %v3726
    %v3774 = vpop.permute.xlu0 %3773
    %3777 = vset.pattern.permute.xlu0 0
    %3778 = vperm.xlu0 %3777, %v3727
    %v3779 = vpop.permute.xlu0 %3778
    %3782 = vset.pattern.permute.xlu0 0
    %3783 = vperm.xlu0 %3782, %v3728
    %v3784 = vpop.permute.xlu0 %3783
    %3787 = vset.pattern.permute.xlu0 0
    %3788 = vperm.xlu0 %3787, %v3729
    %v3789 = vpop.permute.xlu0 %3788
    %3792 = vset.pattern.permute.xlu0 0
    %3793 = vperm.xlu0 %3792, %v3730
    %v3794 = vpop.permute.xlu0 %3793
    %3797 = vset.pattern.permute.xlu0 0
    %3798 = vperm.xlu0 %3797, %v3731
    %v3799 = vpop.permute.xlu0 %3798
    %3802 = vset.pattern.permute.xlu0 0
    %3803 = vperm.xlu0 %3802, %v3732
    %v3804 = vpop.permute.xlu0 %3803
    %3807 = vset.pattern.permute.xlu0 0
    %3808 = vperm.xlu0 %3807, %v3733
    %v3809 = vpop.permute.xlu0 %3808
    %3812 = vset.pattern.permute.xlu0 0
    %3813 = vperm.xlu0 %3812, %v3734
    %v3814 = vpop.permute.xlu0 %3813
    %3817 = vset.pattern.permute.xlu0 0
    %3818 = vperm.xlu0 %3817, %v3735
    %v3819 = vpop.permute.xlu0 %3818
    %3822 = vset.pattern.permute.xlu0 0
    %3823 = vperm.xlu0 %3822, %v3736
    %v3824 = vpop.permute.xlu0 %3823
    %3827 = vset.pattern.permute.xlu0 0
    %3828 = vperm.xlu0 %3827, %v3737
    %v3829 = vpop.permute.xlu0 %3828
    %3832 = vset.pattern.permute.xlu0 0
    %3833 = vperm.xlu0 %3832, %v3738
    %v3834 = vpop.permute.xlu0 %3833
    %v3836 = vmul.f32 %v3759, %v166
    %v3837 = vmul.f32 %v3759, %v170
    %v3838 = vmul.f32 %v3764, %v166
    %v3839 = vmul.f32 %v3764, %v170
    %v3840 = vmul.f32 %v3769, %v166
    %v3841 = vmul.f32 %v3769, %v170
    %v3842 = vmul.f32 %v3774, %v166
    %v3843 = vmul.f32 %v3774, %v170
    %v3844 = vmul.f32 %v3779, %v166
    %v3845 = vmul.f32 %v3779, %v170
    %v3846 = vmul.f32 %v3784, %v166
    %v3847 = vmul.f32 %v3784, %v170
    %v3848 = vmul.f32 %v3789, %v166
    %v3849 = vmul.f32 %v3789, %v170
    %v3850 = vmul.f32 %v3794, %v166
    %v3851 = vmul.f32 %v3794, %v170
    %v3852 = vmul.f32 %v3799, %v166
    %v3853 = vmul.f32 %v3799, %v170
    %v3854 = vmul.f32 %v3804, %v166
    %v3855 = vmul.f32 %v3804, %v170
    %v3856 = vmul.f32 %v3809, %v166
    %v3857 = vmul.f32 %v3809, %v170
    %v3858 = vmul.f32 %v3814, %v166
    %v3859 = vmul.f32 %v3814, %v170
    %v3860 = vmul.f32 %v3819, %v166
    %v3861 = vmul.f32 %v3819, %v170
    %v3862 = vmul.f32 %v3824, %v166
    %v3863 = vmul.f32 %v3824, %v170
    %v3864 = vmul.f32 %v3829, %v166
    %v3865 = vmul.f32 %v3829, %v170
    %v3866 = vmul.f32 %v3834, %v166
    %v3867 = vmul.f32 %v3834, %v170
    %v3868 = vmul.f32 %v3759, %v174
    %v3869 = vmul.f32 %v3759, %v178
    %v3870 = vmul.f32 %v3764, %v174
    %v3871 = vmul.f32 %v3764, %v178
    %v3872 = vmul.f32 %v3769, %v174
    %v3873 = vmul.f32 %v3769, %v178
    %v3874 = vmul.f32 %v3774, %v174
    %v3875 = vmul.f32 %v3774, %v178
    %v3876 = vmul.f32 %v3779, %v174
    %v3877 = vmul.f32 %v3779, %v178
    %v3878 = vmul.f32 %v3784, %v174
    %v3879 = vmul.f32 %v3784, %v178
    %v3880 = vmul.f32 %v3789, %v174
    %v3881 = vmul.f32 %v3789, %v178
    %v3882 = vmul.f32 %v3794, %v174
    %v3883 = vmul.f32 %v3794, %v178
    %v3884 = vmul.f32 %v3799, %v174
    %v3885 = vmul.f32 %v3799, %v178
    %v3886 = vmul.f32 %v3804, %v174
    %v3887 = vmul.f32 %v3804, %v178
    %v3888 = vmul.f32 %v3809, %v174
    %v3889 = vmul.f32 %v3809, %v178
    %v3890 = vmul.f32 %v3814, %v174
    %v3891 = vmul.f32 %v3814, %v178
    %v3892 = vmul.f32 %v3819, %v174
    %v3893 = vmul.f32 %v3819, %v178
    %v3894 = vmul.f32 %v3824, %v174
    %v3895 = vmul.f32 %v3824, %v178
    %v3896 = vmul.f32 %v3829, %v174
    %v3897 = vmul.f32 %v3829, %v178
    %v3898 = vmul.f32 %v3834, %v174
    %v3899 = vmul.f32 %v3834, %v178
    %3900 = vset.pattern.permute.xlu0 1
    %3901 = vperm.xlu0 %3900, %v3723
    %v3902 = vpop.permute.xlu0 %3901
    %3904 = vset.pattern.permute.xlu0 1
    %3905 = vperm.xlu0 %3904, %v3724
    %v3906 = vpop.permute.xlu0 %3905
    %3908 = vset.pattern.permute.xlu0 1
    %3909 = vperm.xlu0 %3908, %v3725
    %v3910 = vpop.permute.xlu0 %3909
    %3912 = vset.pattern.permute.xlu0 1
    %3913 = vperm.xlu0 %3912, %v3726
    %v3914 = vpop.permute.xlu0 %3913
    %3916 = vset.pattern.permute.xlu0 1
    %3917 = vperm.xlu0 %3916, %v3727
    %v3918 = vpop.permute.xlu0 %3917
    %3920 = vset.pattern.permute.xlu0 1
    %3921 = vperm.xlu0 %3920, %v3728
    %v3922 = vpop.permute.xlu0 %3921
    %3924 = vset.pattern.permute.xlu0 1
    %3925 = vperm.xlu0 %3924, %v3729
    %v3926 = vpop.permute.xlu0 %3925
    %3928 = vset.pattern.permute.xlu0 1
    %3929 = vperm.xlu0 %3928, %v3730
    %v3930 = vpop.permute.xlu0 %3929
    %3932 = vset.pattern.permute.xlu0 1
    %3933 = vperm.xlu0 %3932, %v3731
    %v3934 = vpop.permute.xlu0 %3933
    %3936 = vset.pattern.permute.xlu0 1
    %3937 = vperm.xlu0 %3936, %v3732
    %v3938 = vpop.permute.xlu0 %3937
    %3940 = vset.pattern.permute.xlu0 1
    %3941 = vperm.xlu0 %3940, %v3733
    %v3942 = vpop.permute.xlu0 %3941
    %3944 = vset.pattern.permute.xlu0 1
    %3945 = vperm.xlu0 %3944, %v3734
    %v3946 = vpop.permute.xlu0 %3945
    %3948 = vset.pattern.permute.xlu0 1
    %3949 = vperm.xlu0 %3948, %v3735
    %v3950 = vpop.permute.xlu0 %3949
    %3952 = vset.pattern.permute.xlu0 1
    %3953 = vperm.xlu0 %3952, %v3736
    %v3954 = vpop.permute.xlu0 %3953
    %3956 = vset.pattern.permute.xlu0 1
    %3957 = vperm.xlu0 %3956, %v3737
    %v3958 = vpop.permute.xlu0 %3957
    %3960 = vset.pattern.permute.xlu0 1
    %3961 = vperm.xlu0 %3960, %v3738
    %v3962 = vpop.permute.xlu0 %3961
    %v3964 = vmul.f32 %v3902, %v330
    %v3965 = vmul.f32 %v3902, %v334
    %v3966 = vmul.f32 %v3906, %v330
    %v3967 = vmul.f32 %v3906, %v334
    %v3968 = vmul.f32 %v3910, %v330
    %v3969 = vmul.f32 %v3910, %v334
    %v3970 = vmul.f32 %v3914, %v330
    %v3971 = vmul.f32 %v3914, %v334
    %v3972 = vmul.f32 %v3918, %v330
    %v3973 = vmul.f32 %v3918, %v334
    %v3974 = vmul.f32 %v3922, %v330
    %v3975 = vmul.f32 %v3922, %v334
    %v3976 = vmul.f32 %v3926, %v330
    %v3977 = vmul.f32 %v3926, %v334
    %v3978 = vmul.f32 %v3930, %v330
    %v3979 = vmul.f32 %v3930, %v334
    %v3980 = vmul.f32 %v3934, %v330
    %v3981 = vmul.f32 %v3934, %v334
    %v3982 = vmul.f32 %v3938, %v330
    %v3983 = vmul.f32 %v3938, %v334
    %v3984 = vmul.f32 %v3942, %v330
    %v3985 = vmul.f32 %v3942, %v334
    %v3986 = vmul.f32 %v3946, %v330
    %v3987 = vmul.f32 %v3946, %v334
    %v3988 = vmul.f32 %v3950, %v330
    %v3989 = vmul.f32 %v3950, %v334
    %v3990 = vmul.f32 %v3954, %v330
    %v3991 = vmul.f32 %v3954, %v334
    %v3992 = vmul.f32 %v3958, %v330
    %v3993 = vmul.f32 %v3958, %v334
    %v3994 = vmul.f32 %v3962, %v330
    %v3995 = vmul.f32 %v3962, %v334
    %v3996 = vmul.f32 %v3902, %v338
    %v3997 = vmul.f32 %v3902, %v342
    %v3998 = vmul.f32 %v3906, %v338
    %v3999 = vmul.f32 %v3906, %v342
    %v4000 = vmul.f32 %v3910, %v338
    %v4001 = vmul.f32 %v3910, %v342
    %v4002 = vmul.f32 %v3914, %v338
    %v4003 = vmul.f32 %v3914, %v342
    %v4004 = vmul.f32 %v3918, %v338
    %v4005 = vmul.f32 %v3918, %v342
    %v4006 = vmul.f32 %v3922, %v338
    %v4007 = vmul.f32 %v3922, %v342
    %v4008 = vmul.f32 %v3926, %v338
    %v4009 = vmul.f32 %v3926, %v342
    %v4010 = vmul.f32 %v3930, %v338
    %v4011 = vmul.f32 %v3930, %v342
    %v4012 = vmul.f32 %v3934, %v338
    %v4013 = vmul.f32 %v3934, %v342
    %v4014 = vmul.f32 %v3938, %v338
    %v4015 = vmul.f32 %v3938, %v342
    %v4016 = vmul.f32 %v3942, %v338
    %v4017 = vmul.f32 %v3942, %v342
    %v4018 = vmul.f32 %v3946, %v338
    %v4019 = vmul.f32 %v3946, %v342
    %v4020 = vmul.f32 %v3950, %v338
    %v4021 = vmul.f32 %v3950, %v342
    %v4022 = vmul.f32 %v3954, %v338
    %v4023 = vmul.f32 %v3954, %v342
    %v4024 = vmul.f32 %v3958, %v338
    %v4025 = vmul.f32 %v3958, %v342
    %v4026 = vmul.f32 %v3962, %v338
    %v4027 = vmul.f32 %v3962, %v342
    %v4028 = vadd.f32 %v3836, %v3964
    %v4029 = vadd.f32 %v3837, %v3965
    %v4030 = vadd.f32 %v3838, %v3966
    %v4031 = vadd.f32 %v3839, %v3967
    %v4032 = vadd.f32 %v3840, %v3968
    %v4033 = vadd.f32 %v3841, %v3969
    %v4034 = vadd.f32 %v3842, %v3970
    %v4035 = vadd.f32 %v3843, %v3971
    %v4036 = vadd.f32 %v3844, %v3972
    %v4037 = vadd.f32 %v3845, %v3973
    %v4038 = vadd.f32 %v3846, %v3974
    %v4039 = vadd.f32 %v3847, %v3975
    %v4040 = vadd.f32 %v3848, %v3976
    %v4041 = vadd.f32 %v3849, %v3977
    %v4042 = vadd.f32 %v3850, %v3978
    %v4043 = vadd.f32 %v3851, %v3979
    %v4044 = vadd.f32 %v3852, %v3980
    %v4045 = vadd.f32 %v3853, %v3981
    %v4046 = vadd.f32 %v3854, %v3982
    %v4047 = vadd.f32 %v3855, %v3983
    %v4048 = vadd.f32 %v3856, %v3984
    %v4049 = vadd.f32 %v3857, %v3985
    %v4050 = vadd.f32 %v3858, %v3986
    %v4051 = vadd.f32 %v3859, %v3987
    %v4052 = vadd.f32 %v3860, %v3988
    %v4053 = vadd.f32 %v3861, %v3989
    %v4054 = vadd.f32 %v3862, %v3990
    %v4055 = vadd.f32 %v3863, %v3991
    %v4056 = vadd.f32 %v3864, %v3992
    %v4057 = vadd.f32 %v3865, %v3993
    %v4058 = vadd.f32 %v3866, %v3994
    %v4059 = vadd.f32 %v3867, %v3995
    %v4060 = vadd.f32 %v3868, %v3996
    %v4061 = vadd.f32 %v3869, %v3997
    %v4062 = vadd.f32 %v3870, %v3998
    %v4063 = vadd.f32 %v3871, %v3999
    %v4064 = vadd.f32 %v3872, %v4000
    %v4065 = vadd.f32 %v3873, %v4001
    %v4066 = vadd.f32 %v3874, %v4002
    %v4067 = vadd.f32 %v3875, %v4003
    %v4068 = vadd.f32 %v3876, %v4004
    %v4069 = vadd.f32 %v3877, %v4005
    %v4070 = vadd.f32 %v3878, %v4006
    %v4071 = vadd.f32 %v3879, %v4007
    %v4072 = vadd.f32 %v3880, %v4008
    %v4073 = vadd.f32 %v3881, %v4009
    %v4074 = vadd.f32 %v3882, %v4010
    %v4075 = vadd.f32 %v3883, %v4011
    %v4076 = vadd.f32 %v3884, %v4012
    %v4077 = vadd.f32 %v3885, %v4013
    %v4078 = vadd.f32 %v3886, %v4014
    %v4079 = vadd.f32 %v3887, %v4015
    %v4080 = vadd.f32 %v3888, %v4016
    %v4081 = vadd.f32 %v3889, %v4017
    %v4082 = vadd.f32 %v3890, %v4018
    %v4083 = vadd.f32 %v3891, %v4019
    %v4084 = vadd.f32 %v3892, %v4020
    %v4085 = vadd.f32 %v3893, %v4021
    %v4086 = vadd.f32 %v3894, %v4022
    %v4087 = vadd.f32 %v3895, %v4023
    %v4088 = vadd.f32 %v3896, %v4024
    %v4089 = vadd.f32 %v3897, %v4025
    %v4090 = vadd.f32 %v3898, %v4026
    %v4091 = vadd.f32 %v3899, %v4027
    %4092 = vset.pattern.permute.xlu0 2
    %4093 = vperm.xlu0 %4092, %v3723
    %v4094 = vpop.permute.xlu0 %4093
    %4096 = vset.pattern.permute.xlu0 2
    %4097 = vperm.xlu0 %4096, %v3724
    %v4098 = vpop.permute.xlu0 %4097
    %4100 = vset.pattern.permute.xlu0 2
    %4101 = vperm.xlu0 %4100, %v3725
    %v4102 = vpop.permute.xlu0 %4101
    %4104 = vset.pattern.permute.xlu0 2
    %4105 = vperm.xlu0 %4104, %v3726
    %v4106 = vpop.permute.xlu0 %4105
    %4108 = vset.pattern.permute.xlu0 2
    %4109 = vperm.xlu0 %4108, %v3727
    %v4110 = vpop.permute.xlu0 %4109
    %4112 = vset.pattern.permute.xlu0 2
    %4113 = vperm.xlu0 %4112, %v3728
    %v4114 = vpop.permute.xlu0 %4113
    %4116 = vset.pattern.permute.xlu0 2
    %4117 = vperm.xlu0 %4116, %v3729
    %v4118 = vpop.permute.xlu0 %4117
    %4120 = vset.pattern.permute.xlu0 2
    %4121 = vperm.xlu0 %4120, %v3730
    %v4122 = vpop.permute.xlu0 %4121
    %4124 = vset.pattern.permute.xlu0 2
    %4125 = vperm.xlu0 %4124, %v3731
    %v4126 = vpop.permute.xlu0 %4125
    %4128 = vset.pattern.permute.xlu0 2
    %4129 = vperm.xlu0 %4128, %v3732
    %v4130 = vpop.permute.xlu0 %4129
    %4132 = vset.pattern.permute.xlu0 2
    %4133 = vperm.xlu0 %4132, %v3733
    %v4134 = vpop.permute.xlu0 %4133
    %4136 = vset.pattern.permute.xlu0 2
    %4137 = vperm.xlu0 %4136, %v3734
    %v4138 = vpop.permute.xlu0 %4137
    %4140 = vset.pattern.permute.xlu0 2
    %4141 = vperm.xlu0 %4140, %v3735
    %v4142 = vpop.permute.xlu0 %4141
    %4144 = vset.pattern.permute.xlu0 2
    %4145 = vperm.xlu0 %4144, %v3736
    %v4146 = vpop.permute.xlu0 %4145
    %4148 = vset.pattern.permute.xlu0 2
    %4149 = vperm.xlu0 %4148, %v3737
    %v4150 = vpop.permute.xlu0 %4149
    %4152 = vset.pattern.permute.xlu0 2
    %4153 = vperm.xlu0 %4152, %v3738
    %v4154 = vpop.permute.xlu0 %4153
    %v4156 = vmul.f32 %v4094, %v558
    %v4157 = vmul.f32 %v4094, %v562
    %v4158 = vmul.f32 %v4098, %v558
    %v4159 = vmul.f32 %v4098, %v562
    %v4160 = vmul.f32 %v4102, %v558
    %v4161 = vmul.f32 %v4102, %v562
    %v4162 = vmul.f32 %v4106, %v558
    %v4163 = vmul.f32 %v4106, %v562
    %v4164 = vmul.f32 %v4110, %v558
    %v4165 = vmul.f32 %v4110, %v562
    %v4166 = vmul.f32 %v4114, %v558
    %v4167 = vmul.f32 %v4114, %v562
    %v4168 = vmul.f32 %v4118, %v558
    %v4169 = vmul.f32 %v4118, %v562
    %v4170 = vmul.f32 %v4122, %v558
    %v4171 = vmul.f32 %v4122, %v562
    %v4172 = vmul.f32 %v4126, %v558
    %v4173 = vmul.f32 %v4126, %v562
    %v4174 = vmul.f32 %v4130, %v558
    %v4175 = vmul.f32 %v4130, %v562
    %v4176 = vmul.f32 %v4134, %v558
    %v4177 = vmul.f32 %v4134, %v562
    %v4178 = vmul.f32 %v4138, %v558
    %v4179 = vmul.f32 %v4138, %v562
    %v4180 = vmul.f32 %v4142, %v558
    %v4181 = vmul.f32 %v4142, %v562
    %v4182 = vmul.f32 %v4146, %v558
    %v4183 = vmul.f32 %v4146, %v562
    %v4184 = vmul.f32 %v4150, %v558
    %v4185 = vmul.f32 %v4150, %v562
    %v4186 = vmul.f32 %v4154, %v558
    %v4187 = vmul.f32 %v4154, %v562
    %v4188 = vmul.f32 %v4094, %v566
    %v4189 = vmul.f32 %v4094, %v570
    %v4190 = vmul.f32 %v4098, %v566
    %v4191 = vmul.f32 %v4098, %v570
    %v4192 = vmul.f32 %v4102, %v566
    %v4193 = vmul.f32 %v4102, %v570
    %v4194 = vmul.f32 %v4106, %v566
    %v4195 = vmul.f32 %v4106, %v570
    %v4196 = vmul.f32 %v4110, %v566
    %v4197 = vmul.f32 %v4110, %v570
    %v4198 = vmul.f32 %v4114, %v566
    %v4199 = vmul.f32 %v4114, %v570
    %v4200 = vmul.f32 %v4118, %v566
    %v4201 = vmul.f32 %v4118, %v570
    %v4202 = vmul.f32 %v4122, %v566
    %v4203 = vmul.f32 %v4122, %v570
    %v4204 = vmul.f32 %v4126, %v566
    %v4205 = vmul.f32 %v4126, %v570
    %v4206 = vmul.f32 %v4130, %v566
    %v4207 = vmul.f32 %v4130, %v570
    %v4208 = vmul.f32 %v4134, %v566
    %v4209 = vmul.f32 %v4134, %v570
    %v4210 = vmul.f32 %v4138, %v566
    %v4211 = vmul.f32 %v4138, %v570
    %v4212 = vmul.f32 %v4142, %v566
    %v4213 = vmul.f32 %v4142, %v570
    %v4214 = vmul.f32 %v4146, %v566
    %v4215 = vmul.f32 %v4146, %v570
    %v4216 = vmul.f32 %v4150, %v566
    %v4217 = vmul.f32 %v4150, %v570
    %v4218 = vmul.f32 %v4154, %v566
    %v4219 = vmul.f32 %v4154, %v570
    %v4220 = vadd.f32 %v4028, %v4156
    %v4221 = vadd.f32 %v4029, %v4157
    %v4222 = vadd.f32 %v4030, %v4158
    %v4223 = vadd.f32 %v4031, %v4159
    %v4224 = vadd.f32 %v4032, %v4160
    %v4225 = vadd.f32 %v4033, %v4161
    %v4226 = vadd.f32 %v4034, %v4162
    %v4227 = vadd.f32 %v4035, %v4163
    %v4228 = vadd.f32 %v4036, %v4164
    %v4229 = vadd.f32 %v4037, %v4165
    %v4230 = vadd.f32 %v4038, %v4166
    %v4231 = vadd.f32 %v4039, %v4167
    %v4232 = vadd.f32 %v4040, %v4168
    %v4233 = vadd.f32 %v4041, %v4169
    %v4234 = vadd.f32 %v4042, %v4170
    %v4235 = vadd.f32 %v4043, %v4171
    %v4236 = vadd.f32 %v4044, %v4172
    %v4237 = vadd.f32 %v4045, %v4173
    %v4238 = vadd.f32 %v4046, %v4174
    %v4239 = vadd.f32 %v4047, %v4175
    %v4240 = vadd.f32 %v4048, %v4176
    %v4241 = vadd.f32 %v4049, %v4177
    %v4242 = vadd.f32 %v4050, %v4178
    %v4243 = vadd.f32 %v4051, %v4179
    %v4244 = vadd.f32 %v4052, %v4180
    %v4245 = vadd.f32 %v4053, %v4181
    %v4246 = vadd.f32 %v4054, %v4182
    %v4247 = vadd.f32 %v4055, %v4183
    %v4248 = vadd.f32 %v4056, %v4184
    %v4249 = vadd.f32 %v4057, %v4185
    %v4250 = vadd.f32 %v4058, %v4186
    %v4251 = vadd.f32 %v4059, %v4187
    %v4252 = vadd.f32 %v4060, %v4188
    %v4253 = vadd.f32 %v4061, %v4189
    %v4254 = vadd.f32 %v4062, %v4190
    %v4255 = vadd.f32 %v4063, %v4191
    %v4256 = vadd.f32 %v4064, %v4192
    %v4257 = vadd.f32 %v4065, %v4193
    %v4258 = vadd.f32 %v4066, %v4194
    %v4259 = vadd.f32 %v4067, %v4195
    %v4260 = vadd.f32 %v4068, %v4196
    %v4261 = vadd.f32 %v4069, %v4197
    %v4262 = vadd.f32 %v4070, %v4198
    %v4263 = vadd.f32 %v4071, %v4199
    %v4264 = vadd.f32 %v4072, %v4200
    %v4265 = vadd.f32 %v4073, %v4201
    %v4266 = vadd.f32 %v4074, %v4202
    %v4267 = vadd.f32 %v4075, %v4203
    %v4268 = vadd.f32 %v4076, %v4204
    %v4269 = vadd.f32 %v4077, %v4205
    %v4270 = vadd.f32 %v4078, %v4206
    %v4271 = vadd.f32 %v4079, %v4207
    %v4272 = vadd.f32 %v4080, %v4208
    %v4273 = vadd.f32 %v4081, %v4209
    %v4274 = vadd.f32 %v4082, %v4210
    %v4275 = vadd.f32 %v4083, %v4211
    %v4276 = vadd.f32 %v4084, %v4212
    %v4277 = vadd.f32 %v4085, %v4213
    %v4278 = vadd.f32 %v4086, %v4214
    %v4279 = vadd.f32 %v4087, %v4215
    %v4280 = vadd.f32 %v4088, %v4216
    %v4281 = vadd.f32 %v4089, %v4217
    %v4282 = vadd.f32 %v4090, %v4218
    %v4283 = vadd.f32 %v4091, %v4219
    %4284 = vset.pattern.permute.xlu0 3
    %4285 = vperm.xlu0 %4284, %v3723
    %v4286 = vpop.permute.xlu0 %4285
    %4288 = vset.pattern.permute.xlu0 3
    %4289 = vperm.xlu0 %4288, %v3724
    %v4290 = vpop.permute.xlu0 %4289
    %4292 = vset.pattern.permute.xlu0 3
    %4293 = vperm.xlu0 %4292, %v3725
    %v4294 = vpop.permute.xlu0 %4293
    %4296 = vset.pattern.permute.xlu0 3
    %4297 = vperm.xlu0 %4296, %v3726
    %v4298 = vpop.permute.xlu0 %4297
    %4300 = vset.pattern.permute.xlu0 3
    %4301 = vperm.xlu0 %4300, %v3727
    %v4302 = vpop.permute.xlu0 %4301
    %4304 = vset.pattern.permute.xlu0 3
    %4305 = vperm.xlu0 %4304, %v3728
    %v4306 = vpop.permute.xlu0 %4305
    %4308 = vset.pattern.permute.xlu0 3
    %4309 = vperm.xlu0 %4308, %v3729
    %v4310 = vpop.permute.xlu0 %4309
    %4312 = vset.pattern.permute.xlu0 3
    %4313 = vperm.xlu0 %4312, %v3730
    %v4314 = vpop.permute.xlu0 %4313
    %4316 = vset.pattern.permute.xlu0 3
    %4317 = vperm.xlu0 %4316, %v3731
    %v4318 = vpop.permute.xlu0 %4317
    %4320 = vset.pattern.permute.xlu0 3
    %4321 = vperm.xlu0 %4320, %v3732
    %v4322 = vpop.permute.xlu0 %4321
    %4324 = vset.pattern.permute.xlu0 3
    %4325 = vperm.xlu0 %4324, %v3733
    %v4326 = vpop.permute.xlu0 %4325
    %4328 = vset.pattern.permute.xlu0 3
    %4329 = vperm.xlu0 %4328, %v3734
    %v4330 = vpop.permute.xlu0 %4329
    %4332 = vset.pattern.permute.xlu0 3
    %4333 = vperm.xlu0 %4332, %v3735
    %v4334 = vpop.permute.xlu0 %4333
    %4336 = vset.pattern.permute.xlu0 3
    %4337 = vperm.xlu0 %4336, %v3736
    %v4338 = vpop.permute.xlu0 %4337
    %4340 = vset.pattern.permute.xlu0 3
    %4341 = vperm.xlu0 %4340, %v3737
    %v4342 = vpop.permute.xlu0 %4341
    %4344 = vset.pattern.permute.xlu0 3
    %4345 = vperm.xlu0 %4344, %v3738
    %v4346 = vpop.permute.xlu0 %4345
    %v4348 = vmul.f32 %v4286, %v786
    %v4349 = vmul.f32 %v4286, %v790
    %v4350 = vmul.f32 %v4290, %v786
    %v4351 = vmul.f32 %v4290, %v790
    %v4352 = vmul.f32 %v4294, %v786
    %v4353 = vmul.f32 %v4294, %v790
    %v4354 = vmul.f32 %v4298, %v786
    %v4355 = vmul.f32 %v4298, %v790
    %v4356 = vmul.f32 %v4302, %v786
    %v4357 = vmul.f32 %v4302, %v790
    %v4358 = vmul.f32 %v4306, %v786
    %v4359 = vmul.f32 %v4306, %v790
    %v4360 = vmul.f32 %v4310, %v786
    %v4361 = vmul.f32 %v4310, %v790
    %v4362 = vmul.f32 %v4314, %v786
    %v4363 = vmul.f32 %v4314, %v790
    %v4364 = vmul.f32 %v4318, %v786
    %v4365 = vmul.f32 %v4318, %v790
    %v4366 = vmul.f32 %v4322, %v786
    %v4367 = vmul.f32 %v4322, %v790
    %v4368 = vmul.f32 %v4326, %v786
    %v4369 = vmul.f32 %v4326, %v790
    %v4370 = vmul.f32 %v4330, %v786
    %v4371 = vmul.f32 %v4330, %v790
    %v4372 = vmul.f32 %v4334, %v786
    %v4373 = vmul.f32 %v4334, %v790
    %v4374 = vmul.f32 %v4338, %v786
    %v4375 = vmul.f32 %v4338, %v790
    %v4376 = vmul.f32 %v4342, %v786
    %v4377 = vmul.f32 %v4342, %v790
    %v4378 = vmul.f32 %v4346, %v786
    %v4379 = vmul.f32 %v4346, %v790
    %v4380 = vmul.f32 %v4286, %v794
    %v4381 = vmul.f32 %v4286, %v798
    %v4382 = vmul.f32 %v4290, %v794
    %v4383 = vmul.f32 %v4290, %v798
    %v4384 = vmul.f32 %v4294, %v794
    %v4385 = vmul.f32 %v4294, %v798
    %v4386 = vmul.f32 %v4298, %v794
    %v4387 = vmul.f32 %v4298, %v798
    %v4388 = vmul.f32 %v4302, %v794
    %v4389 = vmul.f32 %v4302, %v798
    %v4390 = vmul.f32 %v4306, %v794
    %v4391 = vmul.f32 %v4306, %v798
    %v4392 = vmul.f32 %v4310, %v794
    %v4393 = vmul.f32 %v4310, %v798
    %v4394 = vmul.f32 %v4314, %v794
    %v4395 = vmul.f32 %v4314, %v798
    %v4396 = vmul.f32 %v4318, %v794
    %v4397 = vmul.f32 %v4318, %v798
    %v4398 = vmul.f32 %v4322, %v794
    %v4399 = vmul.f32 %v4322, %v798
    %v4400 = vmul.f32 %v4326, %v794
    %v4401 = vmul.f32 %v4326, %v798
    %v4402 = vmul.f32 %v4330, %v794
    %v4403 = vmul.f32 %v4330, %v798
    %v4404 = vmul.f32 %v4334, %v794
    %v4405 = vmul.f32 %v4334, %v798
    %v4406 = vmul.f32 %v4338, %v794
    %v4407 = vmul.f32 %v4338, %v798
    %v4408 = vmul.f32 %v4342, %v794
    %v4409 = vmul.f32 %v4342, %v798
    %v4410 = vmul.f32 %v4346, %v794
    %v4411 = vmul.f32 %v4346, %v798
    %v4412 = vadd.f32 %v4220, %v4348
    %v4413 = vadd.f32 %v4221, %v4349
    %v4414 = vadd.f32 %v4222, %v4350
    %v4415 = vadd.f32 %v4223, %v4351
    %v4416 = vadd.f32 %v4224, %v4352
    %v4417 = vadd.f32 %v4225, %v4353
    %v4418 = vadd.f32 %v4226, %v4354
    %v4419 = vadd.f32 %v4227, %v4355
    %v4420 = vadd.f32 %v4228, %v4356
    %v4421 = vadd.f32 %v4229, %v4357
    %v4422 = vadd.f32 %v4230, %v4358
    %v4423 = vadd.f32 %v4231, %v4359
    %v4424 = vadd.f32 %v4232, %v4360
    %v4425 = vadd.f32 %v4233, %v4361
    %v4426 = vadd.f32 %v4234, %v4362
    %v4427 = vadd.f32 %v4235, %v4363
    %v4428 = vadd.f32 %v4236, %v4364
    %v4429 = vadd.f32 %v4237, %v4365
    %v4430 = vadd.f32 %v4238, %v4366
    %v4431 = vadd.f32 %v4239, %v4367
    %v4432 = vadd.f32 %v4240, %v4368
    %v4433 = vadd.f32 %v4241, %v4369
    %v4434 = vadd.f32 %v4242, %v4370
    %v4435 = vadd.f32 %v4243, %v4371
    %v4436 = vadd.f32 %v4244, %v4372
    %v4437 = vadd.f32 %v4245, %v4373
    %v4438 = vadd.f32 %v4246, %v4374
    %v4439 = vadd.f32 %v4247, %v4375
    %v4440 = vadd.f32 %v4248, %v4376
    %v4441 = vadd.f32 %v4249, %v4377
    %v4442 = vadd.f32 %v4250, %v4378
    %v4443 = vadd.f32 %v4251, %v4379
    %v4444 = vadd.f32 %v4252, %v4380
    %v4445 = vadd.f32 %v4253, %v4381
    %v4446 = vadd.f32 %v4254, %v4382
    %v4447 = vadd.f32 %v4255, %v4383
    %v4448 = vadd.f32 %v4256, %v4384
    %v4449 = vadd.f32 %v4257, %v4385
    %v4450 = vadd.f32 %v4258, %v4386
    %v4451 = vadd.f32 %v4259, %v4387
    %v4452 = vadd.f32 %v4260, %v4388
    %v4453 = vadd.f32 %v4261, %v4389
    %v4454 = vadd.f32 %v4262, %v4390
    %v4455 = vadd.f32 %v4263, %v4391
    %v4456 = vadd.f32 %v4264, %v4392
    %v4457 = vadd.f32 %v4265, %v4393
    %v4458 = vadd.f32 %v4266, %v4394
    %v4459 = vadd.f32 %v4267, %v4395
    %v4460 = vadd.f32 %v4268, %v4396
    %v4461 = vadd.f32 %v4269, %v4397
    %v4462 = vadd.f32 %v4270, %v4398
    %v4463 = vadd.f32 %v4271, %v4399
    %v4464 = vadd.f32 %v4272, %v4400
    %v4465 = vadd.f32 %v4273, %v4401
    %v4466 = vadd.f32 %v4274, %v4402
    %v4467 = vadd.f32 %v4275, %v4403
    %v4468 = vadd.f32 %v4276, %v4404
    %v4469 = vadd.f32 %v4277, %v4405
    %v4470 = vadd.f32 %v4278, %v4406
    %v4471 = vadd.f32 %v4279, %v4407
    %v4472 = vadd.f32 %v4280, %v4408
    %v4473 = vadd.f32 %v4281, %v4409
    %v4474 = vadd.f32 %v4282, %v4410
    %v4475 = vadd.f32 %v4283, %v4411
    %4477 = vset.pattern.permute.xlu0 0
    %4478 = vperm.xlu0 %4477, %v3740
    %v4479 = vpop.permute.xlu0 %4478
    %4482 = vset.pattern.permute.xlu0 0
    %4483 = vperm.xlu0 %4482, %v3741
    %v4484 = vpop.permute.xlu0 %4483
    %4487 = vset.pattern.permute.xlu0 0
    %4488 = vperm.xlu0 %4487, %v3742
    %v4489 = vpop.permute.xlu0 %4488
    %4492 = vset.pattern.permute.xlu0 0
    %4493 = vperm.xlu0 %4492, %v3743
    %v4494 = vpop.permute.xlu0 %4493
    %4497 = vset.pattern.permute.xlu0 0
    %4498 = vperm.xlu0 %4497, %v3744
    %v4499 = vpop.permute.xlu0 %4498
    %4502 = vset.pattern.permute.xlu0 0
    %4503 = vperm.xlu0 %4502, %v3745
    %v4504 = vpop.permute.xlu0 %4503
    %4507 = vset.pattern.permute.xlu0 0
    %4508 = vperm.xlu0 %4507, %v3746
    %v4509 = vpop.permute.xlu0 %4508
    %4512 = vset.pattern.permute.xlu0 0
    %4513 = vperm.xlu0 %4512, %v3747
    %v4514 = vpop.permute.xlu0 %4513
    %4517 = vset.pattern.permute.xlu0 0
    %4518 = vperm.xlu0 %4517, %v3748
    %v4519 = vpop.permute.xlu0 %4518
    %4522 = vset.pattern.permute.xlu0 0
    %4523 = vperm.xlu0 %4522, %v3749
    %v4524 = vpop.permute.xlu0 %4523
    %4527 = vset.pattern.permute.xlu0 0
    %4528 = vperm.xlu0 %4527, %v3750
    %v4529 = vpop.permute.xlu0 %4528
    %4532 = vset.pattern.permute.xlu0 0
    %4533 = vperm.xlu0 %4532, %v3751
    %v4534 = vpop.permute.xlu0 %4533
    %4537 = vset.pattern.permute.xlu0 0
    %4538 = vperm.xlu0 %4537, %v3752
    %v4539 = vpop.permute.xlu0 %4538
    %4542 = vset.pattern.permute.xlu0 0
    %4543 = vperm.xlu0 %4542, %v3753
    %v4544 = vpop.permute.xlu0 %4543
    %4547 = vset.pattern.permute.xlu0 0
    %4548 = vperm.xlu0 %4547, %v3754
    %v4549 = vpop.permute.xlu0 %4548
    %4552 = vset.pattern.permute.xlu0 0
    %4553 = vperm.xlu0 %4552, %v3755
    %v4554 = vpop.permute.xlu0 %4553
    %v4556 = vadd.f32 %v4412, %v4479
    %v4557 = vadd.f32 %v4413, %v4479
    %v4558 = vadd.f32 %v4414, %v4484
    %v4559 = vadd.f32 %v4415, %v4484
    %v4560 = vadd.f32 %v4416, %v4489
    %v4561 = vadd.f32 %v4417, %v4489
    %v4562 = vadd.f32 %v4418, %v4494
    %v4563 = vadd.f32 %v4419, %v4494
    %v4564 = vadd.f32 %v4420, %v4499
    %v4565 = vadd.f32 %v4421, %v4499
    %v4566 = vadd.f32 %v4422, %v4504
    %v4567 = vadd.f32 %v4423, %v4504
    %v4568 = vadd.f32 %v4424, %v4509
    %v4569 = vadd.f32 %v4425, %v4509
    %v4570 = vadd.f32 %v4426, %v4514
    %v4571 = vadd.f32 %v4427, %v4514
    %v4572 = vadd.f32 %v4428, %v4519
    %v4573 = vadd.f32 %v4429, %v4519
    %v4574 = vadd.f32 %v4430, %v4524
    %v4575 = vadd.f32 %v4431, %v4524
    %v4576 = vadd.f32 %v4432, %v4529
    %v4577 = vadd.f32 %v4433, %v4529
    %v4578 = vadd.f32 %v4434, %v4534
    %v4579 = vadd.f32 %v4435, %v4534
    %v4580 = vadd.f32 %v4436, %v4539
    %v4581 = vadd.f32 %v4437, %v4539
    %v4582 = vadd.f32 %v4438, %v4544
    %v4583 = vadd.f32 %v4439, %v4544
    %v4584 = vadd.f32 %v4440, %v4549
    %v4585 = vadd.f32 %v4441, %v4549
    %v4586 = vadd.f32 %v4442, %v4554
    %v4587 = vadd.f32 %v4443, %v4554
    %v4588 = vadd.f32 %v4444, %v4479
    %v4589 = vadd.f32 %v4445, %v4479
    %v4590 = vadd.f32 %v4446, %v4484
    %v4591 = vadd.f32 %v4447, %v4484
    %v4592 = vadd.f32 %v4448, %v4489
    %v4593 = vadd.f32 %v4449, %v4489
    %v4594 = vadd.f32 %v4450, %v4494
    %v4595 = vadd.f32 %v4451, %v4494
    %v4596 = vadd.f32 %v4452, %v4499
    %v4597 = vadd.f32 %v4453, %v4499
    %v4598 = vadd.f32 %v4454, %v4504
    %v4599 = vadd.f32 %v4455, %v4504
    %v4600 = vadd.f32 %v4456, %v4509
    %v4601 = vadd.f32 %v4457, %v4509
    %v4602 = vadd.f32 %v4458, %v4514
    %v4603 = vadd.f32 %v4459, %v4514
    %v4604 = vadd.f32 %v4460, %v4519
    %v4605 = vadd.f32 %v4461, %v4519
    %v4606 = vadd.f32 %v4462, %v4524
    %v4607 = vadd.f32 %v4463, %v4524
    %v4608 = vadd.f32 %v4464, %v4529
    %v4609 = vadd.f32 %v4465, %v4529
    %v4610 = vadd.f32 %v4466, %v4534
    %v4611 = vadd.f32 %v4467, %v4534
    %v4612 = vadd.f32 %v4468, %v4539
    %v4613 = vadd.f32 %v4469, %v4539
    %v4614 = vadd.f32 %v4470, %v4544
    %v4615 = vadd.f32 %v4471, %v4544
    %v4616 = vadd.f32 %v4472, %v4549
    %v4617 = vadd.f32 %v4473, %v4549
    %v4618 = vadd.f32 %v4474, %v4554
    %v4619 = vadd.f32 %v4475, %v4554
    %v4620 = vmax.f32 %v4556, 0.0
    %v4621 = vmax.f32 %v4557, 0.0
    %v4622 = vmax.f32 %v4558, 0.0
    %v4623 = vmax.f32 %v4559, 0.0
    %v4624 = vmax.f32 %v4560, 0.0
    %v4625 = vmax.f32 %v4561, 0.0
    %v4626 = vmax.f32 %v4562, 0.0
    %v4627 = vmax.f32 %v4563, 0.0
    %v4628 = vmax.f32 %v4564, 0.0
    %v4629 = vmax.f32 %v4565, 0.0
    %v4630 = vmax.f32 %v4566, 0.0
    %v4631 = vmax.f32 %v4567, 0.0
    %v4632 = vmax.f32 %v4568, 0.0
    %v4633 = vmax.f32 %v4569, 0.0
    %v4634 = vmax.f32 %v4570, 0.0
    %v4635 = vmax.f32 %v4571, 0.0
    %v4636 = vmax.f32 %v4572, 0.0
    %v4637 = vmax.f32 %v4573, 0.0
    %v4638 = vmax.f32 %v4574, 0.0
    %v4639 = vmax.f32 %v4575, 0.0
    %v4640 = vmax.f32 %v4576, 0.0
    %v4641 = vmax.f32 %v4577, 0.0
    %v4642 = vmax.f32 %v4578, 0.0
    %v4643 = vmax.f32 %v4579, 0.0
    %v4644 = vmax.f32 %v4580, 0.0
    %v4645 = vmax.f32 %v4581, 0.0
    %v4646 = vmax.f32 %v4582, 0.0
    %v4647 = vmax.f32 %v4583, 0.0
    %v4648 = vmax.f32 %v4584, 0.0
    %v4649 = vmax.f32 %v4585, 0.0
    %v4650 = vmax.f32 %v4586, 0.0
    %v4651 = vmax.f32 %v4587, 0.0
    %v4652 = vmax.f32 %v4588, 0.0
    %v4653 = vmax.f32 %v4589, 0.0
    %v4654 = vmax.f32 %v4590, 0.0
    %v4655 = vmax.f32 %v4591, 0.0
    %v4656 = vmax.f32 %v4592, 0.0
    %v4657 = vmax.f32 %v4593, 0.0
    %v4658 = vmax.f32 %v4594, 0.0
    %v4659 = vmax.f32 %v4595, 0.0
    %v4660 = vmax.f32 %v4596, 0.0
    %v4661 = vmax.f32 %v4597, 0.0
    %v4662 = vmax.f32 %v4598, 0.0
    %v4663 = vmax.f32 %v4599, 0.0
    %v4664 = vmax.f32 %v4600, 0.0
    %v4665 = vmax.f32 %v4601, 0.0
    %v4666 = vmax.f32 %v4602, 0.0
    %v4667 = vmax.f32 %v4603, 0.0
    %v4668 = vmax.f32 %v4604, 0.0
    %v4669 = vmax.f32 %v4605, 0.0
    %v4670 = vmax.f32 %v4606, 0.0
    %v4671 = vmax.f32 %v4607, 0.0
    %v4672 = vmax.f32 %v4608, 0.0
    %v4673 = vmax.f32 %v4609, 0.0
    %v4674 = vmax.f32 %v4610, 0.0
    %v4675 = vmax.f32 %v4611, 0.0
    %v4676 = vmax.f32 %v4612, 0.0
    %v4677 = vmax.f32 %v4613, 0.0
    %v4678 = vmax.f32 %v4614, 0.0
    %v4679 = vmax.f32 %v4615, 0.0
    %v4680 = vmax.f32 %v4616, 0.0
    %v4681 = vmax.f32 %v4617, 0.0
    %v4682 = vmax.f32 %v4618, 0.0
    %v4683 = vmax.f32 %v4619, 0.0
    %v4684 = vadd.f32 %v4620, %v4621
    %4685 = vadd.xlane.f32.xlu0 %v4684
    %v4686 = vpop.xlane.xlu0 %4685
    %v4687 = vadd.f32 %v4622, %v4623
    %4688 = vadd.xlane.f32.xlu0 %v4687
    %v4689 = vpop.xlane.xlu0 %4688
    %v4690 = vadd.f32 %v4624, %v4625
    %4691 = vadd.xlane.f32.xlu0 %v4690
    %v4692 = vpop.xlane.xlu0 %4691
    %v4693 = vadd.f32 %v4626, %v4627
    %4694 = vadd.xlane.f32.xlu0 %v4693
    %v4695 = vpop.xlane.xlu0 %4694
    %v4696 = vadd.f32 %v4628, %v4629
    %4697 = vadd.xlane.f32.xlu0 %v4696
    %v4698 = vpop.xlane.xlu0 %4697
    %v4699 = vadd.f32 %v4630, %v4631
    %4700 = vadd.xlane.f32.xlu0 %v4699
    %v4701 = vpop.xlane.xlu0 %4700
    %v4702 = vadd.f32 %v4632, %v4633
    %4703 = vadd.xlane.f32.xlu0 %v4702
    %v4704 = vpop.xlane.xlu0 %4703
    %v4705 = vadd.f32 %v4634, %v4635
    %4706 = vadd.xlane.f32.xlu0 %v4705
    %v4707 = vpop.xlane.xlu0 %4706
    %v4708 = vadd.f32 %v4636, %v4637
    %4709 = vadd.xlane.f32.xlu0 %v4708
    %v4710 = vpop.xlane.xlu0 %4709
    %v4711 = vadd.f32 %v4638, %v4639
    %4712 = vadd.xlane.f32.xlu0 %v4711
    %v4713 = vpop.xlane.xlu0 %4712
    %v4714 = vadd.f32 %v4640, %v4641
    %4715 = vadd.xlane.f32.xlu0 %v4714
    %v4716 = vpop.xlane.xlu0 %4715
    %v4717 = vadd.f32 %v4642, %v4643
    %4718 = vadd.xlane.f32.xlu0 %v4717
    %v4719 = vpop.xlane.xlu0 %4718
    %v4720 = vadd.f32 %v4644, %v4645
    %4721 = vadd.xlane.f32.xlu0 %v4720
    %v4722 = vpop.xlane.xlu0 %4721
    %v4723 = vadd.f32 %v4646, %v4647
    %4724 = vadd.xlane.f32.xlu0 %v4723
    %v4725 = vpop.xlane.xlu0 %4724
    %v4726 = vadd.f32 %v4648, %v4649
    %4727 = vadd.xlane.f32.xlu0 %v4726
    %v4728 = vpop.xlane.xlu0 %4727
    %v4729 = vadd.f32 %v4650, %v4651
    %4730 = vadd.xlane.f32.xlu0 %v4729
    %v4731 = vpop.xlane.xlu0 %4730
    %v4732 = vadd.f32 %v4652, %v4653
    %4733 = vadd.xlane.f32.xlu0 %v4732
    %v4734 = vpop.xlane.xlu0 %4733
    %v4735 = vadd.f32 %v4654, %v4655
    %4736 = vadd.xlane.f32.xlu0 %v4735
    %v4737 = vpop.xlane.xlu0 %4736
    %v4738 = vadd.f32 %v4656, %v4657
    %4739 = vadd.xlane.f32.xlu0 %v4738
    %v4740 = vpop.xlane.xlu0 %4739
    %v4741 = vadd.f32 %v4658, %v4659
    %4742 = vadd.xlane.f32.xlu0 %v4741
    %v4743 = vpop.xlane.xlu0 %4742
    %v4744 = vadd.f32 %v4660, %v4661
    %4745 = vadd.xlane.f32.xlu0 %v4744
    %v4746 = vpop.xlane.xlu0 %4745
    %v4747 = vadd.f32 %v4662, %v4663
    %4748 = vadd.xlane.f32.xlu0 %v4747
    %v4749 = vpop.xlane.xlu0 %4748
    %v4750 = vadd.f32 %v4664, %v4665
    %4751 = vadd.xlane.f32.xlu0 %v4750
    %v4752 = vpop.xlane.xlu0 %4751
    %v4753 = vadd.f32 %v4666, %v4667
    %4754 = vadd.xlane.f32.xlu0 %v4753
    %v4755 = vpop.xlane.xlu0 %4754
    %v4756 = vadd.f32 %v4668, %v4669
    %4757 = vadd.xlane.f32.xlu0 %v4756
    %v4758 = vpop.xlane.xlu0 %4757
    %v4759 = vadd.f32 %v4670, %v4671
    %4760 = vadd.xlane.f32.xlu0 %v4759
    %v4761 = vpop.xlane.xlu0 %4760
    %v4762 = vadd.f32 %v4672, %v4673
    %4763 = vadd.xlane.f32.xlu0 %v4762
    %v4764 = vpop.xlane.xlu0 %4763
    %v4765 = vadd.f32 %v4674, %v4675
    %4766 = vadd.xlane.f32.xlu0 %v4765
    %v4767 = vpop.xlane.xlu0 %4766
    %v4768 = vadd.f32 %v4676, %v4677
    %4769 = vadd.xlane.f32.xlu0 %v4768
    %v4770 = vpop.xlane.xlu0 %4769
    %v4771 = vadd.f32 %v4678, %v4679
    %4772 = vadd.xlane.f32.xlu0 %v4771
    %v4773 = vpop.xlane.xlu0 %4772
    %v4774 = vadd.f32 %v4680, %v4681
    %4775 = vadd.xlane.f32.xlu0 %v4774
    %v4776 = vpop.xlane.xlu0 %4775
    %v4777 = vadd.f32 %v4682, %v4683
    %4778 = vadd.xlane.f32.xlu0 %v4777
    %v4779 = vpop.xlane.xlu0 %4778
    %s4780 = scalar_lea.vmem %s3, 384
    %v4781 = vld [vmem:[%s4780] sm:$0xff]
    %v4782 = vld [vmem:[%s4780 + $0x8] sm:$0xff]
    %v4783 = vld [vmem:[%s4780 + $0x10] sm:$0xff]
    %v4784 = vld [vmem:[%s4780 + $0x18] sm:$0xff]
    %v4785 = vld [vmem:[%s4780 + $0x20] sm:$0xff]
    %v4786 = vld [vmem:[%s4780 + $0x28] sm:$0xff]
    %v4787 = vld [vmem:[%s4780 + $0x30] sm:$0xff]
    %v4788 = vld [vmem:[%s4780 + $0x38] sm:$0xff]
    %v4789 = vld [vmem:[%s4780 + $0x40] sm:$0xff]
    %v4790 = vld [vmem:[%s4780 + $0x48] sm:$0xff]
    %v4791 = vld [vmem:[%s4780 + $0x50] sm:$0xff]
    %v4792 = vld [vmem:[%s4780 + $0x58] sm:$0xff]
    %v4793 = vld [vmem:[%s4780 + $0x60] sm:$0xff]
    %v4794 = vld [vmem:[%s4780 + $0x68] sm:$0xff]
    %v4795 = vld [vmem:[%s4780 + $0x70] sm:$0xff]
    %v4796 = vld [vmem:[%s4780 + $0x78] sm:$0xff]
    %v4797 = vmul.f32 %v4686, %v4781
    %v4798 = vmul.f32 %v4689, %v4782
    %v4799 = vmul.f32 %v4692, %v4783
    %v4800 = vmul.f32 %v4695, %v4784
    %v4801 = vmul.f32 %v4698, %v4785
    %v4802 = vmul.f32 %v4701, %v4786
    %v4803 = vmul.f32 %v4704, %v4787
    %v4804 = vmul.f32 %v4707, %v4788
    %v4805 = vmul.f32 %v4710, %v4789
    %v4806 = vmul.f32 %v4713, %v4790
    %v4807 = vmul.f32 %v4716, %v4791
    %v4808 = vmul.f32 %v4719, %v4792
    %v4809 = vmul.f32 %v4722, %v4793
    %v4810 = vmul.f32 %v4725, %v4794
    %v4811 = vmul.f32 %v4728, %v4795
    %v4812 = vmul.f32 %v4731, %v4796
    %v4813 = vmul.f32 %v4734, %v4781
    %v4814 = vmul.f32 %v4737, %v4782
    %v4815 = vmul.f32 %v4740, %v4783
    %v4816 = vmul.f32 %v4743, %v4784
    %v4817 = vmul.f32 %v4746, %v4785
    %v4818 = vmul.f32 %v4749, %v4786
    %v4819 = vmul.f32 %v4752, %v4787
    %v4820 = vmul.f32 %v4755, %v4788
    %v4821 = vmul.f32 %v4758, %v4789
    %v4822 = vmul.f32 %v4761, %v4790
    %v4823 = vmul.f32 %v4764, %v4791
    %v4824 = vmul.f32 %v4767, %v4792
    %v4825 = vmul.f32 %v4770, %v4793
    %v4826 = vmul.f32 %v4773, %v4794
    %v4827 = vmul.f32 %v4776, %v4795
    %v4828 = vmul.f32 %v4779, %v4796
    %v4829 = vsel %vm1279, %v4797, 0.0
    %v4830 = vsel %vm1279, %v4798, 0.0
    %v4831 = vadd.f32 %v4829, %v4830
    %v4832 = vsel %vm1279, %v4799, 0.0
    %v4833 = vadd.f32 %v4831, %v4832
    %v4834 = vsel %vm1279, %v4800, 0.0
    %v4835 = vadd.f32 %v4833, %v4834
    %v4836 = vsel %vm1279, %v4801, 0.0
    %v4837 = vadd.f32 %v4835, %v4836
    %v4838 = vsel %vm1279, %v4802, 0.0
    %v4839 = vadd.f32 %v4837, %v4838
    %v4840 = vsel %vm1279, %v4803, 0.0
    %v4841 = vadd.f32 %v4839, %v4840
    %v4842 = vsel %vm1279, %v4804, 0.0
    %v4843 = vadd.f32 %v4841, %v4842
    %v4844 = vsel %vm1279, %v4805, 0.0
    %v4845 = vadd.f32 %v4843, %v4844
    %v4846 = vsel %vm1279, %v4806, 0.0
    %v4847 = vadd.f32 %v4845, %v4846
    %v4848 = vsel %vm1279, %v4807, 0.0
    %v4849 = vadd.f32 %v4847, %v4848
    %v4850 = vsel %vm1279, %v4808, 0.0
    %v4851 = vadd.f32 %v4849, %v4850
    %v4852 = vsel %vm1279, %v4809, 0.0
    %v4853 = vadd.f32 %v4851, %v4852
    %v4854 = vsel %vm1279, %v4810, 0.0
    %v4855 = vadd.f32 %v4853, %v4854
    %v4856 = vsel %vm1279, %v4811, 0.0
    %v4857 = vadd.f32 %v4855, %v4856
    %v4858 = vsel %vm1279, %v4812, 0.0
    %v4859 = vadd.f32 %v4857, %v4858
    %v4860 = vrot.slane %v4859, 4
    %v4861 = vadd.f32 %v4859, %v4860
    %v4862 = vrot.slane %v4861, 2
    %v4863 = vadd.f32 %v4861, %v4862
    %v4864 = vrot.slane %v4863, 1
    %v4865 = vadd.f32 %v4863, %v4864
    %v4866 = vsel %vm1279, %v4813, 0.0
    %v4867 = vsel %vm1279, %v4814, 0.0
    %v4868 = vadd.f32 %v4866, %v4867
    %v4869 = vsel %vm1279, %v4815, 0.0
    %v4870 = vadd.f32 %v4868, %v4869
    %v4871 = vsel %vm1279, %v4816, 0.0
    %v4872 = vadd.f32 %v4870, %v4871
    %v4873 = vsel %vm1279, %v4817, 0.0
    %v4874 = vadd.f32 %v4872, %v4873
    %v4875 = vsel %vm1279, %v4818, 0.0
    %v4876 = vadd.f32 %v4874, %v4875
    %v4877 = vsel %vm1279, %v4819, 0.0
    %v4878 = vadd.f32 %v4876, %v4877
    %v4879 = vsel %vm1279, %v4820, 0.0
    %v4880 = vadd.f32 %v4878, %v4879
    %v4881 = vsel %vm1279, %v4821, 0.0
    %v4882 = vadd.f32 %v4880, %v4881
    %v4883 = vsel %vm1279, %v4822, 0.0
    %v4884 = vadd.f32 %v4882, %v4883
    %v4885 = vsel %vm1279, %v4823, 0.0
    %v4886 = vadd.f32 %v4884, %v4885
    %v4887 = vsel %vm1279, %v4824, 0.0
    %v4888 = vadd.f32 %v4886, %v4887
    %v4889 = vsel %vm1279, %v4825, 0.0
    %v4890 = vadd.f32 %v4888, %v4889
    %v4891 = vsel %vm1279, %v4826, 0.0
    %v4892 = vadd.f32 %v4890, %v4891
    %v4893 = vsel %vm1279, %v4827, 0.0
    %v4894 = vadd.f32 %v4892, %v4893
    %v4895 = vsel %vm1279, %v4828, 0.0
    %v4896 = vadd.f32 %v4894, %v4895
    %v4897 = vrot.slane %v4896, 4
    %v4898 = vadd.f32 %v4896, %v4897
    %v4899 = vrot.slane %v4898, 2
    %v4900 = vadd.f32 %v4898, %v4899
    %v4901 = vrot.slane %v4900, 1
    %v4902 = vadd.f32 %v4900, %v4901
    %v4903 = vadd.f32 %v3720, %v4865
    %v4904 = vadd.f32 %v3721, %v4902
    %v4905 = vld [vmem:[#allocation2] sm:$0x3]
    %vm4908 = vcmask 1041409
    %v4909 = vsel %vm4908, %v4904, %v4903
    %v4911 = vadd.f32 %v4905, %v4909
    %vm4912 = vcmask 58368
    %4913 = vst.msk [vmem:[#allocation2] sm:$0x3] %vm4912, %v4911
    // Predicated region
    $region26: #{tpu_custom_call.1} parent=1 // pred_check
      %p4914 = pneg %p21
    $region27: #{tpu_custom_call.1} parent=1 // pred_check_branch
      %4916 = sbr.rel (%p4914) target = $region29
    $region28: #{tpu_custom_call.1} parent=1 // pred_region
      %v4917 = vld [vmem:[#allocation2] sm:$0x3]
      %v4918 = vld [vmem:[%s4] sm:$0x1]
      %v4920 = vlaneseq
      %v4921 = vshrl.u32 %v4920, 7
      %v4922 = vsub.s32 0, %v4921
      %v4923 = vrot.slane %v4918, %v4922
      %v4925 = vadd.f32 %v4917, %v4923
      %v4926 = vmax.f32 %v4925, 0.0
      %4927 = vst.msk [vmem:[#allocation2] sm:$0x3] %vm4912, %v4926
    $region29: #{tpu_custom_call.1} parent=1 // pred_fallthru
      _
    // Predicated region
    $region30: #{tpu_custom_call.1} parent=1 // pred_check
      _
    $region31: #{tpu_custom_call.1} parent=1 // pred_check_branch
      %4929 = sbr.rel (0) target = $region33
    $region32: #{tpu_custom_call.1} parent=1 // pred_region
      %s4931 = ssub.s32 32, 32
      %4932 = vsyncadd [#allocation3], %s4931
      %s4934 = sshll.u32 [#allocation2], 4
      %s4935 = int_to_ptr.vmem [resolvable:$true] %s4934
      %4937 = dma.vmem_to_hbm [thread:$0]  %s4935, 32, %s5, [#allocation3]
    $region33: #{tpu_custom_call.1} parent=1 // pred_fallthru
      _
    // Predicated region
    $region34: #{tpu_custom_call.1} parent=1 // pred_check
      _
    $region35: #{tpu_custom_call.1} parent=1 // pred_check_branch
      %4939 = sbr.rel (0) target = $region37
    $region36: #{tpu_custom_call.1} parent=1 // pred_region
      %4940 = dma.done [#allocation3], 32
    $region37: #{tpu_custom_call.1} parent=1 // pred_fallthru
      _
    %4941 = vsyncpa [#allocation3], 1

</llo_original>
